<compile_context>
chip_gen: v6e
topology: v6e:2x2x1
jax: 0.10.0
libtpu: 0.0.40
codegen_flags: <defaults>
</compile_context>

<pallas_src>
import math
from functools import partial

import jax
import jax.numpy as jnp
from jax import lax
from jax.experimental import pallas as pl
from jax.experimental.pallas import tpu as pltpu

LN_EPS = 1e-6


def _layernorm(x, g, b):
    mu = jnp.mean(x, axis=-1, keepdims=True)
    xc = x - mu
    var = jnp.mean(xc * xc, axis=-1, keepdims=True)
    return xc * lax.rsqrt(var + LN_EPS) * g + b


def _film_vit_block_kernel(
    x_ref, gamma1p_ref, beta_ref,
    ln1_g_ref, ln1_b_ref,
    wqkv_ref, bqkv_ref, wo_ref, bo_ref, ls1_ref,
    ln2_g_ref, ln2_b_ref,
    w1_ref, b1_ref, w2_ref, b2_ref, ls2_ref,
    out_ref,
    *, num_heads, matmul_dtype, mlp_chunk):
    tb, n, d = x_ref.shape
    hd = d // num_heads
    tbn = tb * n
    f32 = jnp.float32
    mm = matmul_dtype

    # ---- load & flatten: LN / projections / MLP run on a (tb*n, d) slab ----
    x = x_ref[...].astype(f32)                    # residual stream kept in f32
    xf = x.reshape(tbn, d)

    # ---- attention branch: norm1 -> fused QKV (bf16) -> heads-batched attention ----
    h = _layernorm(xf, ln1_g_ref[...], ln1_b_ref[...])
    # 1/sqrt(hd) scale is folded into the Q weights/bias on the host.
    qkv = (jnp.dot(h.astype(mm), wqkv_ref[...], preferred_element_type=f32)
           + bqkv_ref[...]).astype(mm)            # (tbn, 3d) bf16 — largest live value

    def to_heads(z2):
        # (tbn, d) -> (tb*H, n, hd) using only minor-two-dim swaps + free row regroups.
        z = z2.reshape(tb, n, d)
        z = jnp.swapaxes(z, 1, 2)                 # (tb, d, n)   batched 2-D transpose (XLU)
        z = z.reshape(tb * num_heads, hd, n)      # free: splits d->(H,hd), merges with tb
        return jnp.swapaxes(z, 1, 2)              # (tb*H, n, hd)

    q_bh = to_heads(qkv[:, 0:d])
    k_bh = to_heads(qkv[:, d:2 * d])
    v_bh = to_heads(qkv[:, 2 * d:3 * d])

    # One matmul stream over all (batch, head) pairs — no per-head unaligned slices/stores.
    s = jnp.einsum("bqd,bkd->bqk", q_bh, k_bh, preferred_element_type=f32)  # (tb*H, n, n)
    s = s - jnp.max(s, axis=-1, keepdims=True)
    p = jnp.exp(s)
    # NOTE: approx reciprocal (EUP) -> ~2^-12 relative error vs exact softmax.
    p = p * pl.reciprocal(jnp.sum(p, axis=-1, keepdims=True), approx=True)
    ctx = jnp.einsum("bqk,bkd->bqd", p.astype(mm), v_bh,
                     preferred_element_type=f32).astype(mm)                  # (tb*H, n, hd)

    # back to (tbn, d): inverse of to_heads
    ctx = jnp.swapaxes(ctx, 1, 2).reshape(tb, d, n)
    ctx = jnp.swapaxes(ctx, 1, 2).reshape(tbn, d)

    attn = jnp.dot(ctx, wo_ref[...], preferred_element_type=f32) + bo_ref[...]
    xf = xf + attn * ls1_ref[...]                 # layer_scale1; drop_path == identity

    # ---- FiLM: x = (1 + gamma) * x + beta ; host passes (1 + gamma) pre-folded ----
    x3 = xf.reshape(tb, n, d)
    x3 = x3 * gamma1p_ref[...] + beta_ref[...]    # (tb,1,d) broadcasts over n
    xf = x3.reshape(tbn, d)

    # ---- MLP branch: norm2 -> fc1 -> GELU -> fc2 (F-tiled) -> layer_scale2 -> residual ----
    h2 = _layernorm(xf, ln2_g_ref[...], ln2_b_ref[...]).astype(mm)
    f_total = w1_ref.shape[1]
    acc = None
    for f0 in range(0, f_total, mlp_chunk):       # static slices of the weight refs
        mblk = (jnp.dot(h2, w1_ref[:, f0:f0 + mlp_chunk], preferred_element_type=f32)
                + b1_ref[:, f0:f0 + mlp_chunk])
        # TODO(synk): PyTorch nn.GELU default is exact (erf); tanh-approx used here since
        # erf may not lower through Mosaic.  Max deviation ~1e-3.
        mblk = jax.nn.gelu(mblk, approximate=True).astype(mm)
        part = jnp.dot(mblk, w2_ref[f0:f0 + mlp_chunk, :], preferred_element_type=f32)
        acc = part if acc is None else acc + part
    mout = acc + b2_ref[...]
    out_ref[...] = (xf + mout * ls2_ref[...]).reshape(tb, n, d).astype(out_ref.dtype)


def film_vit_block(hidden_states, language_embeddings, params, *,
                   num_heads, block_bt=8, matmul_dtype=jnp.bfloat16,
                   mlp_block_f=2048, weight_buffer_count=None):
    BT, N, D = hidden_states.shape
    B, L = language_embeddings.shape
    assert BT % B == 0 and D % num_heads == 0
    t = BT // B
    hd = D // num_heads
    scale = 1.0 / math.sqrt(hd)

    # ---- batch-block size: keep grid >= 2 for small BT (both TensorCores busy),
    #      pad BT to a multiple of tb instead of collapsing to tb=1 on awkward BT. ----
    if BT <= block_bt:
        tb = (BT + 1) // 2 if BT > 1 else 1
    else:
        tb = block_bt
    n_blocks = -(-BT // tb)
    BT_pad = n_blocks * tb

    # ---- host-side (XLA) prep: FiLM projections, fused QKV, bf16 weights ----
    gamma1p = 1.0 + (language_embeddings @ params["ws"] + params["bs"])       # (B, D)
    beta = language_embeddings @ params["wsh"] + params["bsh"]                # (B, D)
    gamma1p = jnp.repeat(gamma1p, t, axis=0)[:, None, :].astype(jnp.float32)  # (BT,1,D)
    beta = jnp.repeat(beta, t, axis=0)[:, None, :].astype(jnp.float32)

    wqkv = jnp.concatenate([params["wq"] * scale, params["wk"], params["wv"]],
                           axis=1).astype(matmul_dtype)                       # (D, 3D)
    bqkv = jnp.concatenate([params["bq"] * scale, params["bk"], params["bv"]],
                           axis=1).astype(jnp.float32)                        # (1, 3D)
    wo = params["wo"].astype(matmul_dtype)
    w1 = params["w1"].astype(matmul_dtype)
    w2 = params["w2"].astype(matmul_dtype)

    F = w1.shape[1]
    mlp_chunk = mlp_block_f if (F > mlp_block_f and F % mlp_block_f == 0) else F

    x_in = hidden_states
    pad = BT_pad - BT
    if pad:
        x_in = jnp.pad(x_in, ((0, pad), (0, 0), (0, 0)))
        gamma1p = jnp.pad(gamma1p, ((0, pad), (0, 0), (0, 0)))
        beta = jnp.pad(beta, ((0, pad), (0, 0), (0, 0)))

    def const_spec(arr):
        if weight_buffer_count is None:
            return pl.BlockSpec(arr.shape, lambda i: (0,) * arr.ndim)
        # v7x: single-buffer the resident weights to reclaim ~half the weight VMEM.
        return pl.BlockSpec(arr.shape, lambda i: (0,) * arr.ndim,
                            pipeline_mode=pl.Buffered(weight_buffer_count))

    in_specs = [
        pl.BlockSpec((tb, N, D), lambda i: (i, 0, 0)),   # hidden_states block
        pl.BlockSpec((tb, 1, D), lambda i: (i, 0, 0)),   # FiLM (1 + gamma)
        pl.BlockSpec((tb, 1, D), lambda i: (i, 0, 0)),   # FiLM beta
        const_spec(params["ln1_g"]), const_spec(params["ln1_b"]),
        const_spec(wqkv), const_spec(bqkv),
        const_spec(wo), const_spec(params["bo"]), const_spec(params["ls1"]),
        const_spec(params["ln2_g"]), const_spec(params["ln2_b"]),
        const_spec(w1), const_spec(params["b1"]),
        const_spec(w2), const_spec(params["b2"]),
        const_spec(params["ls2"]),
    ]
    out_specs = pl.BlockSpec((tb, N, D), lambda i: (i, 0, 0))

    # Generation-aware VMEM budget: ~80% of physical (v7x 64MiB -> ~51MiB, v6e 128 -> ~102).
    try:
        vmem_cap = pltpu.get_tpu_info().vmem_capacity_bytes
    except Exception:
        vmem_cap = 128 * 1024 * 1024
    vmem_limit = int(vmem_cap * 0.8)

    out = pl.pallas_call(
        partial(_film_vit_block_kernel, num_heads=num_heads,
                matmul_dtype=matmul_dtype, mlp_chunk=mlp_chunk),
        grid=(n_blocks,),
        in_specs=in_specs,
        out_specs=out_specs,
        out_shape=jax.ShapeDtypeStruct((BT_pad, N, D), hidden_states.dtype),
        compiler_params=pltpu.CompilerParams(
            dimension_semantics=("parallel",),
            vmem_limit_bytes=vmem_limit),
    )(x_in, gamma1p, beta,
      params["ln1_g"], params["ln1_b"],
      wqkv, bqkv, wo, params["bo"], params["ls1"],
      params["ln2_g"], params["ln2_b"],
      w1, params["b1"], w2, params["b2"], params["ls2"])
    return out[:BT] if pad else out


def film_vit_block_ref(x, lang, params, *, num_heads, matmul_dtype=jnp.bfloat16):
    """Pure-JAX reference of the same mixed-precision forward pass (for validation)."""
    BT, N, D = x.shape
    B, L = lang.shape
    t = BT // B
    hd = D // num_heads
    scale = 1.0 / math.sqrt(hd)
    f32 = jnp.float32

    def ln(z, g, b):
        mu = z.mean(-1, keepdims=True)
        var = ((z - mu) ** 2).mean(-1, keepdims=True)
        return (z - mu) / jnp.sqrt(var + LN_EPS) * g + b

    def mm(a, w, b):
        return jnp.dot(a.astype(matmul_dtype), w.astype(matmul_dtype),
                       preferred_element_type=f32) + b

    gamma = jnp.repeat(lang @ params["ws"] + params["bs"], t, axis=0)    # (BT, D)
    beta = jnp.repeat(lang @ params["wsh"] + params["bsh"], t, axis=0)   # (BT, D)

    h = ln(x, params["ln1_g"], params["ln1_b"])
    q = mm(h, params["wq"] * scale, params["bq"] * scale)
    k = mm(h, params["wk"], params["bk"])
    v = mm(h, params["wv"], params["bv"])
    q = q.reshape(BT, N, num_heads, hd).transpose(0, 2, 1, 3).astype(matmul_dtype)
    k = k.reshape(BT, N, num_heads, hd).transpose(0, 2, 1, 3).astype(matmul_dtype)
    v = v.reshape(BT, N, num_heads, hd).transpose(0, 2, 1, 3).astype(matmul_dtype)
    s = jnp.einsum("bhqd,bhkd->bhqk", q, k, preferred_element_type=f32)
    p = jax.nn.softmax(s, axis=-1)
    ctx = jnp.einsum("bhqk,bhkd->bhqd", p.astype(matmul_dtype), v,
                     preferred_element_type=f32)
    ctx = ctx.transpose(0, 2, 1, 3).reshape(BT, N, D)
    attn = mm(ctx, params["wo"], params["bo"]) * params["ls1"]
    x = x + attn
    x = x * (1.0 + gamma[:, None, :]) + beta[:, None, :]
    h2 = ln(x, params["ln2_g"], params["ln2_b"])
    m = jax.nn.gelu(mm(h2, params["w1"], params["b1"]), approximate=True)
    m = mm(m, params["w2"], params["b2"]) * params["ls2"]
    return x + m


def make_params(key, D, L, F):
    ks = jax.random.split(key, 16)

    def lin(k, fan_in, fan_out, w_scale=None):
        kw, kb = jax.random.split(k)
        s = w_scale if w_scale is not None else 1.0 / math.sqrt(fan_in)
        w = jax.random.normal(kw, (fan_in, fan_out), jnp.float32) * s
        b = jax.random.normal(kb, (1, fan_out), jnp.float32) * 0.01
        return w, b

    params = {}
    params["ln1_g"] = jnp.ones((1, D), jnp.float32)
    params["ln1_b"] = jnp.zeros((1, D), jnp.float32)
    params["wq"], params["bq"] = lin(ks[0], D, D)
    params["wk"], params["bk"] = lin(ks[1], D, D)
    params["wv"], params["bv"] = lin(ks[2], D, D)
    params["wo"], params["bo"] = lin(ks[3], D, D)
    params["ls1"] = 0.1 * jnp.ones((1, D), jnp.float32)
    params["ws"], params["bs"] = lin(ks[4], L, D, w_scale=0.02)    # FiLM scale proj
    params["wsh"], params["bsh"] = lin(ks[5], L, D, w_scale=0.02)  # FiLM shift proj
    params["ln2_g"] = jnp.ones((1, D), jnp.float32)
    params["ln2_b"] = jnp.zeros((1, D), jnp.float32)
    params["w1"], params["b1"] = lin(ks[6], D, F)
    params["w2"], params["b2"] = lin(ks[7], F, D)
    params["ls2"] = 0.1 * jnp.ones((1, D), jnp.float32)
    return params


if __name__ == "__main__":
    B, t, N, D, L = 2, 2, 16, 128, 32      # batch, frames/batch, seq, vision_dim, llm_dim
    num_heads = 4
    BT = B * t
    F = 4 * D

    key = jax.random.PRNGKey(0)
    kx, kl, kp = jax.random.split(key, 3)
    hidden_states = jax.random.normal(kx, (BT, N, D), jnp.float32)
    language_embeddings = jax.random.normal(kl, (B, L), jnp.float32)
    params = make_params(kp, D, L, F)

    out = film_vit_block(hidden_states, language_embeddings, params, num_heads=num_heads)
    out = jax.block_until_ready(out)

    ref = film_vit_block_ref(hidden_states, language_embeddings, params, num_heads=num_heads)
    ref = jax.block_until_ready(ref)

    assert out.shape == (BT, N, D) and out.dtype == jnp.float32
    assert jnp.allclose(out, ref, rtol=2e-2, atol=2e-2), "Pallas output mismatch vs JAX reference"
    print("KERNEL_OK")
</pallas_src>

<mosaic_0001>
module attributes {stable_mosaic.version = 11 : i64} {
  func.func @_film_vit_block_kernel(%arg0: i32, %arg1: memref<2x16x128xf32, #tpu.memory_space<vmem>>, %arg2: memref<2x1x128xf32, #tpu.memory_space<vmem>>, %arg3: memref<2x1x128xf32, #tpu.memory_space<vmem>>, %arg4: memref<1x128xf32, #tpu.memory_space<vmem>>, %arg5: memref<1x128xf32, #tpu.memory_space<vmem>>, %arg6: memref<128x384xbf16, #tpu.memory_space<vmem>>, %arg7: memref<1x384xf32, #tpu.memory_space<vmem>>, %arg8: memref<128x128xbf16, #tpu.memory_space<vmem>>, %arg9: memref<1x128xf32, #tpu.memory_space<vmem>>, %arg10: memref<1x128xf32, #tpu.memory_space<vmem>>, %arg11: memref<1x128xf32, #tpu.memory_space<vmem>>, %arg12: memref<1x128xf32, #tpu.memory_space<vmem>>, %arg13: memref<128x512xbf16, #tpu.memory_space<vmem>>, %arg14: memref<1x512xf32, #tpu.memory_space<vmem>>, %arg15: memref<512x128xbf16, #tpu.memory_space<vmem>>, %arg16: memref<1x128xf32, #tpu.memory_space<vmem>>, %arg17: memref<1x128xf32, #tpu.memory_space<vmem>>, %arg18: memref<2x16x128xf32, #tpu.memory_space<vmem>>) attributes {dimension_semantics = [#tpu.dimension_semantics<parallel>], iteration_bounds = array<i64: 2>, scalar_prefetch = 0 : i64, scratch_operands = 0 : i64, tpu.core_type = #tpu.core_type<tc>, window_params = [{transform_indices = @transform_0, window_bounds = array<i64: 2, 16, 128>}, {transform_indices = @transform_1, window_bounds = array<i64: 2, 1, 128>}, {transform_indices = @transform_2, window_bounds = array<i64: 2, 1, 128>}, {pipeline_mode = #tpu.pipeline_mode<synchronous>, transform_indices = @transform_3, window_bounds = array<i64: 1, 128>}, {pipeline_mode = #tpu.pipeline_mode<synchronous>, transform_indices = @transform_4, window_bounds = array<i64: 1, 128>}, {pipeline_mode = #tpu.pipeline_mode<synchronous>, transform_indices = @transform_5, window_bounds = array<i64: 128, 384>}, {pipeline_mode = #tpu.pipeline_mode<synchronous>, transform_indices = @transform_6, window_bounds = array<i64: 1, 384>}, {pipeline_mode = #tpu.pipeline_mode<synchronous>, transform_indices = @transform_7, window_bounds = array<i64: 128, 128>}, {pipeline_mode = #tpu.pipeline_mode<synchronous>, transform_indices = @transform_8, window_bounds = array<i64: 1, 128>}, {pipeline_mode = #tpu.pipeline_mode<synchronous>, transform_indices = @transform_9, window_bounds = array<i64: 1, 128>}, {pipeline_mode = #tpu.pipeline_mode<synchronous>, transform_indices = @transform_10, window_bounds = array<i64: 1, 128>}, {pipeline_mode = #tpu.pipeline_mode<synchronous>, transform_indices = @transform_11, window_bounds = array<i64: 1, 128>}, {pipeline_mode = #tpu.pipeline_mode<synchronous>, transform_indices = @transform_12, window_bounds = array<i64: 128, 512>}, {pipeline_mode = #tpu.pipeline_mode<synchronous>, transform_indices = @transform_13, window_bounds = array<i64: 1, 512>}, {pipeline_mode = #tpu.pipeline_mode<synchronous>, transform_indices = @transform_14, window_bounds = array<i64: 512, 128>}, {pipeline_mode = #tpu.pipeline_mode<synchronous>, transform_indices = @transform_15, window_bounds = array<i64: 1, 128>}, {pipeline_mode = #tpu.pipeline_mode<synchronous>, transform_indices = @transform_16, window_bounds = array<i64: 1, 128>}, {transform_indices = @transform_17, window_bounds = array<i64: 2, 16, 128>}]} {
    %c0 = arith.constant 0 : index
    %c0_0 = arith.constant 0 : index
    %c0_1 = arith.constant 0 : index
    %0 = vector.load %arg1[%c0, %c0_0, %c0_1] : memref<2x16x128xf32, #tpu.memory_space<vmem>>, vector<2x16x128xf32>
    %1 = vector.shape_cast %0 : vector<2x16x128xf32> to vector<32x128xf32>
    %c0_2 = arith.constant 0 : index
    %c0_3 = arith.constant 0 : index
    %2 = vector.load %arg4[%c0_2, %c0_3] : memref<1x128xf32, #tpu.memory_space<vmem>>, vector<1x128xf32>
    %c0_4 = arith.constant 0 : index
    %c0_5 = arith.constant 0 : index
    %3 = vector.load %arg5[%c0_4, %c0_5] : memref<1x128xf32, #tpu.memory_space<vmem>>, vector<1x128xf32>
    %cst = arith.constant dense<0.000000e+00> : vector<32xf32>
    %4 = vector.multi_reduction <add>, %1, %cst [1] : vector<32x128xf32> to vector<32xf32>
    %5 = vector.shape_cast %4 : vector<32xf32> to vector<32x1xf32>
    %cst_6 = arith.constant 1.280000e+02 : f32
    %6 = vector.broadcast %cst_6 : f32 to vector<32x1xf32>
    %7 = arith.divf %5, %6 : vector<32x1xf32>
    %8 = vector.broadcast %7 : vector<32x1xf32> to vector<32x128xf32>
    %9 = arith.subf %1, %8 : vector<32x128xf32>
    %10 = arith.mulf %9, %9 : vector<32x128xf32>
    %cst_7 = arith.constant dense<0.000000e+00> : vector<32xf32>
    %11 = vector.multi_reduction <add>, %10, %cst_7 [1] : vector<32x128xf32> to vector<32xf32>
    %12 = vector.shape_cast %11 : vector<32xf32> to vector<32x1xf32>
    %cst_8 = arith.constant 1.280000e+02 : f32
    %13 = vector.broadcast %cst_8 : f32 to vector<32x1xf32>
    %14 = arith.divf %12, %13 : vector<32x1xf32>
    %cst_9 = arith.constant 9.99999997E-7 : f32
    %15 = vector.broadcast %cst_9 : f32 to vector<32x1xf32>
    %16 = arith.addf %14, %15 : vector<32x1xf32>
    %17 = math.rsqrt %16 : vector<32x1xf32>
    %18 = vector.broadcast %17 : vector<32x1xf32> to vector<32x128xf32>
    %19 = arith.mulf %9, %18 : vector<32x128xf32>
    %20 = vector.broadcast %2 : vector<1x128xf32> to vector<32x128xf32>
    %21 = arith.mulf %19, %20 : vector<32x128xf32>
    %22 = vector.broadcast %3 : vector<1x128xf32> to vector<32x128xf32>
    %23 = arith.addf %21, %22 : vector<32x128xf32>
    %24 = arith.truncf %23 : vector<32x128xf32> to vector<32x128xbf16>
    %c0_10 = arith.constant 0 : index
    %c0_11 = arith.constant 0 : index
    %25 = vector.load %arg6[%c0_10, %c0_11] : memref<128x384xbf16, #tpu.memory_space<vmem>>, vector<128x384xbf16>
    %cst_12 = arith.constant dense<0.000000e+00> : vector<32x384xf32>
    %26 = tpu.matmul %24, %25, %cst_12 {dimension_numbers = #tpu.dot_dimension_numbers<[1], [0], [0], [1], [0, 0, 1, 1], [], []>} : vector<32x128xbf16>, vector<128x384xbf16>, vector<32x384xf32> -> vector<32x384xf32>
    %c0_13 = arith.constant 0 : index
    %c0_14 = arith.constant 0 : index
    %27 = vector.load %arg7[%c0_13, %c0_14] : memref<1x384xf32, #tpu.memory_space<vmem>>, vector<1x384xf32>
    %28 = vector.broadcast %27 : vector<1x384xf32> to vector<32x384xf32>
    %29 = arith.addf %26, %28 : vector<32x384xf32>
    %30 = arith.truncf %29 : vector<32x384xf32> to vector<32x384xbf16>
    %31 = vector.extract_strided_slice %30 {offsets = [0, 0], sizes = [32, 128], strides = [1, 1]} : vector<32x384xbf16> to vector<32x128xbf16>
    %32 = vector.shape_cast %31 : vector<32x128xbf16> to vector<2x16x128xbf16>
    %33 = tpu.transpose %32, [0, 2, 1] : vector<2x16x128xbf16> -> vector<2x128x16xbf16>
    %34 = vector.shape_cast %33 : vector<2x128x16xbf16> to vector<8x32x16xbf16>
    %35 = tpu.transpose %34, [0, 2, 1] : vector<8x32x16xbf16> -> vector<8x16x32xbf16>
    %36 = vector.extract_strided_slice %30 {offsets = [0, 128], sizes = [32, 128], strides = [1, 1]} : vector<32x384xbf16> to vector<32x128xbf16>
    %37 = vector.shape_cast %36 : vector<32x128xbf16> to vector<2x16x128xbf16>
    %38 = tpu.transpose %37, [0, 2, 1] : vector<2x16x128xbf16> -> vector<2x128x16xbf16>
    %39 = vector.shape_cast %38 : vector<2x128x16xbf16> to vector<8x32x16xbf16>
    %40 = tpu.transpose %39, [0, 2, 1] : vector<8x32x16xbf16> -> vector<8x16x32xbf16>
    %41 = vector.extract_strided_slice %30 {offsets = [0, 256], sizes = [32, 128], strides = [1, 1]} : vector<32x384xbf16> to vector<32x128xbf16>
    %42 = vector.shape_cast %41 : vector<32x128xbf16> to vector<2x16x128xbf16>
    %43 = tpu.transpose %42, [0, 2, 1] : vector<2x16x128xbf16> -> vector<2x128x16xbf16>
    %44 = vector.shape_cast %43 : vector<2x128x16xbf16> to vector<8x32x16xbf16>
    %45 = tpu.transpose %44, [0, 2, 1] : vector<8x32x16xbf16> -> vector<8x16x32xbf16>
    "tpu.trace_start"() <{level = 10 : i32, message = "bqd,bkd->bqk"}> : () -> ()
    %cst_15 = arith.constant dense<0.000000e+00> : vector<8x16x16xf32>
    %46 = tpu.matmul %35, %40, %cst_15 {dimension_numbers = #tpu.dot_dimension_numbers<[2], [2], [1], [1], [0, 0, 0, 1, 1, 1], [0], [0]>} : vector<8x16x32xbf16>, vector<8x16x32xbf16>, vector<8x16x16xf32> -> vector<8x16x16xf32>
    "tpu.trace_stop"() : () -> ()
    %cst_16 = arith.constant dense<0xFF800000> : vector<8x16xf32>
    %47 = vector.multi_reduction <maximumf>, %46, %cst_16 [2] : vector<8x16x16xf32> to vector<8x16xf32>
    %48 = vector.shape_cast %47 : vector<8x16xf32> to vector<8x16x1xf32>
    %49 = vector.broadcast %48 : vector<8x16x1xf32> to vector<8x16x16xf32>
    %50 = arith.subf %46, %49 : vector<8x16x16xf32>
    %51 = math.exp %50 : vector<8x16x16xf32>
    %cst_17 = arith.constant dense<0.000000e+00> : vector<8x16xf32>
    %52 = vector.multi_reduction <add>, %51, %cst_17 [2] : vector<8x16x16xf32> to vector<8x16xf32>
    %53 = vector.shape_cast %52 : vector<8x16xf32> to vector<8x16x1xf32>
    %54 = tpu.reciprocal %53 {approx = true} : vector<8x16x1xf32> -> vector<8x16x1xf32>
    %55 = vector.broadcast %54 : vector<8x16x1xf32> to vector<8x16x16xf32>
    %56 = arith.mulf %51, %55 : vector<8x16x16xf32>
    %57 = arith.truncf %56 : vector<8x16x16xf32> to vector<8x16x16xbf16>
    "tpu.trace_start"() <{level = 10 : i32, message = "bqk,bkd->bqd"}> : () -> ()
    %cst_18 = arith.constant dense<0.000000e+00> : vector<8x16x32xf32>
    %58 = tpu.matmul %57, %45, %cst_18 {dimension_numbers = #tpu.dot_dimension_numbers<[2], [1], [1], [2], [0, 0, 0, 1, 1, 2], [0], [0]>} : vector<8x16x16xbf16>, vector<8x16x32xbf16>, vector<8x16x32xf32> -> vector<8x16x32xf32>
    "tpu.trace_stop"() : () -> ()
    %59 = arith.truncf %58 : vector<8x16x32xf32> to vector<8x16x32xbf16>
    %60 = tpu.transpose %59, [0, 2, 1] : vector<8x16x32xbf16> -> vector<8x32x16xbf16>
    %61 = vector.shape_cast %60 : vector<8x32x16xbf16> to vector<2x128x16xbf16>
    %62 = tpu.transpose %61, [0, 2, 1] : vector<2x128x16xbf16> -> vector<2x16x128xbf16>
    %63 = vector.shape_cast %62 : vector<2x16x128xbf16> to vector<32x128xbf16>
    %c0_19 = arith.constant 0 : index
    %c0_20 = arith.constant 0 : index
    %64 = vector.load %arg8[%c0_19, %c0_20] : memref<128x128xbf16, #tpu.memory_space<vmem>>, vector<128x128xbf16>
    %cst_21 = arith.constant dense<0.000000e+00> : vector<32x128xf32>
    %65 = tpu.matmul %63, %64, %cst_21 {dimension_numbers = #tpu.dot_dimension_numbers<[1], [0], [0], [1], [0, 0, 1, 1], [], []>} : vector<32x128xbf16>, vector<128x128xbf16>, vector<32x128xf32> -> vector<32x128xf32>
    %c0_22 = arith.constant 0 : index
    %c0_23 = arith.constant 0 : index
    %66 = vector.load %arg9[%c0_22, %c0_23] : memref<1x128xf32, #tpu.memory_space<vmem>>, vector<1x128xf32>
    %67 = vector.broadcast %66 : vector<1x128xf32> to vector<32x128xf32>
    %68 = arith.addf %65, %67 : vector<32x128xf32>
    %c0_24 = arith.constant 0 : index
    %c0_25 = arith.constant 0 : index
    %69 = vector.load %arg10[%c0_24, %c0_25] : memref<1x128xf32, #tpu.memory_space<vmem>>, vector<1x128xf32>
    %70 = vector.broadcast %69 : vector<1x128xf32> to vector<32x128xf32>
    %71 = arith.mulf %68, %70 : vector<32x128xf32>
    %72 = arith.addf %1, %71 : vector<32x128xf32>
    %73 = vector.shape_cast %72 : vector<32x128xf32> to vector<2x16x128xf32>
    %c0_26 = arith.constant 0 : index
    %c0_27 = arith.constant 0 : index
    %c0_28 = arith.constant 0 : index
    %74 = vector.load %arg2[%c0_26, %c0_27, %c0_28] : memref<2x1x128xf32, #tpu.memory_space<vmem>>, vector<2x1x128xf32>
    %75 = vector.broadcast %74 : vector<2x1x128xf32> to vector<2x16x128xf32>
    %76 = arith.mulf %73, %75 : vector<2x16x128xf32>
    %c0_29 = arith.constant 0 : index
    %c0_30 = arith.constant 0 : index
    %c0_31 = arith.constant 0 : index
    %77 = vector.load %arg3[%c0_29, %c0_30, %c0_31] : memref<2x1x128xf32, #tpu.memory_space<vmem>>, vector<2x1x128xf32>
    %78 = vector.broadcast %77 : vector<2x1x128xf32> to vector<2x16x128xf32>
    %79 = arith.addf %76, %78 : vector<2x16x128xf32>
    %80 = vector.shape_cast %79 : vector<2x16x128xf32> to vector<32x128xf32>
    %c0_32 = arith.constant 0 : index
    %c0_33 = arith.constant 0 : index
    %81 = vector.load %arg11[%c0_32, %c0_33] : memref<1x128xf32, #tpu.memory_space<vmem>>, vector<1x128xf32>
    %c0_34 = arith.constant 0 : index
    %c0_35 = arith.constant 0 : index
    %82 = vector.load %arg12[%c0_34, %c0_35] : memref<1x128xf32, #tpu.memory_space<vmem>>, vector<1x128xf32>
    %cst_36 = arith.constant dense<0.000000e+00> : vector<32xf32>
    %83 = vector.multi_reduction <add>, %80, %cst_36 [1] : vector<32x128xf32> to vector<32xf32>
    %84 = vector.shape_cast %83 : vector<32xf32> to vector<32x1xf32>
    %cst_37 = arith.constant 1.280000e+02 : f32
    %85 = vector.broadcast %cst_37 : f32 to vector<32x1xf32>
    %86 = arith.divf %84, %85 : vector<32x1xf32>
    %87 = vector.broadcast %86 : vector<32x1xf32> to vector<32x128xf32>
    %88 = arith.subf %80, %87 : vector<32x128xf32>
    %89 = arith.mulf %88, %88 : vector<32x128xf32>
    %cst_38 = arith.constant dense<0.000000e+00> : vector<32xf32>
    %90 = vector.multi_reduction <add>, %89, %cst_38 [1] : vector<32x128xf32> to vector<32xf32>
    %91 = vector.shape_cast %90 : vector<32xf32> to vector<32x1xf32>
    %cst_39 = arith.constant 1.280000e+02 : f32
    %92 = vector.broadcast %cst_39 : f32 to vector<32x1xf32>
    %93 = arith.divf %91, %92 : vector<32x1xf32>
    %cst_40 = arith.constant 9.99999997E-7 : f32
    %94 = vector.broadcast %cst_40 : f32 to vector<32x1xf32>
    %95 = arith.addf %93, %94 : vector<32x1xf32>
    %96 = math.rsqrt %95 : vector<32x1xf32>
    %97 = vector.broadcast %96 : vector<32x1xf32> to vector<32x128xf32>
    %98 = arith.mulf %88, %97 : vector<32x128xf32>
    %99 = vector.broadcast %81 : vector<1x128xf32> to vector<32x128xf32>
    %100 = arith.mulf %98, %99 : vector<32x128xf32>
    %101 = vector.broadcast %82 : vector<1x128xf32> to vector<32x128xf32>
    %102 = arith.addf %100, %101 : vector<32x128xf32>
    %103 = arith.truncf %102 : vector<32x128xf32> to vector<32x128xbf16>
    %c0_41 = arith.constant 0 : index
    %c0_42 = arith.constant 0 : index
    %104 = vector.load %arg13[%c0_41, %c0_42] : memref<128x512xbf16, #tpu.memory_space<vmem>>, vector<128x512xbf16>
    %cst_43 = arith.constant dense<0.000000e+00> : vector<32x512xf32>
    %105 = tpu.matmul %103, %104, %cst_43 {dimension_numbers = #tpu.dot_dimension_numbers<[1], [0], [0], [1], [0, 0, 1, 1], [], []>} : vector<32x128xbf16>, vector<128x512xbf16>, vector<32x512xf32> -> vector<32x512xf32>
    %c0_44 = arith.constant 0 : index
    %c0_45 = arith.constant 0 : index
    %106 = vector.load %arg14[%c0_44, %c0_45] : memref<1x512xf32, #tpu.memory_space<vmem>>, vector<1x512xf32>
    %107 = vector.broadcast %106 : vector<1x512xf32> to vector<32x512xf32>
    %108 = arith.addf %105, %107 : vector<32x512xf32>
    %109 = arith.mulf %108, %108 : vector<32x512xf32>
    %110 = arith.mulf %108, %109 : vector<32x512xf32>
    %cst_46 = arith.constant 4.471500e-02 : f32
    %111 = vector.broadcast %cst_46 : f32 to vector<32x512xf32>
    %112 = arith.mulf %111, %110 : vector<32x512xf32>
    %113 = arith.addf %108, %112 : vector<32x512xf32>
    %cst_47 = arith.constant 0.797884583 : f32
    %114 = vector.broadcast %cst_47 : f32 to vector<32x512xf32>
    %115 = arith.mulf %114, %113 : vector<32x512xf32>
    %116 = math.tanh %115 : vector<32x512xf32>
    %cst_48 = arith.constant 1.000000e+00 : f32
    %117 = vector.broadcast %cst_48 : f32 to vector<32x512xf32>
    %118 = arith.addf %117, %116 : vector<32x512xf32>
    %cst_49 = arith.constant 5.000000e-01 : f32
    %119 = vector.broadcast %cst_49 : f32 to vector<32x512xf32>
    %120 = arith.mulf %119, %118 : vector<32x512xf32>
    %121 = arith.mulf %108, %120 : vector<32x512xf32>
    %122 = arith.truncf %121 : vector<32x512xf32> to vector<32x512xbf16>
    %c0_50 = arith.constant 0 : index
    %c0_51 = arith.constant 0 : index
    %123 = vector.load %arg15[%c0_50, %c0_51] : memref<512x128xbf16, #tpu.memory_space<vmem>>, vector<512x128xbf16>
    %cst_52 = arith.constant dense<0.000000e+00> : vector<32x128xf32>
    %124 = tpu.matmul %122, %123, %cst_52 {dimension_numbers = #tpu.dot_dimension_numbers<[1], [0], [0], [1], [0, 0, 1, 1], [], []>} : vector<32x512xbf16>, vector<512x128xbf16>, vector<32x128xf32> -> vector<32x128xf32>
    %c0_53 = arith.constant 0 : index
    %c0_54 = arith.constant 0 : index
    %125 = vector.load %arg16[%c0_53, %c0_54] : memref<1x128xf32, #tpu.memory_space<vmem>>, vector<1x128xf32>
    %126 = vector.broadcast %125 : vector<1x128xf32> to vector<32x128xf32>
    %127 = arith.addf %124, %126 : vector<32x128xf32>
    %c0_55 = arith.constant 0 : index
    %c0_56 = arith.constant 0 : index
    %128 = vector.load %arg17[%c0_55, %c0_56] : memref<1x128xf32, #tpu.memory_space<vmem>>, vector<1x128xf32>
    %129 = vector.broadcast %128 : vector<1x128xf32> to vector<32x128xf32>
    %130 = arith.mulf %127, %129 : vector<32x128xf32>
    %131 = arith.addf %80, %130 : vector<32x128xf32>
    %132 = vector.shape_cast %131 : vector<32x128xf32> to vector<2x16x128xf32>
    %c0_57 = arith.constant 0 : index
    %c0_58 = arith.constant 0 : index
    %c0_59 = arith.constant 0 : index
    %133 = vector.load %arg18[%c0_57, %c0_58, %c0_59] : memref<2x16x128xf32, #tpu.memory_space<vmem>>, vector<2x16x128xf32>
    tpu.vector_store %arg18[%c0_57, %c0_58, %c0_59], %132 {strides = array<i32>} : memref<2x16x128xf32, #tpu.memory_space<vmem>>, vector<2x16x128xf32>,
    return
  }
  func.func @transform_0(%arg0: i32) -> (i32, i32, i32) {
    %c0_i32 = arith.constant 0 : i32
    %c0_i32_0 = arith.constant 0 : i32
    %c0_i32_1 = arith.constant 0 : i32
    return %arg0, %c0_i32, %c0_i32_0 : i32, i32, i32
  }
  func.func @transform_1(%arg0: i32) -> (i32, i32, i32) {
    %c0_i32 = arith.constant 0 : i32
    %c0_i32_0 = arith.constant 0 : i32
    %c0_i32_1 = arith.constant 0 : i32
    return %arg0, %c0_i32, %c0_i32_0 : i32, i32, i32
  }
  func.func @transform_2(%arg0: i32) -> (i32, i32, i32) {
    %c0_i32 = arith.constant 0 : i32
    %c0_i32_0 = arith.constant 0 : i32
    %c0_i32_1 = arith.constant 0 : i32
    return %arg0, %c0_i32, %c0_i32_0 : i32, i32, i32
  }
  func.func @transform_3(%arg0: i32) -> (i32, i32) {
    %c0_i32 = arith.constant 0 : i32
    %c0_i32_0 = arith.constant 0 : i32
    %c0_i32_1 = arith.constant 0 : i32
    return %c0_i32, %c0_i32_0 : i32, i32
  }
  func.func @transform_4(%arg0: i32) -> (i32, i32) {
    %c0_i32 = arith.constant 0 : i32
    %c0_i32_0 = arith.constant 0 : i32
    %c0_i32_1 = arith.constant 0 : i32
    return %c0_i32, %c0_i32_0 : i32, i32
  }
  func.func @transform_5(%arg0: i32) -> (i32, i32) {
    %c0_i32 = arith.constant 0 : i32
    %c0_i32_0 = arith.constant 0 : i32
    %c0_i32_1 = arith.constant 0 : i32
    return %c0_i32, %c0_i32_0 : i32, i32
  }
  func.func @transform_6(%arg0: i32) -> (i32, i32) {
    %c0_i32 = arith.constant 0 : i32
    %c0_i32_0 = arith.constant 0 : i32
    %c0_i32_1 = arith.constant 0 : i32
    return %c0_i32, %c0_i32_0 : i32, i32
  }
  func.func @transform_7(%arg0: i32) -> (i32, i32) {
    %c0_i32 = arith.constant 0 : i32
    %c0_i32_0 = arith.constant 0 : i32
    %c0_i32_1 = arith.constant 0 : i32
    return %c0_i32, %c0_i32_0 : i32, i32
  }
  func.func @transform_8(%arg0: i32) -> (i32, i32) {
    %c0_i32 = arith.constant 0 : i32
    %c0_i32_0 = arith.constant 0 : i32
    %c0_i32_1 = arith.constant 0 : i32
    return %c0_i32, %c0_i32_0 : i32, i32
  }
  func.func @transform_9(%arg0: i32) -> (i32, i32) {
    %c0_i32 = arith.constant 0 : i32
    %c0_i32_0 = arith.constant 0 : i32
    %c0_i32_1 = arith.constant 0 : i32
    return %c0_i32, %c0_i32_0 : i32, i32
  }
  func.func @transform_10(%arg0: i32) -> (i32, i32) {
    %c0_i32 = arith.constant 0 : i32
    %c0_i32_0 = arith.constant 0 : i32
    %c0_i32_1 = arith.constant 0 : i32
    return %c0_i32, %c0_i32_0 : i32, i32
  }
  func.func @transform_11(%arg0: i32) -> (i32, i32) {
    %c0_i32 = arith.constant 0 : i32
    %c0_i32_0 = arith.constant 0 : i32
    %c0_i32_1 = arith.constant 0 : i32
    return %c0_i32, %c0_i32_0 : i32, i32
  }
  func.func @transform_12(%arg0: i32) -> (i32, i32) {
    %c0_i32 = arith.constant 0 : i32
    %c0_i32_0 = arith.constant 0 : i32
    %c0_i32_1 = arith.constant 0 : i32
    return %c0_i32, %c0_i32_0 : i32, i32
  }
  func.func @transform_13(%arg0: i32) -> (i32, i32) {
    %c0_i32 = arith.constant 0 : i32
    %c0_i32_0 = arith.constant 0 : i32
    %c0_i32_1 = arith.constant 0 : i32
    return %c0_i32, %c0_i32_0 : i32, i32
  }
  func.func @transform_14(%arg0: i32) -> (i32, i32) {
    %c0_i32 = arith.constant 0 : i32
    %c0_i32_0 = arith.constant 0 : i32
    %c0_i32_1 = arith.constant 0 : i32
    return %c0_i32, %c0_i32_0 : i32, i32
  }
  func.func @transform_15(%arg0: i32) -> (i32, i32) {
    %c0_i32 = arith.constant 0 : i32
    %c0_i32_0 = arith.constant 0 : i32
    %c0_i32_1 = arith.constant 0 : i32
    return %c0_i32, %c0_i32_0 : i32, i32
  }
  func.func @transform_16(%arg0: i32) -> (i32, i32) {
    %c0_i32 = arith.constant 0 : i32
    %c0_i32_0 = arith.constant 0 : i32
    %c0_i32_1 = arith.constant 0 : i32
    return %c0_i32, %c0_i32_0 : i32, i32
  }
  func.func @transform_17(%arg0: i32) -> (i32, i32, i32) {
    %c0_i32 = arith.constant 0 : i32
    %c0_i32_0 = arith.constant 0 : i32
    %c0_i32_1 = arith.constant 0 : i32
    return %arg0, %c0_i32, %c0_i32_0 : i32, i32, i32
  }
}

</mosaic_0001>

<llo_original>
// kernel: tpu_custom_call.1
$region0: #{tpu_custom_call.1}
  #allocation0 [shape = 'u32[]', space=smem, size = 0x4, offset = 0x4, fixed_abs, tag = 'smem constant byte address 0x4 - core index']
  #allocation1 [shape = 'u32[144,128]{1,0:T(1,128)}', space=vmem, size = 0x12000, scoped, tag = 'internal scratch']
  %s0 = inlined_call_operand.hbm [shape: f32[4,16,128], index: 0, kind: input, shape index: {}]
  %s1 = inlined_call_operand.hbm [shape: f32[4,1,128], index: 1, kind: input, shape index: {}]
  %s2 = inlined_call_operand.hbm [shape: f32[4,1,128], index: 2, kind: input, shape index: {}]
  %s3 = inlined_call_operand.hbm [shape: f32[1,128], index: 3, kind: input, shape index: {}]
  %s4 = inlined_call_operand.hbm [shape: f32[1,128], index: 4, kind: input, shape index: {}]
  %s5 = inlined_call_operand.hbm [shape: bf16[128,384], index: 5, kind: input, shape index: {}]
  %s6 = inlined_call_operand.vmem [shape: f32[1,384], index: 6, kind: input, shape index: {}]
  %s7 = inlined_call_operand.hbm [shape: bf16[128,128], index: 7, kind: input, shape index: {}]
  %s8 = inlined_call_operand.vmem [shape: f32[1,128], index: 8, kind: input, shape index: {}]
  %s9 = inlined_call_operand.vmem [shape: f32[1,128], index: 9, kind: input, shape index: {}]
  %s10 = inlined_call_operand.vmem [shape: f32[1,128], index: 10, kind: input, shape index: {}]
  %s11 = inlined_call_operand.vmem [shape: f32[1,128], index: 11, kind: input, shape index: {}]
  %s12 = inlined_call_operand.hbm [shape: bf16[128,512], index: 12, kind: input, shape index: {}]
  %s13 = inlined_call_operand.vmem [shape: f32[1,512], index: 13, kind: input, shape index: {}]
  %s14 = inlined_call_operand.hbm [shape: bf16[512,128], index: 14, kind: input, shape index: {}]
  %s15 = inlined_call_operand.vmem [shape: f32[1,128], index: 15, kind: input, shape index: {}]
  %s16 = inlined_call_operand.vmem [shape: f32[1,128], index: 16, kind: input, shape index: {}]
  %s17 = inlined_call_operand.hbm [shape: f32[4,16,128], index: 17, kind: output, shape index: {}]
  %s18 = sld [smem:[#allocation0]]
  $region137: #{tpu_custom_call.1} parent=0
    _
  %s20 = ssub.s32 1, %s18
  %s21 = scalar_select 0, %s20, %s18
  $region1: #{tpu_custom_call.1} parent=0
    #allocation2 [shape = 'u8[32768]{0}', space=vmem, size = 0x8000, scoped, tag = 'input window, operand 0']
    #allocation3 [shape = 's32[2]{0}', space=sflag, size = 0x8, scoped, tag = 'scoped memory for tpu_custom_call.1']
    #allocation4 [shape = 's32[2]{0}', space=sflag, size = 0x8, scoped, tag = 'scoped memory for tpu_custom_call.1']
    #allocation5 [shape = 'u8[2048]{0}', space=vmem, size = 0x800, scoped, tag = 'input window, operand 1']
    #allocation6 [shape = 's32[2]{0}', space=sflag, size = 0x8, scoped, tag = 'scoped memory for tpu_custom_call.1']
    #allocation7 [shape = 'u8[2048]{0}', space=vmem, size = 0x800, scoped, tag = 'input window, operand 2']
    #allocation8 [shape = 'u8[512]{0}', space=vmem, size = 0x400, scoped, tag = 'input window, operand 3, single buffered']
    #allocation9 [shape = 's32[1]{0}', space=sflag, size = 0x4, scoped, tag = 'scoped memory for tpu_custom_call.1']
    #allocation10 [shape = 'u8[512]{0}', space=vmem, size = 0x400, scoped, tag = 'input window, operand 4, single buffered']
    #allocation11 [shape = 'u8[98304]{0}', space=vmem, size = 0x18000, scoped, tag = 'input window, operand 5, single buffered']
    #allocation12 [shape = 's32[1]{0}', space=sflag, size = 0x4, scoped, tag = 'scoped memory for tpu_custom_call.1']
    #allocation13 [shape = 'u8[32768]{0}', space=vmem, size = 0x8000, scoped, tag = 'input window, operand 7, single buffered']
    #allocation14 [shape = 'u8[131072]{0}', space=vmem, size = 0x20000, scoped, tag = 'input window, operand 12, single buffered']
    #allocation15 [shape = 's32[1]{0}', space=sflag, size = 0x4, scoped, tag = 'scoped memory for tpu_custom_call.1']
    #allocation16 [shape = 'u8[131072]{0}', space=vmem, size = 0x20000, scoped, tag = 'input window, operand 14, single buffered']
    #allocation17 [shape = 'u8[32768]{0}', space=vmem, size = 0x8000, scoped, tag = 'output window, operand 0']
    %22 = vsyncpa [#allocation3], 0
    %s23 = scalar_lea.sflag [#allocation3], 1
    %24 = vsyncpa %s23, 0
    %25 = vsyncpa [#allocation6], 0
    %s26 = scalar_lea.sflag [#allocation6], 1
    %27 = vsyncpa %s26, 0
    %28 = vsyncpa [#allocation9], 0
    %29 = vsyncpa [#allocation12], 0
    %30 = vsyncpa [#allocation15], 0
    %31 = vsyncpa [#allocation4], 0
    %s32 = scalar_lea.sflag [#allocation4], 1
    %33 = vsyncpa %s32, 0
    loop: start=0, step=1, limit=4
    $region2: #{tpu_custom_call.1} parent=1 // loop_pre_header
      _
    $region3: #{tpu_custom_call.1} parent=1 // loop_header
      %s35 = sphi 0, %s39
      %p36 = scmp.ge.s32.totalorder %s35, 4
      %s45 = sphi 0, %s47
      %s48 = sphi 0, %s45
      %s49 = sphi 0, %s48
      %s65 = sphi 0, %s49
      %s71 = sphi 0, %s73
      %s74 = sphi 0, %s71
      %s75 = sphi 0, %s74
      %s91 = sphi 0, %s75
      %s97 = sphi 0, %s99
      %s100 = sphi 0, %s97
      %s101 = sphi 0, %s100
      %s117 = sphi 0, %s101
      %s121 = sphi 0, %s121
      %s123 = sphi 0, %s121
      %s124 = sphi 0, %s123
      %s138 = sphi 0, %s124
      %s142 = sphi 0, %s142
      %s144 = sphi 0, %s142
      %s145 = sphi 0, %s144
      %s159 = sphi 0, %s145
      %s163 = sphi 0, %s163
      %s165 = sphi 0, %s163
      %s166 = sphi 0, %s165
      %s180 = sphi 0, %s166
      %s184 = sphi 0, %s184
      %s186 = sphi 0, %s184
      %s187 = sphi 0, %s186
      %s201 = sphi 0, %s187
      %s205 = sphi 0, %s205
      %s207 = sphi 0, %s205
      %s208 = sphi 0, %s207
      %s222 = sphi 0, %s208
      %s226 = sphi 0, %s226
      %s228 = sphi 0, %s226
      %s229 = sphi 0, %s228
      %s243 = sphi 0, %s229
      %s247 = sphi 0, %s247
      %s249 = sphi 0, %s247
      %s250 = sphi 0, %s249
      %s264 = sphi 0, %s250
      %s268 = sphi 0, %s268
      %s270 = sphi 0, %s268
      %s271 = sphi 0, %s270
      %s285 = sphi 0, %s271
      %s289 = sphi 0, %s289
      %s291 = sphi 0, %s289
      %s292 = sphi 0, %s291
      %s306 = sphi 0, %s292
      %s310 = sphi 0, %s310
      %s312 = sphi 0, %s310
      %s313 = sphi 0, %s312
      %s327 = sphi 0, %s313
      %s331 = sphi 0, %s331
      %s333 = sphi 0, %s331
      %s334 = sphi 0, %s333
      %s348 = sphi 0, %s334
      %s352 = sphi 0, %s352
      %s354 = sphi 0, %s352
      %s355 = sphi 0, %s354
      %s369 = sphi 0, %s355
      %s373 = sphi 0, %s373
      %s375 = sphi 0, %s373
      %s376 = sphi 0, %s375
      %s390 = sphi 0, %s376
      %s394 = sphi 0, %s394
      %s396 = sphi 0, %s394
      %s397 = sphi 0, %s396
      %s411 = sphi 0, %s397
      %s417 = sphi 0, %s419
      %s420 = sphi 0, %s417
      %s421 = sphi 0, %s420
      %s437 = sphi 0, %s421
    $region4: #{tpu_custom_call.1} parent=1 // loop_header_branch
      %38 = sbr.rel (%p36) target = $region8
    $region5: #{tpu_custom_call.1} parent=1 // loop_body
      %s40 = ssub.s32 %s35, 1
      %s41 = ssub.s32 %s35, 2
      %s42 = sadd.s32 %s35, 1
      %s43 = ssub.s32 %s35, %s42
      %p44 = scmp.eq.s32.totalorder %s43, 0
      %s46 = sadd.s32 %s45, 1
      %s47 = scalar_select %p44, %s45, %s46
      %p50 = pneg %p44
      %p51 = scmp.eq.s32.totalorder %s35, 1
      %p52 = por %p50, %p51
      %p53 = scmp.ne.s32.totalorder %s45, %s48
      %p54 = scmp.eq.s32.totalorder %s35, 0
      %p55 = por %p53, %p54
      %p56 = scmp.ne.s32.totalorder %s45, %s48
      %p57 = scmp.eq.s32.totalorder %s40, 1
      %p58 = por %p56, %p57
      %p59 = scmp.ne.s32.totalorder %s48, %s49
      %p60 = scmp.eq.s32.totalorder %s40, 0
      %p61 = por %p59, %p60
      %p62 = scmp.ne.s32.totalorder %s48, %s49
      %p63 = scmp.eq.s32.totalorder %s41, 1
      %p64 = por %p62, %p63
      %p66 = scmp.ne.s32.totalorder %s49, %s65
      %p67 = scmp.eq.s32.totalorder %s41, 0
      %p68 = por %p66, %p67
      %s69 = ssub.s32 %s35, %s42
      %p70 = scmp.eq.s32.totalorder %s69, 0
      %s72 = sadd.s32 %s71, 1
      %s73 = scalar_select %p70, %s71, %s72
      %p76 = pneg %p70
      %p77 = scmp.eq.s32.totalorder %s35, 1
      %p78 = por %p76, %p77
      %p79 = scmp.ne.s32.totalorder %s71, %s74
      %p80 = scmp.eq.s32.totalorder %s35, 0
      %p81 = por %p79, %p80
      %p82 = scmp.ne.s32.totalorder %s71, %s74
      %p83 = scmp.eq.s32.totalorder %s40, 1
      %p84 = por %p82, %p83
      %p85 = scmp.ne.s32.totalorder %s74, %s75
      %p86 = scmp.eq.s32.totalorder %s40, 0
      %p87 = por %p85, %p86
      %p88 = scmp.ne.s32.totalorder %s74, %s75
      %p89 = scmp.eq.s32.totalorder %s41, 1
      %p90 = por %p88, %p89
      %p92 = scmp.ne.s32.totalorder %s75, %s91
      %p93 = scmp.eq.s32.totalorder %s41, 0
      %p94 = por %p92, %p93
      %s95 = ssub.s32 %s35, %s42
      %p96 = scmp.eq.s32.totalorder %s95, 0
      %s98 = sadd.s32 %s97, 1
      %s99 = scalar_select %p96, %s97, %s98
      %p102 = pneg %p96
      %p103 = scmp.eq.s32.totalorder %s35, 1
      %p104 = por %p102, %p103
      %p105 = scmp.ne.s32.totalorder %s97, %s100
      %p106 = scmp.eq.s32.totalorder %s35, 0
      %p107 = por %p105, %p106
      %p108 = scmp.ne.s32.totalorder %s97, %s100
      %p109 = scmp.eq.s32.totalorder %s40, 1
      %p110 = por %p108, %p109
      %p111 = scmp.ne.s32.totalorder %s100, %s101
      %p112 = scmp.eq.s32.totalorder %s40, 0
      %p113 = por %p111, %p112
      %p114 = scmp.ne.s32.totalorder %s100, %s101
      %p115 = scmp.eq.s32.totalorder %s41, 1
      %p116 = por %p114, %p115
      %p118 = scmp.ne.s32.totalorder %s101, %s117
      %p119 = scmp.eq.s32.totalorder %s41, 0
      %p120 = por %p118, %p119
      %s122 = sadd.s32 %s121, 1
      %p125 = scmp.eq.s32.totalorder %s35, 1
      %p126 = scmp.ne.s32.totalorder %s121, %s123
      %p127 = scmp.eq.s32.totalorder %s35, 0
      %p128 = por %p126, %p127
      %p129 = scmp.ne.s32.totalorder %s121, %s123
      %p130 = scmp.eq.s32.totalorder %s40, 1
      %p131 = por %p129, %p130
      %p132 = scmp.ne.s32.totalorder %s123, %s124
      %p133 = scmp.eq.s32.totalorder %s40, 0
      %p134 = por %p132, %p133
      %p135 = scmp.ne.s32.totalorder %s123, %s124
      %p136 = scmp.eq.s32.totalorder %s41, 1
      %p137 = por %p135, %p136
      %p139 = scmp.ne.s32.totalorder %s124, %s138
      %p140 = scmp.eq.s32.totalorder %s41, 0
      %p141 = por %p139, %p140
      %s143 = sadd.s32 %s142, 1
      %p146 = scmp.eq.s32.totalorder %s35, 1
      %p147 = scmp.ne.s32.totalorder %s142, %s144
      %p148 = scmp.eq.s32.totalorder %s35, 0
      %p149 = por %p147, %p148
      %p150 = scmp.ne.s32.totalorder %s142, %s144
      %p151 = scmp.eq.s32.totalorder %s40, 1
      %p152 = por %p150, %p151
      %p153 = scmp.ne.s32.totalorder %s144, %s145
      %p154 = scmp.eq.s32.totalorder %s40, 0
      %p155 = por %p153, %p154
      %p156 = scmp.ne.s32.totalorder %s144, %s145
      %p157 = scmp.eq.s32.totalorder %s41, 1
      %p158 = por %p156, %p157
      %p160 = scmp.ne.s32.totalorder %s145, %s159
      %p161 = scmp.eq.s32.totalorder %s41, 0
      %p162 = por %p160, %p161
      %s164 = sadd.s32 %s163, 1
      %p167 = scmp.eq.s32.totalorder %s35, 1
      %p168 = scmp.ne.s32.totalorder %s163, %s165
      %p169 = scmp.eq.s32.totalorder %s35, 0
      %p170 = por %p168, %p169
      %p171 = scmp.ne.s32.totalorder %s163, %s165
      %p172 = scmp.eq.s32.totalorder %s40, 1
      %p173 = por %p171, %p172
      %p174 = scmp.ne.s32.totalorder %s165, %s166
      %p175 = scmp.eq.s32.totalorder %s40, 0
      %p176 = por %p174, %p175
      %p177 = scmp.ne.s32.totalorder %s165, %s166
      %p178 = scmp.eq.s32.totalorder %s41, 1
      %p179 = por %p177, %p178
      %p181 = scmp.ne.s32.totalorder %s166, %s180
      %p182 = scmp.eq.s32.totalorder %s41, 0
      %p183 = por %p181, %p182
      %s185 = sadd.s32 %s184, 1
      %p188 = scmp.eq.s32.totalorder %s35, 1
      %p189 = scmp.ne.s32.totalorder %s184, %s186
      %p190 = scmp.eq.s32.totalorder %s35, 0
      %p191 = por %p189, %p190
      %p192 = scmp.ne.s32.totalorder %s184, %s186
      %p193 = scmp.eq.s32.totalorder %s40, 1
      %p194 = por %p192, %p193
      %p195 = scmp.ne.s32.totalorder %s186, %s187
      %p196 = scmp.eq.s32.totalorder %s40, 0
      %p197 = por %p195, %p196
      %p198 = scmp.ne.s32.totalorder %s186, %s187
      %p199 = scmp.eq.s32.totalorder %s41, 1
      %p200 = por %p198, %p199
      %p202 = scmp.ne.s32.totalorder %s187, %s201
      %p203 = scmp.eq.s32.totalorder %s41, 0
      %p204 = por %p202, %p203
      %s206 = sadd.s32 %s205, 1
      %p209 = scmp.eq.s32.totalorder %s35, 1
      %p210 = scmp.ne.s32.totalorder %s205, %s207
      %p211 = scmp.eq.s32.totalorder %s35, 0
      %p212 = por %p210, %p211
      %p213 = scmp.ne.s32.totalorder %s205, %s207
      %p214 = scmp.eq.s32.totalorder %s40, 1
      %p215 = por %p213, %p214
      %p216 = scmp.ne.s32.totalorder %s207, %s208
      %p217 = scmp.eq.s32.totalorder %s40, 0
      %p218 = por %p216, %p217
      %p219 = scmp.ne.s32.totalorder %s207, %s208
      %p220 = scmp.eq.s32.totalorder %s41, 1
      %p221 = por %p219, %p220
      %p223 = scmp.ne.s32.totalorder %s208, %s222
      %p224 = scmp.eq.s32.totalorder %s41, 0
      %p225 = por %p223, %p224
      %s227 = sadd.s32 %s226, 1
      %p230 = scmp.eq.s32.totalorder %s35, 1
      %p231 = scmp.ne.s32.totalorder %s226, %s228
      %p232 = scmp.eq.s32.totalorder %s35, 0
      %p233 = por %p231, %p232
      %p234 = scmp.ne.s32.totalorder %s226, %s228
      %p235 = scmp.eq.s32.totalorder %s40, 1
      %p236 = por %p234, %p235
      %p237 = scmp.ne.s32.totalorder %s228, %s229
      %p238 = scmp.eq.s32.totalorder %s40, 0
      %p239 = por %p237, %p238
      %p240 = scmp.ne.s32.totalorder %s228, %s229
      %p241 = scmp.eq.s32.totalorder %s41, 1
      %p242 = por %p240, %p241
      %p244 = scmp.ne.s32.totalorder %s229, %s243
      %p245 = scmp.eq.s32.totalorder %s41, 0
      %p246 = por %p244, %p245
      %s248 = sadd.s32 %s247, 1
      %p251 = scmp.eq.s32.totalorder %s35, 1
      %p252 = scmp.ne.s32.totalorder %s247, %s249
      %p253 = scmp.eq.s32.totalorder %s35, 0
      %p254 = por %p252, %p253
      %p255 = scmp.ne.s32.totalorder %s247, %s249
      %p256 = scmp.eq.s32.totalorder %s40, 1
      %p257 = por %p255, %p256
      %p258 = scmp.ne.s32.totalorder %s249, %s250
      %p259 = scmp.eq.s32.totalorder %s40, 0
      %p260 = por %p258, %p259
      %p261 = scmp.ne.s32.totalorder %s249, %s250
      %p262 = scmp.eq.s32.totalorder %s41, 1
      %p263 = por %p261, %p262
      %p265 = scmp.ne.s32.totalorder %s250, %s264
      %p266 = scmp.eq.s32.totalorder %s41, 0
      %p267 = por %p265, %p266
      %s269 = sadd.s32 %s268, 1
      %p272 = scmp.eq.s32.totalorder %s35, 1
      %p273 = scmp.ne.s32.totalorder %s268, %s270
      %p274 = scmp.eq.s32.totalorder %s35, 0
      %p275 = por %p273, %p274
      %p276 = scmp.ne.s32.totalorder %s268, %s270
      %p277 = scmp.eq.s32.totalorder %s40, 1
      %p278 = por %p276, %p277
      %p279 = scmp.ne.s32.totalorder %s270, %s271
      %p280 = scmp.eq.s32.totalorder %s40, 0
      %p281 = por %p279, %p280
      %p282 = scmp.ne.s32.totalorder %s270, %s271
      %p283 = scmp.eq.s32.totalorder %s41, 1
      %p284 = por %p282, %p283
      %p286 = scmp.ne.s32.totalorder %s271, %s285
      %p287 = scmp.eq.s32.totalorder %s41, 0
      %p288 = por %p286, %p287
      %s290 = sadd.s32 %s289, 1
      %p293 = scmp.eq.s32.totalorder %s35, 1
      %p294 = scmp.ne.s32.totalorder %s289, %s291
      %p295 = scmp.eq.s32.totalorder %s35, 0
      %p296 = por %p294, %p295
      %p297 = scmp.ne.s32.totalorder %s289, %s291
      %p298 = scmp.eq.s32.totalorder %s40, 1
      %p299 = por %p297, %p298
      %p300 = scmp.ne.s32.totalorder %s291, %s292
      %p301 = scmp.eq.s32.totalorder %s40, 0
      %p302 = por %p300, %p301
      %p303 = scmp.ne.s32.totalorder %s291, %s292
      %p304 = scmp.eq.s32.totalorder %s41, 1
      %p305 = por %p303, %p304
      %p307 = scmp.ne.s32.totalorder %s292, %s306
      %p308 = scmp.eq.s32.totalorder %s41, 0
      %p309 = por %p307, %p308
      %s311 = sadd.s32 %s310, 1
      %p314 = scmp.eq.s32.totalorder %s35, 1
      %p315 = scmp.ne.s32.totalorder %s310, %s312
      %p316 = scmp.eq.s32.totalorder %s35, 0
      %p317 = por %p315, %p316
      %p318 = scmp.ne.s32.totalorder %s310, %s312
      %p319 = scmp.eq.s32.totalorder %s40, 1
      %p320 = por %p318, %p319
      %p321 = scmp.ne.s32.totalorder %s312, %s313
      %p322 = scmp.eq.s32.totalorder %s40, 0
      %p323 = por %p321, %p322
      %p324 = scmp.ne.s32.totalorder %s312, %s313
      %p325 = scmp.eq.s32.totalorder %s41, 1
      %p326 = por %p324, %p325
      %p328 = scmp.ne.s32.totalorder %s313, %s327
      %p329 = scmp.eq.s32.totalorder %s41, 0
      %p330 = por %p328, %p329
      %s332 = sadd.s32 %s331, 1
      %p335 = scmp.eq.s32.totalorder %s35, 1
      %p336 = scmp.ne.s32.totalorder %s331, %s333
      %p337 = scmp.eq.s32.totalorder %s35, 0
      %p338 = por %p336, %p337
      %p339 = scmp.ne.s32.totalorder %s331, %s333
      %p340 = scmp.eq.s32.totalorder %s40, 1
      %p341 = por %p339, %p340
      %p342 = scmp.ne.s32.totalorder %s333, %s334
      %p343 = scmp.eq.s32.totalorder %s40, 0
      %p344 = por %p342, %p343
      %p345 = scmp.ne.s32.totalorder %s333, %s334
      %p346 = scmp.eq.s32.totalorder %s41, 1
      %p347 = por %p345, %p346
      %p349 = scmp.ne.s32.totalorder %s334, %s348
      %p350 = scmp.eq.s32.totalorder %s41, 0
      %p351 = por %p349, %p350
      %s353 = sadd.s32 %s352, 1
      %p356 = scmp.eq.s32.totalorder %s35, 1
      %p357 = scmp.ne.s32.totalorder %s352, %s354
      %p358 = scmp.eq.s32.totalorder %s35, 0
      %p359 = por %p357, %p358
      %p360 = scmp.ne.s32.totalorder %s352, %s354
      %p361 = scmp.eq.s32.totalorder %s40, 1
      %p362 = por %p360, %p361
      %p363 = scmp.ne.s32.totalorder %s354, %s355
      %p364 = scmp.eq.s32.totalorder %s40, 0
      %p365 = por %p363, %p364
      %p366 = scmp.ne.s32.totalorder %s354, %s355
      %p367 = scmp.eq.s32.totalorder %s41, 1
      %p368 = por %p366, %p367
      %p370 = scmp.ne.s32.totalorder %s355, %s369
      %p371 = scmp.eq.s32.totalorder %s41, 0
      %p372 = por %p370, %p371
      %s374 = sadd.s32 %s373, 1
      %p377 = scmp.eq.s32.totalorder %s35, 1
      %p378 = scmp.ne.s32.totalorder %s373, %s375
      %p379 = scmp.eq.s32.totalorder %s35, 0
      %p380 = por %p378, %p379
      %p381 = scmp.ne.s32.totalorder %s373, %s375
      %p382 = scmp.eq.s32.totalorder %s40, 1
      %p383 = por %p381, %p382
      %p384 = scmp.ne.s32.totalorder %s375, %s376
      %p385 = scmp.eq.s32.totalorder %s40, 0
      %p386 = por %p384, %p385
      %p387 = scmp.ne.s32.totalorder %s375, %s376
      %p388 = scmp.eq.s32.totalorder %s41, 1
      %p389 = por %p387, %p388
      %p391 = scmp.ne.s32.totalorder %s376, %s390
      %p392 = scmp.eq.s32.totalorder %s41, 0
      %p393 = por %p391, %p392
      %s395 = sadd.s32 %s394, 1
      %p398 = scmp.eq.s32.totalorder %s35, 1
      %p399 = scmp.ne.s32.totalorder %s394, %s396
      %p400 = scmp.eq.s32.totalorder %s35, 0
      %p401 = por %p399, %p400
      %p402 = scmp.ne.s32.totalorder %s394, %s396
      %p403 = scmp.eq.s32.totalorder %s40, 1
      %p404 = por %p402, %p403
      %p405 = scmp.ne.s32.totalorder %s396, %s397
      %p406 = scmp.eq.s32.totalorder %s40, 0
      %p407 = por %p405, %p406
      %p408 = scmp.ne.s32.totalorder %s396, %s397
      %p409 = scmp.eq.s32.totalorder %s41, 1
      %p410 = por %p408, %p409
      %p412 = scmp.ne.s32.totalorder %s397, %s411
      %p413 = scmp.eq.s32.totalorder %s41, 0
      %p414 = por %p412, %p413
      %s415 = ssub.s32 %s35, %s42
      %p416 = scmp.eq.s32.totalorder %s415, 0
      %s418 = sadd.s32 %s417, 1
      %s419 = scalar_select %p416, %s417, %s418
      %p422 = pneg %p416
      %p423 = scmp.eq.s32.totalorder %s35, 1
      %p424 = por %p422, %p423
      %p425 = scmp.ne.s32.totalorder %s417, %s420
      %p426 = scmp.eq.s32.totalorder %s35, 0
      %p427 = por %p425, %p426
      %p428 = scmp.ne.s32.totalorder %s417, %s420
      %p429 = scmp.eq.s32.totalorder %s40, 1
      %p430 = por %p428, %p429
      %p431 = scmp.ne.s32.totalorder %s420, %s421
      %p432 = scmp.eq.s32.totalorder %s40, 0
      %p433 = por %p431, %p432
      %p434 = scmp.ne.s32.totalorder %s420, %s421
      %p435 = scmp.eq.s32.totalorder %s41, 1
      %p436 = por %p434, %p435
      %p438 = scmp.ne.s32.totalorder %s421, %s437
      %p439 = scmp.eq.s32.totalorder %s41, 0
      %p440 = por %p438, %p439
      %p441 = scmp.le.s32.totalorder 1, %s35
      %p442 = scmp.lt.s32.totalorder %s35, 3
      %p443 = pnand %p441, %p442
      %p444 = pneg %p443
      // Predicated region
      $region9: #{tpu_custom_call.1} parent=5 // pred_check
        _
      $region10: #{tpu_custom_call.1} parent=5 // pred_check_branch
        %446 = sbr.rel (%p443) target = $region12
      $region11: #{tpu_custom_call.1} parent=5 // pred_region
        %s447 = ssub.s32 %s35, 1
        // Predicated region
        $region13: #{tpu_custom_call.1} parent=11 // pred_check
          %p448 = pneg %p134
        $region14: #{tpu_custom_call.1} parent=11 // pred_check_branch
          %450 = sbr.rel (%p448) target = $region16
        $region15: #{tpu_custom_call.1} parent=11 // pred_region
          %s452 = ssub.s32 16, 16
          %453 = vsyncadd [#allocation9], %s452
          %s455 = sshll.u32 [#allocation8], 4
          %s456 = int_to_ptr.vmem [resolvable:$true] %s455
          %458 = dma.hbm_to_vmem [thread:$0]  %s3, 16, %s456, [#allocation9]
        $region16: #{tpu_custom_call.1} parent=11 // pred_fallthru
          _
        // Predicated region
        $region17: #{tpu_custom_call.1} parent=11 // pred_check
          %p459 = pneg %p155
        $region18: #{tpu_custom_call.1} parent=11 // pred_check_branch
          %461 = sbr.rel (%p459) target = $region20
        $region19: #{tpu_custom_call.1} parent=11 // pred_region
          %s463 = ssub.s32 16, 16
          %464 = vsyncadd [#allocation9], %s463
          %s466 = sshll.u32 [#allocation10], 4
          %s467 = int_to_ptr.vmem [resolvable:$true] %s466
          %469 = dma.hbm_to_vmem [thread:$0]  %s4, 16, %s467, [#allocation9]
        $region20: #{tpu_custom_call.1} parent=11 // pred_fallthru
          _
        // Predicated region
        $region21: #{tpu_custom_call.1} parent=11 // pred_check
          %p470 = pneg %p176
        $region22: #{tpu_custom_call.1} parent=11 // pred_check_branch
          %472 = sbr.rel (%p470) target = $region24
        $region23: #{tpu_custom_call.1} parent=11 // pred_region
          %s474 = ssub.s32 3072, 3072
          %475 = vsyncadd [#allocation12], %s474
          %s476 = sshll.u32 [#allocation11], 4
          %s477 = int_to_ptr.vmem [resolvable:$true] %s476
          %482 = dma.hbm_to_vmem [thread:$0]  %s5, 3072, %s477, [#allocation12], 192, 192, 12
        $region24: #{tpu_custom_call.1} parent=11 // pred_fallthru
          _
        // Predicated region
        $region25: #{tpu_custom_call.1} parent=11 // pred_check
          %p483 = pneg %p197
        $region26: #{tpu_custom_call.1} parent=11 // pred_check_branch
          %485 = sbr.rel (%p483) target = $region28
        $region27: #{tpu_custom_call.1} parent=11 // pred_region
          _
        $region28: #{tpu_custom_call.1} parent=11 // pred_fallthru
          _
        // Predicated region
        $region29: #{tpu_custom_call.1} parent=11 // pred_check
          %p486 = pneg %p218
        $region30: #{tpu_custom_call.1} parent=11 // pred_check_branch
          %488 = sbr.rel (%p486) target = $region32
        $region31: #{tpu_custom_call.1} parent=11 // pred_region
          %s490 = ssub.s32 1024, 1024
          %491 = vsyncadd [#allocation12], %s490
          %s492 = sshll.u32 [#allocation13], 4
          %s493 = int_to_ptr.vmem [resolvable:$true] %s492
          %498 = dma.hbm_to_vmem [thread:$0]  %s7, 1024, %s493, [#allocation12], 64, 64, 4
        $region32: #{tpu_custom_call.1} parent=11 // pred_fallthru
          _
        // Predicated region
        $region33: #{tpu_custom_call.1} parent=11 // pred_check
          %p499 = pneg %p239
        $region34: #{tpu_custom_call.1} parent=11 // pred_check_branch
          %501 = sbr.rel (%p499) target = $region36
        $region35: #{tpu_custom_call.1} parent=11 // pred_region
          _
        $region36: #{tpu_custom_call.1} parent=11 // pred_fallthru
          _
        // Predicated region
        $region37: #{tpu_custom_call.1} parent=11 // pred_check
          %p502 = pneg %p260
        $region38: #{tpu_custom_call.1} parent=11 // pred_check_branch
          %504 = sbr.rel (%p502) target = $region40
        $region39: #{tpu_custom_call.1} parent=11 // pred_region
          _
        $region40: #{tpu_custom_call.1} parent=11 // pred_fallthru
          _
        // Predicated region
        $region41: #{tpu_custom_call.1} parent=11 // pred_check
          %p505 = pneg %p281
        $region42: #{tpu_custom_call.1} parent=11 // pred_check_branch
          %507 = sbr.rel (%p505) target = $region44
        $region43: #{tpu_custom_call.1} parent=11 // pred_region
          _
        $region44: #{tpu_custom_call.1} parent=11 // pred_fallthru
          _
        // Predicated region
        $region45: #{tpu_custom_call.1} parent=11 // pred_check
          %p508 = pneg %p302
        $region46: #{tpu_custom_call.1} parent=11 // pred_check_branch
          %510 = sbr.rel (%p508) target = $region48
        $region47: #{tpu_custom_call.1} parent=11 // pred_region
          _
        $region48: #{tpu_custom_call.1} parent=11 // pred_fallthru
          _
        // Predicated region
        $region49: #{tpu_custom_call.1} parent=11 // pred_check
          %p511 = pneg %p323
        $region50: #{tpu_custom_call.1} parent=11 // pred_check_branch
          %513 = sbr.rel (%p511) target = $region52
        $region51: #{tpu_custom_call.1} parent=11 // pred_region
          %s515 = ssub.s32 4096, 4096
          %516 = vsyncadd [#allocation15], %s515
          %s517 = sshll.u32 [#allocation14], 4
          %s518 = int_to_ptr.vmem [resolvable:$true] %s517
          %523 = dma.hbm_to_vmem [thread:$0]  %s12, 4096, %s518, [#allocation15], 256, 256, 16
        $region52: #{tpu_custom_call.1} parent=11 // pred_fallthru
          _
        // Predicated region
        $region53: #{tpu_custom_call.1} parent=11 // pred_check
          %p524 = pneg %p344
        $region54: #{tpu_custom_call.1} parent=11 // pred_check_branch
          %526 = sbr.rel (%p524) target = $region56
        $region55: #{tpu_custom_call.1} parent=11 // pred_region
          _
        $region56: #{tpu_custom_call.1} parent=11 // pred_fallthru
          _
        // Predicated region
        $region57: #{tpu_custom_call.1} parent=11 // pred_check
          %p527 = pneg %p365
        $region58: #{tpu_custom_call.1} parent=11 // pred_check_branch
          %529 = sbr.rel (%p527) target = $region60
        $region59: #{tpu_custom_call.1} parent=11 // pred_region
          %s531 = ssub.s32 4096, 4096
          %532 = vsyncadd [#allocation15], %s531
          %s533 = sshll.u32 [#allocation16], 4
          %s534 = int_to_ptr.vmem [resolvable:$true] %s533
          %539 = dma.hbm_to_vmem [thread:$0]  %s14, 4096, %s534, [#allocation15], 64, 64, 4
        $region60: #{tpu_custom_call.1} parent=11 // pred_fallthru
          _
        // Predicated region
        $region61: #{tpu_custom_call.1} parent=11 // pred_check
          %p540 = pneg %p386
        $region62: #{tpu_custom_call.1} parent=11 // pred_check_branch
          %542 = sbr.rel (%p540) target = $region64
        $region63: #{tpu_custom_call.1} parent=11 // pred_region
          _
        $region64: #{tpu_custom_call.1} parent=11 // pred_fallthru
          _
        // Predicated region
        $region65: #{tpu_custom_call.1} parent=11 // pred_check
          %p543 = pneg %p407
        $region66: #{tpu_custom_call.1} parent=11 // pred_check_branch
          %545 = sbr.rel (%p543) target = $region68
        $region67: #{tpu_custom_call.1} parent=11 // pred_region
          _
        $region68: #{tpu_custom_call.1} parent=11 // pred_fallthru
          _
      $region12: #{tpu_custom_call.1} parent=5 // pred_fallthru
        _
      %p546 = scmp.lt.s32.totalorder %s35, 2
      // Predicated region
      $region69: #{tpu_custom_call.1} parent=5 // pred_check
        %p547 = pneg %p546
      $region70: #{tpu_custom_call.1} parent=5 // pred_check_branch
        %549 = sbr.rel (%p547) target = $region72
      $region71: #{tpu_custom_call.1} parent=5 // pred_region
        // Predicated region
        $region73: #{tpu_custom_call.1} parent=71 // pred_check
          %p550 = pneg %p55
        $region74: #{tpu_custom_call.1} parent=71 // pred_check_branch
          %552 = sbr.rel (%p550) target = $region76
        $region75: #{tpu_custom_call.1} parent=71 // pred_region
          %s553 = sand.u32 %s45, 1
          %s554 = scalar_lea.sflag [#allocation3], %s553
          %s555 = sand.u32 %s45, 1
          %s556 = smul.addr %s555, 32
          %s557 = scalar_lea.vmem [#allocation2], %s556
          %s558 = smul.u32 2, %s35
          %s560 = ssub.s32 512, 512
          %561 = vsyncadd %s554, %s560
          %s562 = smul.addr %s558, 2
          %s563 = smul.addr %s562, 128
          %s564 = scalar_lea.hbm %s0, %s563
          %s565 = sshll.u32 %s557, 4
          %s566 = int_to_ptr.vmem [resolvable:$true] %s565
          %571 = dma.hbm_to_vmem [thread:$0]  %s564, 512, %s566, %s554, 128, 128, 8
        $region76: #{tpu_custom_call.1} parent=71 // pred_fallthru
          _
        // Predicated region
        $region77: #{tpu_custom_call.1} parent=71 // pred_check
          %p572 = pneg %p81
        $region78: #{tpu_custom_call.1} parent=71 // pred_check_branch
          %574 = sbr.rel (%p572) target = $region80
        $region79: #{tpu_custom_call.1} parent=71 // pred_region
          %s575 = sand.u32 %s35, 1
          %s576 = scalar_lea.sflag [#allocation6], %s575
          %s577 = sand.u32 %s71, 1
          %s578 = smul.addr %s577, 2
          %s579 = scalar_lea.vmem [#allocation5], %s578
          %s580 = smul.u32 2, %s35
          %s582 = ssub.s32 32, 32
          %583 = vsyncadd %s576, %s582
          %s584 = smul.addr %s580, 16
          %s585 = scalar_lea.hbm %s1, %s584
          %s586 = sshll.u32 %s579, 4
          %s587 = int_to_ptr.vmem [resolvable:$true] %s586
          %592 = dma.hbm_to_vmem [thread:$0]  %s585, 32, %s587, %s576, 16, 16, 1
        $region80: #{tpu_custom_call.1} parent=71 // pred_fallthru
          _
        // Predicated region
        $region81: #{tpu_custom_call.1} parent=71 // pred_check
          %p593 = pneg %p107
        $region82: #{tpu_custom_call.1} parent=71 // pred_check_branch
          %595 = sbr.rel (%p593) target = $region84
        $region83: #{tpu_custom_call.1} parent=71 // pred_region
          %s596 = sand.u32 %s35, 1
          %s597 = scalar_lea.sflag [#allocation6], %s596
          %s598 = sand.u32 %s97, 1
          %s599 = smul.addr %s598, 2
          %s600 = scalar_lea.vmem [#allocation7], %s599
          %s601 = smul.u32 2, %s35
          %s603 = ssub.s32 32, 32
          %604 = vsyncadd %s597, %s603
          %s605 = smul.addr %s601, 16
          %s606 = scalar_lea.hbm %s2, %s605
          %s607 = sshll.u32 %s600, 4
          %s608 = int_to_ptr.vmem [resolvable:$true] %s607
          %613 = dma.hbm_to_vmem [thread:$0]  %s606, 32, %s608, %s597, 16, 16, 1
        $region84: #{tpu_custom_call.1} parent=71 // pred_fallthru
          _
      $region72: #{tpu_custom_call.1} parent=5 // pred_fallthru
        _
      %p614 = scmp.le.s32.totalorder 1, %s35
      %p615 = scmp.lt.s32.totalorder %s35, 3
      %p616 = pnand %p614, %p615
      %p617 = pneg %p616
      // Predicated region
      $region85: #{tpu_custom_call.1} parent=5 // pred_check
        _
      $region86: #{tpu_custom_call.1} parent=5 // pred_check_branch
        %619 = sbr.rel (%p616) target = $region88
      $region87: #{tpu_custom_call.1} parent=5 // pred_region
        %s620 = ssub.s32 %s35, 1
        %s621 = sand.u32 %s48, 1
        %s622 = scalar_lea.sflag [#allocation3], %s621
        %s623 = sand.u32 %s48, 1
        %s624 = smul.addr %s623, 32
        %s625 = scalar_lea.vmem [#allocation2], %s624
        // Predicated region
        $region89: #{tpu_custom_call.1} parent=87 // pred_check
          %p626 = pneg %p61
        $region90: #{tpu_custom_call.1} parent=87 // pred_check_branch
          %628 = sbr.rel (%p626) target = $region92
        $region91: #{tpu_custom_call.1} parent=87 // pred_region
          %629 = dma.done %s622, 512
        $region92: #{tpu_custom_call.1} parent=87 // pred_fallthru
          _
        %s630 = sand.u32 %s40, 1
        %s631 = scalar_lea.sflag [#allocation6], %s630
        %s632 = sand.u32 %s74, 1
        %s633 = smul.addr %s632, 2
        %s634 = scalar_lea.vmem [#allocation5], %s633
        // Predicated region
        $region93: #{tpu_custom_call.1} parent=87 // pred_check
          %p635 = pneg %p87
        $region94: #{tpu_custom_call.1} parent=87 // pred_check_branch
          %637 = sbr.rel (%p635) target = $region96
        $region95: #{tpu_custom_call.1} parent=87 // pred_region
          %638 = dma.done %s631, 32
        $region96: #{tpu_custom_call.1} parent=87 // pred_fallthru
          _
        %s639 = sand.u32 %s40, 1
        %s640 = scalar_lea.sflag [#allocation6], %s639
        %s641 = sand.u32 %s100, 1
        %s642 = smul.addr %s641, 2
        %s643 = scalar_lea.vmem [#allocation7], %s642
        // Predicated region
        $region97: #{tpu_custom_call.1} parent=87 // pred_check
          %p644 = pneg %p113
        $region98: #{tpu_custom_call.1} parent=87 // pred_check_branch
          %646 = sbr.rel (%p644) target = $region100
        $region99: #{tpu_custom_call.1} parent=87 // pred_region
          %647 = dma.done %s640, 32
        $region100: #{tpu_custom_call.1} parent=87 // pred_fallthru
          _
        // Predicated region
        $region101: #{tpu_custom_call.1} parent=87 // pred_check
          %p648 = pneg %p134
        $region102: #{tpu_custom_call.1} parent=87 // pred_check_branch
          %650 = sbr.rel (%p648) target = $region104
        $region103: #{tpu_custom_call.1} parent=87 // pred_region
          %651 = dma.done [#allocation9], 16
        $region104: #{tpu_custom_call.1} parent=87 // pred_fallthru
          _
        // Predicated region
        $region105: #{tpu_custom_call.1} parent=87 // pred_check
          %p652 = pneg %p155
        $region106: #{tpu_custom_call.1} parent=87 // pred_check_branch
          %654 = sbr.rel (%p652) target = $region108
        $region107: #{tpu_custom_call.1} parent=87 // pred_region
          %655 = dma.done [#allocation9], 16
        $region108: #{tpu_custom_call.1} parent=87 // pred_fallthru
          _
        // Predicated region
        $region109: #{tpu_custom_call.1} parent=87 // pred_check
          %p656 = pneg %p176
        $region110: #{tpu_custom_call.1} parent=87 // pred_check_branch
          %658 = sbr.rel (%p656) target = $region112
        $region111: #{tpu_custom_call.1} parent=87 // pred_region
          %659 = dma.done [#allocation12], 3072
        $region112: #{tpu_custom_call.1} parent=87 // pred_fallthru
          _
        // Predicated region
        $region113: #{tpu_custom_call.1} parent=87 // pred_check
          %p660 = pneg %p218
        $region114: #{tpu_custom_call.1} parent=87 // pred_check_branch
          %662 = sbr.rel (%p660) target = $region116
        $region115: #{tpu_custom_call.1} parent=87 // pred_region
          %663 = dma.done [#allocation12], 1024
        $region116: #{tpu_custom_call.1} parent=87 // pred_fallthru
          _
        // Predicated region
        $region117: #{tpu_custom_call.1} parent=87 // pred_check
          %p664 = pneg %p323
        $region118: #{tpu_custom_call.1} parent=87 // pred_check_branch
          %666 = sbr.rel (%p664) target = $region120
        $region119: #{tpu_custom_call.1} parent=87 // pred_region
          %667 = dma.done [#allocation15], 4096
        $region120: #{tpu_custom_call.1} parent=87 // pred_fallthru
          _
        // Predicated region
        $region121: #{tpu_custom_call.1} parent=87 // pred_check
          %p668 = pneg %p365
        $region122: #{tpu_custom_call.1} parent=87 // pred_check_branch
          %670 = sbr.rel (%p668) target = $region124
        $region123: #{tpu_custom_call.1} parent=87 // pred_region
          %671 = dma.done [#allocation15], 4096
        $region124: #{tpu_custom_call.1} parent=87 // pred_fallthru
          _
        %s672 = sand.u32 %s48, 1
        %s673 = scalar_lea.sflag [#allocation3], %s672
        %s674 = sand.u32 %s48, 1
        %s675 = smul.addr %s674, 32
        %s676 = scalar_lea.vmem [#allocation2], %s675
        %p677 = pneg %p61
        %p678 = pneg %p58
        %s679 = sand.u32 %s40, 1
        %s680 = scalar_lea.sflag [#allocation6], %s679
        %s681 = sand.u32 %s74, 1
        %s682 = smul.addr %s681, 2
        %s683 = scalar_lea.vmem [#allocation5], %s682
        %p684 = pneg %p87
        %p685 = pneg %p84
        %s686 = sand.u32 %s40, 1
        %s687 = scalar_lea.sflag [#allocation6], %s686
        %s688 = sand.u32 %s100, 1
        %s689 = smul.addr %s688, 2
        %s690 = scalar_lea.vmem [#allocation7], %s689
        %p691 = pneg %p113
        %p692 = pneg %p110
        %p693 = pneg %p134
        %p694 = pneg %p131
        %p695 = pneg %p155
        %p696 = pneg %p152
        %p697 = pneg %p176
        %p698 = pneg %p173
        %p699 = pneg %p197
        %p700 = pneg %p194
        %p701 = pneg %p218
        %p702 = pneg %p215
        %p703 = pneg %p239
        %p704 = pneg %p236
        %p705 = pneg %p260
        %p706 = pneg %p257
        %p707 = pneg %p281
        %p708 = pneg %p278
        %p709 = pneg %p302
        %p710 = pneg %p299
        %p711 = pneg %p323
        %p712 = pneg %p320
        %p713 = pneg %p344
        %p714 = pneg %p341
        %p715 = pneg %p365
        %p716 = pneg %p362
        %p717 = pneg %p386
        %p718 = pneg %p383
        %p719 = pneg %p407
        %p720 = pneg %p404
        %p721 = pneg %p433
        %p722 = pneg %p430
        %s723 = sand.u32 %s420, 1
        %s724 = scalar_lea.sflag [#allocation4], %s723
        %s725 = sand.u32 %s420, 1
        %s726 = smul.addr %s725, 32
        %s727 = scalar_lea.vmem [#allocation17], %s726
        %s728 = smul.u32 2, %s40
        %s729 = smul.u32 2, %s40
        %s730 = smul.u32 2, %s40
        %s731 = smul.u32 2, %s40
        %v733 = vld [vmem:[%s625] sm:$0xff]
        %v734 = vld [vmem:[%s625 + $0x8] sm:$0xff]
        %v735 = vld [vmem:[%s625 + $0x10] sm:$0xff]
        %v736 = vld [vmem:[%s625 + $0x18] sm:$0xff]
        %v737 = vld [vmem:[#allocation8] sm:$0x1]
        %v738 = vld [vmem:[#allocation10] sm:$0x1]
        %739 = vadd.xlane.f32.xlu0 %v733
        %v740 = vpop.xlane.xlu0 %739
        %741 = vadd.xlane.f32.xlu0 %v734
        %v742 = vpop.xlane.xlu0 %741
        %743 = vadd.xlane.f32.xlu0 %v735
        %v744 = vpop.xlane.xlu0 %743
        %745 = vadd.xlane.f32.xlu0 %v736
        %v746 = vpop.xlane.xlu0 %745
        %v747 = vrcp.pop 128.0
        %v748 = vmul.f32 %v740, %v747
        %v749 = vmul.f32 %v742, %v747
        %v750 = vmul.f32 %v744, %v747
        %v751 = vmul.f32 %v746, %v747
        %v752 = vsub.f32 %v733, %v748
        %v753 = vsub.f32 %v734, %v749
        %v754 = vsub.f32 %v735, %v750
        %v755 = vsub.f32 %v736, %v751
        %v756 = vmul.f32 %v752, %v752
        %v757 = vmul.f32 %v753, %v753
        %v758 = vmul.f32 %v754, %v754
        %v759 = vmul.f32 %v755, %v755
        %760 = vadd.xlane.f32.xlu0 %v756
        %v761 = vpop.xlane.xlu0 %760
        %762 = vadd.xlane.f32.xlu0 %v757
        %v763 = vpop.xlane.xlu0 %762
        %764 = vadd.xlane.f32.xlu0 %v758
        %v765 = vpop.xlane.xlu0 %764
        %766 = vadd.xlane.f32.xlu0 %v759
        %v767 = vpop.xlane.xlu0 %766
        %v768 = vmul.f32 %v761, %v747
        %v769 = vmul.f32 %v763, %v747
        %v770 = vmul.f32 %v765, %v747
        %v771 = vmul.f32 %v767, %v747
        %v772 = vadd.f32 %v768, 1e-06
        %v773 = vadd.f32 %v769, 1e-06
        %v774 = vadd.f32 %v770, 1e-06
        %v775 = vadd.f32 %v771, 1e-06
        %v776 = vrsqrt.pop %v772
        %v777 = vrsqrt.pop %v773
        %v778 = vrsqrt.pop %v774
        %v779 = vrsqrt.pop %v775
        %v780 = vmul.f32 %v752, %v776
        %v781 = vmul.f32 %v753, %v777
        %v782 = vmul.f32 %v754, %v778
        %v783 = vmul.f32 %v755, %v779
        %v785 = vlaneseq
        %v786 = vshrl.u32 %v785, 7
        %v787 = vsub.s32 0, %v786
        %v788 = vrot.slane %v737, %v787
        %v790 = vmul.f32 %v780, %v788
        %v791 = vmul.f32 %v781, %v788
        %v792 = vmul.f32 %v782, %v788
        %v793 = vmul.f32 %v783, %v788
        %v795 = vlaneseq
        %v796 = vshrl.u32 %v795, 7
        %v797 = vsub.s32 0, %v796
        %v798 = vrot.slane %v738, %v797
        %v800 = vadd.f32 %v790, %v798
        %v801 = vadd.f32 %v791, %v798
        %v802 = vadd.f32 %v792, %v798
        %v803 = vadd.f32 %v793, %v798
        %v804 = vpack.c.bf16 %v801, %v800
        %v805 = vpack.c.bf16 %v803, %v802
        %v806 = vld [vmem:[#allocation11] sm:$0xff]
        %v807 = vld [vmem:[#allocation11 + $0x8] sm:$0xf]
        %v808 = vld [vmem:[#allocation11 + $0xc] sm:$0xff]
        %v809 = vld [vmem:[#allocation11 + $0x14] sm:$0xf]
        %v810 = vld [vmem:[#allocation11 + $0x18] sm:$0xff]
        %v811 = vld [vmem:[#allocation11 + $0x20] sm:$0xf]
        %v812 = vld [vmem:[#allocation11 + $0x24] sm:$0xff]
        %v813 = vld [vmem:[#allocation11 + $0x2c] sm:$0xf]
        %v814 = vld [vmem:[#allocation11 + $0x30] sm:$0xff]
        %v815 = vld [vmem:[#allocation11 + $0x38] sm:$0xf]
        %v816 = vld [vmem:[#allocation11 + $0x3c] sm:$0xff]
        %v817 = vld [vmem:[#allocation11 + $0x44] sm:$0xf]
        %v818 = vld [vmem:[#allocation11 + $0x48] sm:$0xff]
        %v819 = vld [vmem:[#allocation11 + $0x50] sm:$0xf]
        %v820 = vld [vmem:[#allocation11 + $0x54] sm:$0xff]
        %v821 = vld [vmem:[#allocation11 + $0x5c] sm:$0xf]
        %v822 = vld [vmem:[#allocation11 + $0x60] sm:$0xff]
        %v823 = vld [vmem:[#allocation11 + $0x68] sm:$0xf]
        %v824 = vld [vmem:[#allocation11 + $0x6c] sm:$0xff]
        %v825 = vld [vmem:[#allocation11 + $0x74] sm:$0xf]
        %v826 = vld [vmem:[#allocation11 + $0x78] sm:$0xff]
        %v827 = vld [vmem:[#allocation11 + $0x80] sm:$0xf]
        %v828 = vld [vmem:[#allocation11 + $0x84] sm:$0xff]
        %v829 = vld [vmem:[#allocation11 + $0x8c] sm:$0xf]
        %v830 = vld [vmem:[#allocation11 + $0x90] sm:$0xff]
        %v831 = vld [vmem:[#allocation11 + $0x98] sm:$0xf]
        %v832 = vld [vmem:[#allocation11 + $0x9c] sm:$0xff]
        %v833 = vld [vmem:[#allocation11 + $0xa4] sm:$0xf]
        %v834 = vld [vmem:[#allocation11 + $0xa8] sm:$0xff]
        %v835 = vld [vmem:[#allocation11 + $0xb0] sm:$0xf]
        %v836 = vld [vmem:[#allocation11 + $0xb4] sm:$0xff]
        %v837 = vld [vmem:[#allocation11 + $0xbc] sm:$0xf]
        %v838 = vld [vmem:[%s6] sm:$0x7]
        %v840 = vlaneseq
        %v841 = vshrl.u32 %v840, 7
        %v842 = vsub.s32 0, %v841
        %v843 = vrot.slane %v838, %v842
        %v844 = vlaneseq
        %v845 = vshrl.u32 %v844, 7
        %v846 = vsub.s32 1, %v845
        %v847 = vrot.slane %v838, %v846
        %v848 = vlaneseq
        %v849 = vshrl.u32 %v848, 7
        %v850 = vsub.s32 2, %v849
        %v851 = vrot.slane %v838, %v850
        %v887 = vunpack.c.l.b16 %v806
        %v888 = vunpack.c.h.b16 %v806
        %v889 = vunpack.c.l.b16 %v807
        %v890 = vunpack.c.l.b16 %v808
        %v891 = vunpack.c.h.b16 %v808
        %v892 = vunpack.c.l.b16 %v809
        %v893 = vunpack.c.l.b16 %v810
        %v894 = vunpack.c.h.b16 %v810
        %v895 = vunpack.c.l.b16 %v811
        %v896 = vunpack.c.l.b16 %v812
        %v897 = vunpack.c.h.b16 %v812
        %v898 = vunpack.c.l.b16 %v813
        %v899 = vunpack.c.l.b16 %v814
        %v900 = vunpack.c.h.b16 %v814
        %v901 = vunpack.c.l.b16 %v815
        %v902 = vunpack.c.l.b16 %v816
        %v903 = vunpack.c.h.b16 %v816
        %v904 = vunpack.c.l.b16 %v817
        %v905 = vunpack.c.l.b16 %v818
        %v906 = vunpack.c.h.b16 %v818
        %v907 = vunpack.c.l.b16 %v819
        %v908 = vunpack.c.l.b16 %v820
        %v909 = vunpack.c.h.b16 %v820
        %v910 = vunpack.c.l.b16 %v821
        %v911 = vunpack.c.l.b16 %v822
        %v912 = vunpack.c.h.b16 %v822
        %v913 = vunpack.c.l.b16 %v823
        %v914 = vunpack.c.l.b16 %v824
        %v915 = vunpack.c.h.b16 %v824
        %v916 = vunpack.c.l.b16 %v825
        %v917 = vunpack.c.l.b16 %v826
        %v918 = vunpack.c.h.b16 %v826
        %v919 = vunpack.c.l.b16 %v827
        %v920 = vunpack.c.l.b16 %v828
        %v921 = vunpack.c.h.b16 %v828
        %v922 = vunpack.c.l.b16 %v829
        %v923 = vunpack.c.l.b16 %v830
        %v924 = vunpack.c.h.b16 %v830
        %v925 = vunpack.c.l.b16 %v831
        %v926 = vunpack.c.l.b16 %v832
        %v927 = vunpack.c.h.b16 %v832
        %v928 = vunpack.c.l.b16 %v833
        %v929 = vunpack.c.l.b16 %v834
        %v930 = vunpack.c.h.b16 %v834
        %v931 = vunpack.c.l.b16 %v835
        %v932 = vunpack.c.l.b16 %v836
        %v933 = vunpack.c.h.b16 %v836
        %v934 = vunpack.c.l.b16 %v837
        %v935 = vpack.c.b16 %v890, %v887
        %v936 = vpack.c.b16 %v891, %v888
        %v937 = vpack.c.b16 %v892, %v889
        %v938 = vpack.c.b16 %v896, %v893
        %v939 = vpack.c.b16 %v897, %v894
        %v940 = vpack.c.b16 %v898, %v895
        %v941 = vpack.c.b16 %v902, %v899
        %v942 = vpack.c.b16 %v903, %v900
        %v943 = vpack.c.b16 %v904, %v901
        %v944 = vpack.c.b16 %v908, %v905
        %v945 = vpack.c.b16 %v909, %v906
        %v946 = vpack.c.b16 %v910, %v907
        %v947 = vpack.c.b16 %v914, %v911
        %v948 = vpack.c.b16 %v915, %v912
        %v949 = vpack.c.b16 %v916, %v913
        %v950 = vpack.c.b16 %v920, %v917
        %v951 = vpack.c.b16 %v921, %v918
        %v952 = vpack.c.b16 %v922, %v919
        %v953 = vpack.c.b16 %v926, %v923
        %v954 = vpack.c.b16 %v927, %v924
        %v955 = vpack.c.b16 %v928, %v925
        %v956 = vpack.c.b16 %v932, %v929
        %v957 = vpack.c.b16 %v933, %v930
        %v958 = vpack.c.b16 %v934, %v931
        %983 = vmatprep.subr.bf16.mxu0 %v957
        %984 = vmatpush1.bf16.msra.mxu0 %v956
        %985 = vmatprep.subr.bf16.mxu0 %v954
        %986 = vmatpush1.bf16.msra.mxu0 %v953
        %987 = vmatprep.subr.bf16.mxu0 %v951
        %988 = vmatpush1.bf16.msra.mxu0 %v950
        %989 = vmatprep.subr.bf16.mxu0 %v948
        %990 = vmatpush1.bf16.msra.mxu0 %v947
        %991 = vmatprep.subr.bf16.mxu0 %v945
        %992 = vmatpush1.bf16.msra.mxu0 %v944
        %993 = vmatprep.subr.bf16.mxu0 %v942
        %994 = vmatpush1.bf16.msra.mxu0 %v941
        %995 = vmatprep.subr.bf16.mxu0 %v939
        %996 = vmatpush1.bf16.msra.mxu0 %v938
        %997 = vmatprep.subr.bf16.mxu0 %v936
        %998 = vmatpush1.bf16.msra.mxu0 %v935
        %999 = vmatprep.subr.bf16.mxu0 0
        %1000 = vmatpush2.bf16.msra.mxu0 0
        %1001 = vmatprep.subr.bf16.mxu0 0
        %1002 = vmatpush2.bf16.msra.mxu0 0
        %1003 = vmatprep.subr.bf16.mxu0 0
        %1004 = vmatpush2.bf16.msra.mxu0 0
        %1005 = vmatprep.subr.bf16.mxu0 0
        %1006 = vmatpush2.bf16.msra.mxu0 0
        %1007 = vmatprep.subr.bf16.mxu0 0
        %1008 = vmatpush2.bf16.msra.mxu0 0
        %1009 = vmatprep.subr.bf16.mxu0 0
        %1010 = vmatpush2.bf16.msra.mxu0 0
        %1011 = vmatprep.subr.bf16.mxu0 0
        %1012 = vmatpush2.bf16.msra.mxu0 0
        %1013 = vmatprep.subr.bf16.mxu0 0
        %1014 = vmatpush2.bf16.msra.mxu0 0
        %1015 = vmatprep.mubr.bf16.mxu0 0
        %1016 = vmatmul.mubr.bf16.gmra.mxu0 %v804
        %v1017 = vpop.f32.mrf.mxu0
        %v1018 = vadd.f32 %v843, %v1017
        %v1019 = vpop.f32.mrf.mxu0
        %v1020 = vadd.f32 %v847, %v1019
        %v1021 = vpop.f32.mrf.mxu0
        %v1022 = vadd.f32 %v843, %v1021
        %v1023 = vpop.f32.mrf.mxu0
        %v1024 = vadd.f32 %v847, %v1023
        %1025 = vmatprep.mubr.bf16.mxu0 0
        %1026 = vmatmul.mubr.bf16.gmra.mxu0 %v805
        %v1027 = vpop.f32.mrf.mxu0
        %v1028 = vadd.f32 %v843, %v1027
        %v1029 = vpop.f32.mrf.mxu0
        %v1030 = vadd.f32 %v847, %v1029
        %v1031 = vpop.f32.mrf.mxu0
        %v1032 = vadd.f32 %v843, %v1031
        %v1033 = vpop.f32.mrf.mxu0
        %v1034 = vadd.f32 %v847, %v1033
        %1035 = vdwg.mxu0
        %1036 = vmatprep.subr.bf16.mxu0 0
        %1037 = vmatpush1.bf16.msra.mxu0 %v958
        %1038 = vmatprep.subr.bf16.mxu0 0
        %1039 = vmatpush1.bf16.msra.mxu0 %v955
        %1040 = vmatprep.subr.bf16.mxu0 0
        %1041 = vmatpush1.bf16.msra.mxu0 %v952
        %1042 = vmatprep.subr.bf16.mxu0 0
        %1043 = vmatpush1.bf16.msra.mxu0 %v949
        %1044 = vmatprep.subr.bf16.mxu0 0
        %1045 = vmatpush1.bf16.msra.mxu0 %v946
        %1046 = vmatprep.subr.bf16.mxu0 0
        %1047 = vmatpush1.bf16.msra.mxu0 %v943
        %1048 = vmatprep.subr.bf16.mxu0 0
        %1049 = vmatpush1.bf16.msra.mxu0 %v940
        %1050 = vmatprep.subr.bf16.mxu0 0
        %1051 = vmatpush1.bf16.msra.mxu0 %v937
        %1052 = vmatprep.subr.bf16.mxu0 0
        %1053 = vmatpush2.bf16.msra.mxu0 0
        %1054 = vmatprep.subr.bf16.mxu0 0
        %1055 = vmatpush2.bf16.msra.mxu0 0
        %1056 = vmatprep.subr.bf16.mxu0 0
        %1057 = vmatpush2.bf16.msra.mxu0 0
        %1058 = vmatprep.subr.bf16.mxu0 0
        %1059 = vmatpush2.bf16.msra.mxu0 0
        %1060 = vmatprep.subr.bf16.mxu0 0
        %1061 = vmatpush2.bf16.msra.mxu0 0
        %1062 = vmatprep.subr.bf16.mxu0 0
        %1063 = vmatpush2.bf16.msra.mxu0 0
        %1064 = vmatprep.subr.bf16.mxu0 0
        %1065 = vmatpush2.bf16.msra.mxu0 0
        %1066 = vmatprep.subr.bf16.mxu0 0
        %1067 = vmatpush2.bf16.msra.mxu0 0
        %1068 = vmatprep.mubr.bf16.mxu0 0
        %1069 = vmatmul.mubr.bf16.gmra.mxu0 %v804
        %v1070 = vpop.f32.mrf.mxu0
        %v1071 = vadd.f32 %v851, %v1070
        %v1072 = vpop.f32.mrf.mxu0
        %v1073 = vpop.f32.mrf.mxu0
        %v1074 = vadd.f32 %v851, %v1073
        %v1075 = vpop.f32.mrf.mxu0
        %1076 = vmatprep.mubr.bf16.mxu0 0
        %1077 = vmatmul.mubr.bf16.gmra.mxu0 %v805
        %v1078 = vpop.f32.mrf.mxu0
        %v1079 = vadd.f32 %v851, %v1078
        %v1080 = vpop.f32.mrf.mxu0
        %v1081 = vpop.f32.mrf.mxu0
        %v1082 = vadd.f32 %v851, %v1081
        %v1083 = vpop.f32.mrf.mxu0
        %1084 = vdwg.mxu0
        %v1085 = vpack.c.bf16 %v1022, %v1018
        %v1086 = vpack.c.bf16 %v1024, %v1020
        %v1087 = vpack.c.bf16 %v1074, %v1071
        %v1088 = vpack.c.bf16 %v1032, %v1028
        %v1089 = vpack.c.bf16 %v1034, %v1030
        %v1090 = vpack.c.bf16 %v1082, %v1079
        %1091 = vxpose.xlu0.c.b16.start [1/8] %v1085, 128
        %1092 = vxpose.xlu0.c.b16.cont [2/8] 0, 128
        %1093 = vxpose.xlu0.c.b16.cont [3/8] 0, 128
        %1094 = vxpose.xlu0.c.b16.cont [4/8] 0, 128
        %1095 = vxpose.xlu0.c.b16.cont [5/8] 0, 128
        %1096 = vxpose.xlu0.c.b16.cont [6/8] 0, 128
        %1097 = vxpose.xlu0.c.b16.cont [7/8] 0, 128
        %1098 = vxpose.xlu0.c.b16.end [8/8] 0, 128
        %v1099 = vpop.trf.xlu0
        %v1100 = vpop.trf.xlu0
        %v1101 = vpop.trf.xlu0
        %v1102 = vpop.trf.xlu0
        %v1103 = vpop.trf.xlu0
        %v1104 = vpop.trf.xlu0
        %v1105 = vpop.trf.xlu0
        %v1106 = vpop.trf.xlu0
        %1107 = vxpose.xlu0.c.b16.start [1/8] %v1088, 128
        %1108 = vxpose.xlu0.c.b16.cont [2/8] 0, 128
        %1109 = vxpose.xlu0.c.b16.cont [3/8] 0, 128
        %1110 = vxpose.xlu0.c.b16.cont [4/8] 0, 128
        %1111 = vxpose.xlu0.c.b16.cont [5/8] 0, 128
        %1112 = vxpose.xlu0.c.b16.cont [6/8] 0, 128
        %1113 = vxpose.xlu0.c.b16.cont [7/8] 0, 128
        %1114 = vxpose.xlu0.c.b16.end [8/8] 0, 128
        %v1115 = vpop.trf.xlu0
        %v1116 = vpop.trf.xlu0
        %v1117 = vpop.trf.xlu0
        %v1118 = vpop.trf.xlu0
        %v1119 = vpop.trf.xlu0
        %v1120 = vpop.trf.xlu0
        %v1121 = vpop.trf.xlu0
        %v1122 = vpop.trf.xlu0
        %1123 = vxpose.xlu0.c.b16.start [1/8] %v1099, 128
        %1124 = vxpose.xlu0.c.b16.cont [2/8] %v1100, 128
        %1125 = vxpose.xlu0.c.b16.cont [3/8] 0, 128
        %1126 = vxpose.xlu0.c.b16.cont [4/8] 0, 128
        %1127 = vxpose.xlu0.c.b16.cont [5/8] 0, 128
        %1128 = vxpose.xlu0.c.b16.cont [6/8] 0, 128
        %1129 = vxpose.xlu0.c.b16.cont [7/8] 0, 128
        %1130 = vxpose.xlu0.c.b16.end [8/8] 0, 128
        %v1131 = vpop.trf.xlu0
        %v1132 = vpop.trf.xlu0
        %v1133 = vpop.trf.xlu0
        %v1134 = vpop.trf.xlu0
        %v1135 = vpop.trf.xlu0
        %v1136 = vpop.trf.xlu0
        %v1137 = vpop.trf.xlu0
        %v1138 = vpop.trf.xlu0
        %1139 = vxpose.xlu0.c.b16.start [1/8] %v1101, 128
        %1140 = vxpose.xlu0.c.b16.cont [2/8] %v1102, 128
        %1141 = vxpose.xlu0.c.b16.cont [3/8] 0, 128
        %1142 = vxpose.xlu0.c.b16.cont [4/8] 0, 128
        %1143 = vxpose.xlu0.c.b16.cont [5/8] 0, 128
        %1144 = vxpose.xlu0.c.b16.cont [6/8] 0, 128
        %1145 = vxpose.xlu0.c.b16.cont [7/8] 0, 128
        %1146 = vxpose.xlu0.c.b16.end [8/8] 0, 128
        %v1147 = vpop.trf.xlu0
        %v1148 = vpop.trf.xlu0
        %v1149 = vpop.trf.xlu0
        %v1150 = vpop.trf.xlu0
        %v1151 = vpop.trf.xlu0
        %v1152 = vpop.trf.xlu0
        %v1153 = vpop.trf.xlu0
        %v1154 = vpop.trf.xlu0
        %1155 = vxpose.xlu0.c.b16.start [1/8] %v1103, 128
        %1156 = vxpose.xlu0.c.b16.cont [2/8] %v1104, 128
        %1157 = vxpose.xlu0.c.b16.cont [3/8] 0, 128
        %1158 = vxpose.xlu0.c.b16.cont [4/8] 0, 128
        %1159 = vxpose.xlu0.c.b16.cont [5/8] 0, 128
        %1160 = vxpose.xlu0.c.b16.cont [6/8] 0, 128
        %1161 = vxpose.xlu0.c.b16.cont [7/8] 0, 128
        %1162 = vxpose.xlu0.c.b16.end [8/8] 0, 128
        %v1163 = vpop.trf.xlu0
        %v1164 = vpop.trf.xlu0
        %v1165 = vpop.trf.xlu0
        %v1166 = vpop.trf.xlu0
        %v1167 = vpop.trf.xlu0
        %v1168 = vpop.trf.xlu0
        %v1169 = vpop.trf.xlu0
        %v1170 = vpop.trf.xlu0
        %1171 = vxpose.xlu0.c.b16.start [1/8] %v1105, 128
        %1172 = vxpose.xlu0.c.b16.cont [2/8] %v1106, 128
        %1173 = vxpose.xlu0.c.b16.cont [3/8] 0, 128
        %1174 = vxpose.xlu0.c.b16.cont [4/8] 0, 128
        %1175 = vxpose.xlu0.c.b16.cont [5/8] 0, 128
        %1176 = vxpose.xlu0.c.b16.cont [6/8] 0, 128
        %1177 = vxpose.xlu0.c.b16.cont [7/8] 0, 128
        %1178 = vxpose.xlu0.c.b16.end [8/8] 0, 128
        %v1179 = vpop.trf.xlu0
        %v1180 = vpop.trf.xlu0
        %v1181 = vpop.trf.xlu0
        %v1182 = vpop.trf.xlu0
        %v1183 = vpop.trf.xlu0
        %v1184 = vpop.trf.xlu0
        %v1185 = vpop.trf.xlu0
        %v1186 = vpop.trf.xlu0
        %1187 = vxpose.xlu0.c.b16.start [1/8] %v1115, 128
        %1188 = vxpose.xlu0.c.b16.cont [2/8] %v1116, 128
        %1189 = vxpose.xlu0.c.b16.cont [3/8] 0, 128
        %1190 = vxpose.xlu0.c.b16.cont [4/8] 0, 128
        %1191 = vxpose.xlu0.c.b16.cont [5/8] 0, 128
        %1192 = vxpose.xlu0.c.b16.cont [6/8] 0, 128
        %1193 = vxpose.xlu0.c.b16.cont [7/8] 0, 128
        %1194 = vxpose.xlu0.c.b16.end [8/8] 0, 128
        %v1195 = vpop.trf.xlu0
        %v1196 = vpop.trf.xlu0
        %v1197 = vpop.trf.xlu0
        %v1198 = vpop.trf.xlu0
        %v1199 = vpop.trf.xlu0
        %v1200 = vpop.trf.xlu0
        %v1201 = vpop.trf.xlu0
        %v1202 = vpop.trf.xlu0
        %1203 = vxpose.xlu0.c.b16.start [1/8] %v1117, 128
        %1204 = vxpose.xlu0.c.b16.cont [2/8] %v1118, 128
        %1205 = vxpose.xlu0.c.b16.cont [3/8] 0, 128
        %1206 = vxpose.xlu0.c.b16.cont [4/8] 0, 128
        %1207 = vxpose.xlu0.c.b16.cont [5/8] 0, 128
        %1208 = vxpose.xlu0.c.b16.cont [6/8] 0, 128
        %1209 = vxpose.xlu0.c.b16.cont [7/8] 0, 128
        %1210 = vxpose.xlu0.c.b16.end [8/8] 0, 128
        %v1211 = vpop.trf.xlu0
        %v1212 = vpop.trf.xlu0
        %v1213 = vpop.trf.xlu0
        %v1214 = vpop.trf.xlu0
        %v1215 = vpop.trf.xlu0
        %v1216 = vpop.trf.xlu0
        %v1217 = vpop.trf.xlu0
        %v1218 = vpop.trf.xlu0
        %1219 = vxpose.xlu0.c.b16.start [1/8] %v1119, 128
        %1220 = vxpose.xlu0.c.b16.cont [2/8] %v1120, 128
        %1221 = vxpose.xlu0.c.b16.cont [3/8] 0, 128
        %1222 = vxpose.xlu0.c.b16.cont [4/8] 0, 128
        %1223 = vxpose.xlu0.c.b16.cont [5/8] 0, 128
        %1224 = vxpose.xlu0.c.b16.cont [6/8] 0, 128
        %1225 = vxpose.xlu0.c.b16.cont [7/8] 0, 128
        %1226 = vxpose.xlu0.c.b16.end [8/8] 0, 128
        %v1227 = vpop.trf.xlu0
        %v1228 = vpop.trf.xlu0
        %v1229 = vpop.trf.xlu0
        %v1230 = vpop.trf.xlu0
        %v1231 = vpop.trf.xlu0
        %v1232 = vpop.trf.xlu0
        %v1233 = vpop.trf.xlu0
        %v1234 = vpop.trf.xlu0
        %1235 = vxpose.xlu0.c.b16.start [1/8] %v1121, 128
        %1236 = vxpose.xlu0.c.b16.cont [2/8] %v1122, 128
        %1237 = vxpose.xlu0.c.b16.cont [3/8] 0, 128
        %1238 = vxpose.xlu0.c.b16.cont [4/8] 0, 128
        %1239 = vxpose.xlu0.c.b16.cont [5/8] 0, 128
        %1240 = vxpose.xlu0.c.b16.cont [6/8] 0, 128
        %1241 = vxpose.xlu0.c.b16.cont [7/8] 0, 128
        %1242 = vxpose.xlu0.c.b16.end [8/8] 0, 128
        %v1243 = vpop.trf.xlu0
        %v1244 = vpop.trf.xlu0
        %v1245 = vpop.trf.xlu0
        %v1246 = vpop.trf.xlu0
        %v1247 = vpop.trf.xlu0
        %v1248 = vpop.trf.xlu0
        %v1249 = vpop.trf.xlu0
        %v1250 = vpop.trf.xlu0
        %1251 = vxpose.xlu0.c.b16.start [1/8] %v1086, 128
        %1252 = vxpose.xlu0.c.b16.cont [2/8] 0, 128
        %1253 = vxpose.xlu0.c.b16.cont [3/8] 0, 128
        %1254 = vxpose.xlu0.c.b16.cont [4/8] 0, 128
        %1255 = vxpose.xlu0.c.b16.cont [5/8] 0, 128
        %1256 = vxpose.xlu0.c.b16.cont [6/8] 0, 128
        %1257 = vxpose.xlu0.c.b16.cont [7/8] 0, 128
        %1258 = vxpose.xlu0.c.b16.end [8/8] 0, 128
        %v1259 = vpop.trf.xlu0
        %v1260 = vpop.trf.xlu0
        %v1261 = vpop.trf.xlu0
        %v1262 = vpop.trf.xlu0
        %v1263 = vpop.trf.xlu0
        %v1264 = vpop.trf.xlu0
        %v1265 = vpop.trf.xlu0
        %v1266 = vpop.trf.xlu0
        %1267 = vxpose.xlu0.c.b16.start [1/8] %v1089, 128
        %1268 = vxpose.xlu0.c.b16.cont [2/8] 0, 128
        %1269 = vxpose.xlu0.c.b16.cont [3/8] 0, 128
        %1270 = vxpose.xlu0.c.b16.cont [4/8] 0, 128
        %1271 = vxpose.xlu0.c.b16.cont [5/8] 0, 128
        %1272 = vxpose.xlu0.c.b16.cont [6/8] 0, 128
        %1273 = vxpose.xlu0.c.b16.cont [7/8] 0, 128
        %1274 = vxpose.xlu0.c.b16.end [8/8] 0, 128
        %v1275 = vpop.trf.xlu0
        %v1276 = vpop.trf.xlu0
        %v1277 = vpop.trf.xlu0
        %v1278 = vpop.trf.xlu0
        %v1279 = vpop.trf.xlu0
        %v1280 = vpop.trf.xlu0
        %v1281 = vpop.trf.xlu0
        %v1282 = vpop.trf.xlu0
        %1283 = vxpose.xlu0.c.b16.start [1/8] %v1087, 128
        %1284 = vxpose.xlu0.c.b16.cont [2/8] 0, 128
        %1285 = vxpose.xlu0.c.b16.cont [3/8] 0, 128
        %1286 = vxpose.xlu0.c.b16.cont [4/8] 0, 128
        %1287 = vxpose.xlu0.c.b16.cont [5/8] 0, 128
        %1288 = vxpose.xlu0.c.b16.cont [6/8] 0, 128
        %1289 = vxpose.xlu0.c.b16.cont [7/8] 0, 128
        %1290 = vxpose.xlu0.c.b16.end [8/8] 0, 128
        %v1291 = vpop.trf.xlu0
        %v1292 = vpop.trf.xlu0
        %v1293 = vpop.trf.xlu0
        %v1294 = vpop.trf.xlu0
        %v1295 = vpop.trf.xlu0
        %v1296 = vpop.trf.xlu0
        %v1297 = vpop.trf.xlu0
        %v1298 = vpop.trf.xlu0
        %1299 = vxpose.xlu0.c.b16.start [1/8] %v1090, 128
        %1300 = vxpose.xlu0.c.b16.cont [2/8] 0, 128
        %1301 = vxpose.xlu0.c.b16.cont [3/8] 0, 128
        %1302 = vxpose.xlu0.c.b16.cont [4/8] 0, 128
        %1303 = vxpose.xlu0.c.b16.cont [5/8] 0, 128
        %1304 = vxpose.xlu0.c.b16.cont [6/8] 0, 128
        %1305 = vxpose.xlu0.c.b16.cont [7/8] 0, 128
        %1306 = vxpose.xlu0.c.b16.end [8/8] 0, 128
        %v1307 = vpop.trf.xlu0
        %v1308 = vpop.trf.xlu0
        %v1309 = vpop.trf.xlu0
        %v1310 = vpop.trf.xlu0
        %v1311 = vpop.trf.xlu0
        %v1312 = vpop.trf.xlu0
        %v1313 = vpop.trf.xlu0
        %v1314 = vpop.trf.xlu0
        %vm1315 = vcmask 261120
        %v1317 = vsel %vm1315, %v1131, 0
        %1319 = vmatprep.subr.bf16.mxu0 0
        %1320 = vmatpush1.bf16.msra.mxu0 0
        %1321 = vmatprep.subr.bf16.mxu0 0
        %1322 = vmatpush1.bf16.msra.mxu0 0
        %1323 = vmatprep.subr.bf16.mxu0 0
        %1324 = vmatpush1.bf16.msra.mxu0 0
        %1325 = vmatprep.subr.bf16.mxu0 0
        %1326 = vmatpush1.bf16.msra.mxu0 0
        %1327 = vmatprep.subr.bf16.mxu0 0
        %1328 = vmatpush1.bf16.msra.mxu0 0
        %1329 = vmatprep.subr.bf16.mxu0 0
        %1330 = vmatpush1.bf16.msra.mxu0 0
        %1331 = vmatprep.subr.bf16.mxu0 0
        %1332 = vmatpush1.bf16.msra.mxu0 %v1260
        %1333 = vmatprep.subr.bf16.mxu0 0
        %1334 = vmatpush1.bf16.msra.mxu0 %v1259
        %1335 = vmatprep.subr.bf16.mxu0 0
        %1336 = vmatpush2.bf16.msra.mxu0 0
        %1337 = vmatprep.subr.bf16.mxu0 0
        %1338 = vmatpush2.bf16.msra.mxu0 0
        %1339 = vmatprep.subr.bf16.mxu0 0
        %1340 = vmatpush2.bf16.msra.mxu0 0
        %1341 = vmatprep.subr.bf16.mxu0 0
        %1342 = vmatpush2.bf16.msra.mxu0 0
        %1343 = vmatprep.subr.bf16.mxu0 0
        %1344 = vmatpush2.bf16.msra.mxu0 0
        %1345 = vmatprep.subr.bf16.mxu0 0
        %1346 = vmatpush2.bf16.msra.mxu0 0
        %1347 = vmatprep.subr.bf16.mxu0 0
        %1348 = vmatpush2.bf16.msra.mxu0 0
        %1349 = vmatprep.subr.bf16.mxu0 0
        %1350 = vmatpush2.bf16.msra.mxu0 0
        %1351 = vmatprep.mubr.bf16.mxu0 0
        %1352 = vmatmul.mubr.bf16.gmra.mxu0 %v1317
        %v1353 = vpop.f32.mrf.mxu0
        %v1354 = vadd.f32 0.0, %v1353
        %v1355 = vpop.f32.mrf.mxu0
        %v1356 = vpop.f32.mrf.mxu0
        %v1357 = vadd.f32 0.0, %v1356
        %v1358 = vpop.f32.mrf.mxu0
        %1359 = vdwg.mxu0
        %v1361 = vsel %vm1315, %v1147, 0
        %1363 = vmatprep.subr.bf16.mxu0 0
        %1364 = vmatpush1.bf16.msra.mxu0 0
        %1365 = vmatprep.subr.bf16.mxu0 0
        %1366 = vmatpush1.bf16.msra.mxu0 0
        %1367 = vmatprep.subr.bf16.mxu0 0
        %1368 = vmatpush1.bf16.msra.mxu0 0
        %1369 = vmatprep.subr.bf16.mxu0 0
        %1370 = vmatpush1.bf16.msra.mxu0 0
        %1371 = vmatprep.subr.bf16.mxu0 0
        %1372 = vmatpush1.bf16.msra.mxu0 0
        %1373 = vmatprep.subr.bf16.mxu0 0
        %1374 = vmatpush1.bf16.msra.mxu0 0
        %1375 = vmatprep.subr.bf16.mxu0 0
        %1376 = vmatpush1.bf16.msra.mxu0 %v1262
        %1377 = vmatprep.subr.bf16.mxu0 0
        %1378 = vmatpush1.bf16.msra.mxu0 %v1261
        %1379 = vmatprep.subr.bf16.mxu0 0
        %1380 = vmatpush2.bf16.msra.mxu0 0
        %1381 = vmatprep.subr.bf16.mxu0 0
        %1382 = vmatpush2.bf16.msra.mxu0 0
        %1383 = vmatprep.subr.bf16.mxu0 0
        %1384 = vmatpush2.bf16.msra.mxu0 0
        %1385 = vmatprep.subr.bf16.mxu0 0
        %1386 = vmatpush2.bf16.msra.mxu0 0
        %1387 = vmatprep.subr.bf16.mxu0 0
        %1388 = vmatpush2.bf16.msra.mxu0 0
        %1389 = vmatprep.subr.bf16.mxu0 0
        %1390 = vmatpush2.bf16.msra.mxu0 0
        %1391 = vmatprep.subr.bf16.mxu0 0
        %1392 = vmatpush2.bf16.msra.mxu0 0
        %1393 = vmatprep.subr.bf16.mxu0 0
        %1394 = vmatpush2.bf16.msra.mxu0 0
        %1395 = vmatprep.mubr.bf16.mxu0 0
        %1396 = vmatmul.mubr.bf16.gmra.mxu0 %v1361
        %v1397 = vpop.f32.mrf.mxu0
        %v1398 = vadd.f32 0.0, %v1397
        %v1399 = vpop.f32.mrf.mxu0
        %v1400 = vpop.f32.mrf.mxu0
        %v1401 = vadd.f32 0.0, %v1400
        %v1402 = vpop.f32.mrf.mxu0
        %1403 = vdwg.mxu0
        %v1405 = vsel %vm1315, %v1163, 0
        %1407 = vmatprep.subr.bf16.mxu0 0
        %1408 = vmatpush1.bf16.msra.mxu0 0
        %1409 = vmatprep.subr.bf16.mxu0 0
        %1410 = vmatpush1.bf16.msra.mxu0 0
        %1411 = vmatprep.subr.bf16.mxu0 0
        %1412 = vmatpush1.bf16.msra.mxu0 0
        %1413 = vmatprep.subr.bf16.mxu0 0
        %1414 = vmatpush1.bf16.msra.mxu0 0
        %1415 = vmatprep.subr.bf16.mxu0 0
        %1416 = vmatpush1.bf16.msra.mxu0 0
        %1417 = vmatprep.subr.bf16.mxu0 0
        %1418 = vmatpush1.bf16.msra.mxu0 0
        %1419 = vmatprep.subr.bf16.mxu0 0
        %1420 = vmatpush1.bf16.msra.mxu0 %v1264
        %1421 = vmatprep.subr.bf16.mxu0 0
        %1422 = vmatpush1.bf16.msra.mxu0 %v1263
        %1423 = vmatprep.subr.bf16.mxu0 0
        %1424 = vmatpush2.bf16.msra.mxu0 0
        %1425 = vmatprep.subr.bf16.mxu0 0
        %1426 = vmatpush2.bf16.msra.mxu0 0
        %1427 = vmatprep.subr.bf16.mxu0 0
        %1428 = vmatpush2.bf16.msra.mxu0 0
        %1429 = vmatprep.subr.bf16.mxu0 0
        %1430 = vmatpush2.bf16.msra.mxu0 0
        %1431 = vmatprep.subr.bf16.mxu0 0
        %1432 = vmatpush2.bf16.msra.mxu0 0
        %1433 = vmatprep.subr.bf16.mxu0 0
        %1434 = vmatpush2.bf16.msra.mxu0 0
        %1435 = vmatprep.subr.bf16.mxu0 0
        %1436 = vmatpush2.bf16.msra.mxu0 0
        %1437 = vmatprep.subr.bf16.mxu0 0
        %1438 = vmatpush2.bf16.msra.mxu0 0
        %1439 = vmatprep.mubr.bf16.mxu0 0
        %1440 = vmatmul.mubr.bf16.gmra.mxu0 %v1405
        %v1441 = vpop.f32.mrf.mxu0
        %v1442 = vadd.f32 0.0, %v1441
        %v1443 = vpop.f32.mrf.mxu0
        %v1444 = vpop.f32.mrf.mxu0
        %v1445 = vadd.f32 0.0, %v1444
        %v1446 = vpop.f32.mrf.mxu0
        %1447 = vdwg.mxu0
        %v1449 = vsel %vm1315, %v1179, 0
        %1451 = vmatprep.subr.bf16.mxu0 0
        %1452 = vmatpush1.bf16.msra.mxu0 0
        %1453 = vmatprep.subr.bf16.mxu0 0
        %1454 = vmatpush1.bf16.msra.mxu0 0
        %1455 = vmatprep.subr.bf16.mxu0 0
        %1456 = vmatpush1.bf16.msra.mxu0 0
        %1457 = vmatprep.subr.bf16.mxu0 0
        %1458 = vmatpush1.bf16.msra.mxu0 0
        %1459 = vmatprep.subr.bf16.mxu0 0
        %1460 = vmatpush1.bf16.msra.mxu0 0
        %1461 = vmatprep.subr.bf16.mxu0 0
        %1462 = vmatpush1.bf16.msra.mxu0 0
        %1463 = vmatprep.subr.bf16.mxu0 0
        %1464 = vmatpush1.bf16.msra.mxu0 %v1266
        %1465 = vmatprep.subr.bf16.mxu0 0
        %1466 = vmatpush1.bf16.msra.mxu0 %v1265
        %1467 = vmatprep.subr.bf16.mxu0 0
        %1468 = vmatpush2.bf16.msra.mxu0 0
        %1469 = vmatprep.subr.bf16.mxu0 0
        %1470 = vmatpush2.bf16.msra.mxu0 0
        %1471 = vmatprep.subr.bf16.mxu0 0
        %1472 = vmatpush2.bf16.msra.mxu0 0
        %1473 = vmatprep.subr.bf16.mxu0 0
        %1474 = vmatpush2.bf16.msra.mxu0 0
        %1475 = vmatprep.subr.bf16.mxu0 0
        %1476 = vmatpush2.bf16.msra.mxu0 0
        %1477 = vmatprep.subr.bf16.mxu0 0
        %1478 = vmatpush2.bf16.msra.mxu0 0
        %1479 = vmatprep.subr.bf16.mxu0 0
        %1480 = vmatpush2.bf16.msra.mxu0 0
        %1481 = vmatprep.subr.bf16.mxu0 0
        %1482 = vmatpush2.bf16.msra.mxu0 0
        %1483 = vmatprep.mubr.bf16.mxu0 0
        %1484 = vmatmul.mubr.bf16.gmra.mxu0 %v1449
        %v1485 = vpop.f32.mrf.mxu0
        %v1486 = vadd.f32 0.0, %v1485
        %v1487 = vpop.f32.mrf.mxu0
        %v1488 = vpop.f32.mrf.mxu0
        %v1489 = vadd.f32 0.0, %v1488
        %v1490 = vpop.f32.mrf.mxu0
        %1491 = vdwg.mxu0
        %v1493 = vsel %vm1315, %v1195, 0
        %1495 = vmatprep.subr.bf16.mxu0 0
        %1496 = vmatpush1.bf16.msra.mxu0 0
        %1497 = vmatprep.subr.bf16.mxu0 0
        %1498 = vmatpush1.bf16.msra.mxu0 0
        %1499 = vmatprep.subr.bf16.mxu0 0
        %1500 = vmatpush1.bf16.msra.mxu0 0
        %1501 = vmatprep.subr.bf16.mxu0 0
        %1502 = vmatpush1.bf16.msra.mxu0 0
        %1503 = vmatprep.subr.bf16.mxu0 0
        %1504 = vmatpush1.bf16.msra.mxu0 0
        %1505 = vmatprep.subr.bf16.mxu0 0
        %1506 = vmatpush1.bf16.msra.mxu0 0
        %1507 = vmatprep.subr.bf16.mxu0 0
        %1508 = vmatpush1.bf16.msra.mxu0 %v1276
        %1509 = vmatprep.subr.bf16.mxu0 0
        %1510 = vmatpush1.bf16.msra.mxu0 %v1275
        %1511 = vmatprep.subr.bf16.mxu0 0
        %1512 = vmatpush2.bf16.msra.mxu0 0
        %1513 = vmatprep.subr.bf16.mxu0 0
        %1514 = vmatpush2.bf16.msra.mxu0 0
        %1515 = vmatprep.subr.bf16.mxu0 0
        %1516 = vmatpush2.bf16.msra.mxu0 0
        %1517 = vmatprep.subr.bf16.mxu0 0
        %1518 = vmatpush2.bf16.msra.mxu0 0
        %1519 = vmatprep.subr.bf16.mxu0 0
        %1520 = vmatpush2.bf16.msra.mxu0 0
        %1521 = vmatprep.subr.bf16.mxu0 0
        %1522 = vmatpush2.bf16.msra.mxu0 0
        %1523 = vmatprep.subr.bf16.mxu0 0
        %1524 = vmatpush2.bf16.msra.mxu0 0
        %1525 = vmatprep.subr.bf16.mxu0 0
        %1526 = vmatpush2.bf16.msra.mxu0 0
        %1527 = vmatprep.mubr.bf16.mxu0 0
        %1528 = vmatmul.mubr.bf16.gmra.mxu0 %v1493
        %v1529 = vpop.f32.mrf.mxu0
        %v1530 = vadd.f32 0.0, %v1529
        %v1531 = vpop.f32.mrf.mxu0
        %v1532 = vpop.f32.mrf.mxu0
        %v1533 = vadd.f32 0.0, %v1532
        %v1534 = vpop.f32.mrf.mxu0
        %1535 = vdwg.mxu0
        %v1537 = vsel %vm1315, %v1211, 0
        %1539 = vmatprep.subr.bf16.mxu0 0
        %1540 = vmatpush1.bf16.msra.mxu0 0
        %1541 = vmatprep.subr.bf16.mxu0 0
        %1542 = vmatpush1.bf16.msra.mxu0 0
        %1543 = vmatprep.subr.bf16.mxu0 0
        %1544 = vmatpush1.bf16.msra.mxu0 0
        %1545 = vmatprep.subr.bf16.mxu0 0
        %1546 = vmatpush1.bf16.msra.mxu0 0
        %1547 = vmatprep.subr.bf16.mxu0 0
        %1548 = vmatpush1.bf16.msra.mxu0 0
        %1549 = vmatprep.subr.bf16.mxu0 0
        %1550 = vmatpush1.bf16.msra.mxu0 0
        %1551 = vmatprep.subr.bf16.mxu0 0
        %1552 = vmatpush1.bf16.msra.mxu0 %v1278
        %1553 = vmatprep.subr.bf16.mxu0 0
        %1554 = vmatpush1.bf16.msra.mxu0 %v1277
        %1555 = vmatprep.subr.bf16.mxu0 0
        %1556 = vmatpush2.bf16.msra.mxu0 0
        %1557 = vmatprep.subr.bf16.mxu0 0
        %1558 = vmatpush2.bf16.msra.mxu0 0
        %1559 = vmatprep.subr.bf16.mxu0 0
        %1560 = vmatpush2.bf16.msra.mxu0 0
        %1561 = vmatprep.subr.bf16.mxu0 0
        %1562 = vmatpush2.bf16.msra.mxu0 0
        %1563 = vmatprep.subr.bf16.mxu0 0
        %1564 = vmatpush2.bf16.msra.mxu0 0
        %1565 = vmatprep.subr.bf16.mxu0 0
        %1566 = vmatpush2.bf16.msra.mxu0 0
        %1567 = vmatprep.subr.bf16.mxu0 0
        %1568 = vmatpush2.bf16.msra.mxu0 0
        %1569 = vmatprep.subr.bf16.mxu0 0
        %1570 = vmatpush2.bf16.msra.mxu0 0
        %1571 = vmatprep.mubr.bf16.mxu0 0
        %1572 = vmatmul.mubr.bf16.gmra.mxu0 %v1537
        %v1573 = vpop.f32.mrf.mxu0
        %v1574 = vadd.f32 0.0, %v1573
        %v1575 = vpop.f32.mrf.mxu0
        %v1576 = vpop.f32.mrf.mxu0
        %v1577 = vadd.f32 0.0, %v1576
        %v1578 = vpop.f32.mrf.mxu0
        %1579 = vdwg.mxu0
        %v1581 = vsel %vm1315, %v1227, 0
        %1583 = vmatprep.subr.bf16.mxu0 0
        %1584 = vmatpush1.bf16.msra.mxu0 0
        %1585 = vmatprep.subr.bf16.mxu0 0
        %1586 = vmatpush1.bf16.msra.mxu0 0
        %1587 = vmatprep.subr.bf16.mxu0 0
        %1588 = vmatpush1.bf16.msra.mxu0 0
        %1589 = vmatprep.subr.bf16.mxu0 0
        %1590 = vmatpush1.bf16.msra.mxu0 0
        %1591 = vmatprep.subr.bf16.mxu0 0
        %1592 = vmatpush1.bf16.msra.mxu0 0
        %1593 = vmatprep.subr.bf16.mxu0 0
        %1594 = vmatpush1.bf16.msra.mxu0 0
        %1595 = vmatprep.subr.bf16.mxu0 0
        %1596 = vmatpush1.bf16.msra.mxu0 %v1280
        %1597 = vmatprep.subr.bf16.mxu0 0
        %1598 = vmatpush1.bf16.msra.mxu0 %v1279
        %1599 = vmatprep.subr.bf16.mxu0 0
        %1600 = vmatpush2.bf16.msra.mxu0 0
        %1601 = vmatprep.subr.bf16.mxu0 0
        %1602 = vmatpush2.bf16.msra.mxu0 0
        %1603 = vmatprep.subr.bf16.mxu0 0
        %1604 = vmatpush2.bf16.msra.mxu0 0
        %1605 = vmatprep.subr.bf16.mxu0 0
        %1606 = vmatpush2.bf16.msra.mxu0 0
        %1607 = vmatprep.subr.bf16.mxu0 0
        %1608 = vmatpush2.bf16.msra.mxu0 0
        %1609 = vmatprep.subr.bf16.mxu0 0
        %1610 = vmatpush2.bf16.msra.mxu0 0
        %1611 = vmatprep.subr.bf16.mxu0 0
        %1612 = vmatpush2.bf16.msra.mxu0 0
        %1613 = vmatprep.subr.bf16.mxu0 0
        %1614 = vmatpush2.bf16.msra.mxu0 0
        %1615 = vmatprep.mubr.bf16.mxu0 0
        %1616 = vmatmul.mubr.bf16.gmra.mxu0 %v1581
        %v1617 = vpop.f32.mrf.mxu0
        %v1618 = vadd.f32 0.0, %v1617
        %v1619 = vpop.f32.mrf.mxu0
        %v1620 = vpop.f32.mrf.mxu0
        %v1621 = vadd.f32 0.0, %v1620
        %v1622 = vpop.f32.mrf.mxu0
        %1623 = vdwg.mxu0
        %v1625 = vsel %vm1315, %v1243, 0
        %1627 = vmatprep.subr.bf16.mxu0 0
        %1628 = vmatpush1.bf16.msra.mxu0 0
        %1629 = vmatprep.subr.bf16.mxu0 0
        %1630 = vmatpush1.bf16.msra.mxu0 0
        %1631 = vmatprep.subr.bf16.mxu0 0
        %1632 = vmatpush1.bf16.msra.mxu0 0
        %1633 = vmatprep.subr.bf16.mxu0 0
        %1634 = vmatpush1.bf16.msra.mxu0 0
        %1635 = vmatprep.subr.bf16.mxu0 0
        %1636 = vmatpush1.bf16.msra.mxu0 0
        %1637 = vmatprep.subr.bf16.mxu0 0
        %1638 = vmatpush1.bf16.msra.mxu0 0
        %1639 = vmatprep.subr.bf16.mxu0 0
        %1640 = vmatpush1.bf16.msra.mxu0 %v1282
        %1641 = vmatprep.subr.bf16.mxu0 0
        %1642 = vmatpush1.bf16.msra.mxu0 %v1281
        %1643 = vmatprep.subr.bf16.mxu0 0
        %1644 = vmatpush2.bf16.msra.mxu0 0
        %1645 = vmatprep.subr.bf16.mxu0 0
        %1646 = vmatpush2.bf16.msra.mxu0 0
        %1647 = vmatprep.subr.bf16.mxu0 0
        %1648 = vmatpush2.bf16.msra.mxu0 0
        %1649 = vmatprep.subr.bf16.mxu0 0
        %1650 = vmatpush2.bf16.msra.mxu0 0
        %1651 = vmatprep.subr.bf16.mxu0 0
        %1652 = vmatpush2.bf16.msra.mxu0 0
        %1653 = vmatprep.subr.bf16.mxu0 0
        %1654 = vmatpush2.bf16.msra.mxu0 0
        %1655 = vmatprep.subr.bf16.mxu0 0
        %1656 = vmatpush2.bf16.msra.mxu0 0
        %1657 = vmatprep.subr.bf16.mxu0 0
        %1658 = vmatpush2.bf16.msra.mxu0 0
        %1659 = vmatprep.mubr.bf16.mxu0 0
        %1660 = vmatmul.mubr.bf16.gmra.mxu0 %v1625
        %v1661 = vpop.f32.mrf.mxu0
        %v1662 = vadd.f32 0.0, %v1661
        %v1663 = vpop.f32.mrf.mxu0
        %v1664 = vpop.f32.mrf.mxu0
        %v1665 = vadd.f32 0.0, %v1664
        %v1666 = vpop.f32.mrf.mxu0
        %1667 = vdwg.mxu0
        %vm1668 = vcmask 130048
        %v1669 = vsel %vm1668, %v1354, -inf
        %1670 = vmax.xlane.f32.xlu0 %v1669
        %v1671 = vpop.xlane.xlu0 %1670
        %v1672 = vsel %vm1668, %v1357, -inf
        %1673 = vmax.xlane.f32.xlu0 %v1672
        %v1674 = vpop.xlane.xlu0 %1673
        %v1675 = vsel %vm1668, %v1398, -inf
        %1676 = vmax.xlane.f32.xlu0 %v1675
        %v1677 = vpop.xlane.xlu0 %1676
        %v1678 = vsel %vm1668, %v1401, -inf
        %1679 = vmax.xlane.f32.xlu0 %v1678
        %v1680 = vpop.xlane.xlu0 %1679
        %v1681 = vsel %vm1668, %v1442, -inf
        %1682 = vmax.xlane.f32.xlu0 %v1681
        %v1683 = vpop.xlane.xlu0 %1682
        %v1684 = vsel %vm1668, %v1445, -inf
        %1685 = vmax.xlane.f32.xlu0 %v1684
        %v1686 = vpop.xlane.xlu0 %1685
        %v1687 = vsel %vm1668, %v1486, -inf
        %1688 = vmax.xlane.f32.xlu0 %v1687
        %v1689 = vpop.xlane.xlu0 %1688
        %v1690 = vsel %vm1668, %v1489, -inf
        %1691 = vmax.xlane.f32.xlu0 %v1690
        %v1692 = vpop.xlane.xlu0 %1691
        %v1693 = vsel %vm1668, %v1530, -inf
        %1694 = vmax.xlane.f32.xlu0 %v1693
        %v1695 = vpop.xlane.xlu0 %1694
        %v1696 = vsel %vm1668, %v1533, -inf
        %1697 = vmax.xlane.f32.xlu0 %v1696
        %v1698 = vpop.xlane.xlu0 %1697
        %v1699 = vsel %vm1668, %v1574, -inf
        %1700 = vmax.xlane.f32.xlu0 %v1699
        %v1701 = vpop.xlane.xlu0 %1700
        %v1702 = vsel %vm1668, %v1577, -inf
        %1703 = vmax.xlane.f32.xlu0 %v1702
        %v1704 = vpop.xlane.xlu0 %1703
        %v1705 = vsel %vm1668, %v1618, -inf
        %1706 = vmax.xlane.f32.xlu0 %v1705
        %v1707 = vpop.xlane.xlu0 %1706
        %v1708 = vsel %vm1668, %v1621, -inf
        %1709 = vmax.xlane.f32.xlu0 %v1708
        %v1710 = vpop.xlane.xlu0 %1709
        %v1711 = vsel %vm1668, %v1662, -inf
        %1712 = vmax.xlane.f32.xlu0 %v1711
        %v1713 = vpop.xlane.xlu0 %1712
        %v1714 = vsel %vm1668, %v1665, -inf
        %1715 = vmax.xlane.f32.xlu0 %v1714
        %v1716 = vpop.xlane.xlu0 %1715
        %v1717 = vsub.f32 %v1354, %v1671
        %v1718 = vsub.f32 %v1357, %v1674
        %v1719 = vsub.f32 %v1398, %v1677
        %v1720 = vsub.f32 %v1401, %v1680
        %v1721 = vsub.f32 %v1442, %v1683
        %v1722 = vsub.f32 %v1445, %v1686
        %v1723 = vsub.f32 %v1486, %v1689
        %v1724 = vsub.f32 %v1489, %v1692
        %v1725 = vsub.f32 %v1530, %v1695
        %v1726 = vsub.f32 %v1533, %v1698
        %v1727 = vsub.f32 %v1574, %v1701
        %v1728 = vsub.f32 %v1577, %v1704
        %v1729 = vsub.f32 %v1618, %v1707
        %v1730 = vsub.f32 %v1621, %v1710
        %v1731 = vsub.f32 %v1662, %v1713
        %v1732 = vsub.f32 %v1665, %v1716
        %v1733 = vmul.f32 %v1717, 1.442695
        %v1734 = vpow.pop %v1733
        %v1735 = vmul.f32 %v1718, 1.442695
        %v1736 = vpow.pop %v1735
        %v1737 = vmul.f32 %v1719, 1.442695
        %v1738 = vpow.pop %v1737
        %v1739 = vmul.f32 %v1720, 1.442695
        %v1740 = vpow.pop %v1739
        %v1741 = vmul.f32 %v1721, 1.442695
        %v1742 = vpow.pop %v1741
        %v1743 = vmul.f32 %v1722, 1.442695
        %v1744 = vpow.pop %v1743
        %v1745 = vmul.f32 %v1723, 1.442695
        %v1746 = vpow.pop %v1745
        %v1747 = vmul.f32 %v1724, 1.442695
        %v1748 = vpow.pop %v1747
        %v1749 = vmul.f32 %v1725, 1.442695
        %v1750 = vpow.pop %v1749
        %v1751 = vmul.f32 %v1726, 1.442695
        %v1752 = vpow.pop %v1751
        %v1753 = vmul.f32 %v1727, 1.442695
        %v1754 = vpow.pop %v1753
        %v1755 = vmul.f32 %v1728, 1.442695
        %v1756 = vpow.pop %v1755
        %v1757 = vmul.f32 %v1729, 1.442695
        %v1758 = vpow.pop %v1757
        %v1759 = vmul.f32 %v1730, 1.442695
        %v1760 = vpow.pop %v1759
        %v1761 = vmul.f32 %v1731, 1.442695
        %v1762 = vpow.pop %v1761
        %v1763 = vmul.f32 %v1732, 1.442695
        %v1764 = vpow.pop %v1763
        %v1765 = vsel %vm1668, %v1734, 0.0
        %1766 = vadd.xlane.f32.xlu0 %v1765
        %v1767 = vpop.xlane.xlu0 %1766
        %v1768 = vsel %vm1668, %v1736, 0.0
        %1769 = vadd.xlane.f32.xlu0 %v1768
        %v1770 = vpop.xlane.xlu0 %1769
        %v1771 = vsel %vm1668, %v1738, 0.0
        %1772 = vadd.xlane.f32.xlu0 %v1771
        %v1773 = vpop.xlane.xlu0 %1772
        %v1774 = vsel %vm1668, %v1740, 0.0
        %1775 = vadd.xlane.f32.xlu0 %v1774
        %v1776 = vpop.xlane.xlu0 %1775
        %v1777 = vsel %vm1668, %v1742, 0.0
        %1778 = vadd.xlane.f32.xlu0 %v1777
        %v1779 = vpop.xlane.xlu0 %1778
        %v1780 = vsel %vm1668, %v1744, 0.0
        %1781 = vadd.xlane.f32.xlu0 %v1780
        %v1782 = vpop.xlane.xlu0 %1781
        %v1783 = vsel %vm1668, %v1746, 0.0
        %1784 = vadd.xlane.f32.xlu0 %v1783
        %v1785 = vpop.xlane.xlu0 %1784
        %v1786 = vsel %vm1668, %v1748, 0.0
        %1787 = vadd.xlane.f32.xlu0 %v1786
        %v1788 = vpop.xlane.xlu0 %1787
        %v1789 = vsel %vm1668, %v1750, 0.0
        %1790 = vadd.xlane.f32.xlu0 %v1789
        %v1791 = vpop.xlane.xlu0 %1790
        %v1792 = vsel %vm1668, %v1752, 0.0
        %1793 = vadd.xlane.f32.xlu0 %v1792
        %v1794 = vpop.xlane.xlu0 %1793
        %v1795 = vsel %vm1668, %v1754, 0.0
        %1796 = vadd.xlane.f32.xlu0 %v1795
        %v1797 = vpop.xlane.xlu0 %1796
        %v1798 = vsel %vm1668, %v1756, 0.0
        %1799 = vadd.xlane.f32.xlu0 %v1798
        %v1800 = vpop.xlane.xlu0 %1799
        %v1801 = vsel %vm1668, %v1758, 0.0
        %1802 = vadd.xlane.f32.xlu0 %v1801
        %v1803 = vpop.xlane.xlu0 %1802
        %v1804 = vsel %vm1668, %v1760, 0.0
        %1805 = vadd.xlane.f32.xlu0 %v1804
        %v1806 = vpop.xlane.xlu0 %1805
        %v1807 = vsel %vm1668, %v1762, 0.0
        %1808 = vadd.xlane.f32.xlu0 %v1807
        %v1809 = vpop.xlane.xlu0 %1808
        %v1810 = vsel %vm1668, %v1764, 0.0
        %1811 = vadd.xlane.f32.xlu0 %v1810
        %v1812 = vpop.xlane.xlu0 %1811
        %v1813 = vrcp.pop %v1767
        %v1814 = vrcp.pop %v1770
        %v1815 = vrcp.pop %v1773
        %v1816 = vrcp.pop %v1776
        %v1817 = vrcp.pop %v1779
        %v1818 = vrcp.pop %v1782
        %v1819 = vrcp.pop %v1785
        %v1820 = vrcp.pop %v1788
        %v1821 = vrcp.pop %v1791
        %v1822 = vrcp.pop %v1794
        %v1823 = vrcp.pop %v1797
        %v1824 = vrcp.pop %v1800
        %v1825 = vrcp.pop %v1803
        %v1826 = vrcp.pop %v1806
        %v1827 = vrcp.pop %v1809
        %v1828 = vrcp.pop %v1812
        %v1829 = vmul.f32 %v1734, %v1813
        %v1830 = vmul.f32 %v1736, %v1814
        %v1831 = vmul.f32 %v1738, %v1815
        %v1832 = vmul.f32 %v1740, %v1816
        %v1833 = vmul.f32 %v1742, %v1817
        %v1834 = vmul.f32 %v1744, %v1818
        %v1835 = vmul.f32 %v1746, %v1819
        %v1836 = vmul.f32 %v1748, %v1820
        %v1837 = vmul.f32 %v1750, %v1821
        %v1838 = vmul.f32 %v1752, %v1822
        %v1839 = vmul.f32 %v1754, %v1823
        %v1840 = vmul.f32 %v1756, %v1824
        %v1841 = vmul.f32 %v1758, %v1825
        %v1842 = vmul.f32 %v1760, %v1826
        %v1843 = vmul.f32 %v1762, %v1827
        %v1844 = vmul.f32 %v1764, %v1828
        %v1845 = vpack.c.bf16 %v1830, %v1829
        %v1846 = vpack.c.bf16 %v1832, %v1831
        %v1847 = vpack.c.bf16 %v1834, %v1833
        %v1848 = vpack.c.bf16 %v1836, %v1835
        %v1849 = vpack.c.bf16 %v1838, %v1837
        %v1850 = vpack.c.bf16 %v1840, %v1839
        %v1851 = vpack.c.bf16 %v1842, %v1841
        %v1852 = vpack.c.bf16 %v1844, %v1843
        %v1854 = vsel %vm1668, %v1845, 0
        %v1857 = vsel %vm1668, %v1291, 0
        %v1860 = vsel %vm1668, %v1292, 0
        %1862 = vmatprep.subr.bf16.mxu0 0
        %1863 = vmatpush1.bf16.xpose.msra.mxu0 0
        %1864 = vmatprep.subr.bf16.mxu0 0
        %1865 = vmatpush1.bf16.xpose.msra.mxu0 0
        %1866 = vmatprep.subr.bf16.mxu0 0
        %1867 = vmatpush1.bf16.xpose.msra.mxu0 0
        %1868 = vmatprep.subr.bf16.mxu0 0
        %1869 = vmatpush1.bf16.xpose.msra.mxu0 0
        %1870 = vmatprep.subr.bf16.mxu0 0
        %1871 = vmatpush1.bf16.xpose.msra.mxu0 0
        %1872 = vmatprep.subr.bf16.mxu0 0
        %1873 = vmatpush1.bf16.xpose.msra.mxu0 0
        %1874 = vmatprep.subr.bf16.mxu0 0
        %1875 = vmatpush1.bf16.xpose.msra.mxu0 %v1860
        %1876 = vmatprep.subr.bf16.mxu0 0
        %1877 = vmatpush1.bf16.xpose.msra.mxu0 %v1857
        %1878 = vmatprep.subr.bf16.mxu0 0
        %1879 = vmatpush2.bf16.xpose.msra.mxu0 0
        %1880 = vmatprep.subr.bf16.mxu0 0
        %1881 = vmatpush2.bf16.xpose.msra.mxu0 0
        %1882 = vmatprep.subr.bf16.mxu0 0
        %1883 = vmatpush2.bf16.xpose.msra.mxu0 0
        %1884 = vmatprep.subr.bf16.mxu0 0
        %1885 = vmatpush2.bf16.xpose.msra.mxu0 0
        %1886 = vmatprep.subr.bf16.mxu0 0
        %1887 = vmatpush2.bf16.xpose.msra.mxu0 0
        %1888 = vmatprep.subr.bf16.mxu0 0
        %1889 = vmatpush2.bf16.xpose.msra.mxu0 0
        %1890 = vmatprep.subr.bf16.mxu0 0
        %1891 = vmatpush2.bf16.xpose.msra.mxu0 0
        %1892 = vmatprep.subr.bf16.mxu0 0
        %1893 = vmatpush2.bf16.xpose.msra.mxu0 0
        %1894 = vmatprep.mubr.bf16.mxu0 0
        %1895 = vmatmul.mubr.bf16.gmra.mxu0 %v1854
        %v1896 = vpop.f32.mrf.mxu0
        %v1897 = vadd.f32 0.0, %v1896
        %v1898 = vpop.f32.mrf.mxu0
        %v1899 = vpop.f32.mrf.mxu0
        %v1900 = vadd.f32 0.0, %v1899
        %v1901 = vpop.f32.mrf.mxu0
        %1902 = vdwg.mxu0
        %v1904 = vsel %vm1668, %v1846, 0
        %v1907 = vsel %vm1668, %v1293, 0
        %v1910 = vsel %vm1668, %v1294, 0
        %1912 = vmatprep.subr.bf16.mxu0 0
        %1913 = vmatpush1.bf16.xpose.msra.mxu0 0
        %1914 = vmatprep.subr.bf16.mxu0 0
        %1915 = vmatpush1.bf16.xpose.msra.mxu0 0
        %1916 = vmatprep.subr.bf16.mxu0 0
        %1917 = vmatpush1.bf16.xpose.msra.mxu0 0
        %1918 = vmatprep.subr.bf16.mxu0 0
        %1919 = vmatpush1.bf16.xpose.msra.mxu0 0
        %1920 = vmatprep.subr.bf16.mxu0 0
        %1921 = vmatpush1.bf16.xpose.msra.mxu0 0
        %1922 = vmatprep.subr.bf16.mxu0 0
        %1923 = vmatpush1.bf16.xpose.msra.mxu0 0
        %1924 = vmatprep.subr.bf16.mxu0 0
        %1925 = vmatpush1.bf16.xpose.msra.mxu0 %v1910
        %1926 = vmatprep.subr.bf16.mxu0 0
        %1927 = vmatpush1.bf16.xpose.msra.mxu0 %v1907
        %1928 = vmatprep.subr.bf16.mxu0 0
        %1929 = vmatpush2.bf16.xpose.msra.mxu0 0
        %1930 = vmatprep.subr.bf16.mxu0 0
        %1931 = vmatpush2.bf16.xpose.msra.mxu0 0
        %1932 = vmatprep.subr.bf16.mxu0 0
        %1933 = vmatpush2.bf16.xpose.msra.mxu0 0
        %1934 = vmatprep.subr.bf16.mxu0 0
        %1935 = vmatpush2.bf16.xpose.msra.mxu0 0
        %1936 = vmatprep.subr.bf16.mxu0 0
        %1937 = vmatpush2.bf16.xpose.msra.mxu0 0
        %1938 = vmatprep.subr.bf16.mxu0 0
        %1939 = vmatpush2.bf16.xpose.msra.mxu0 0
        %1940 = vmatprep.subr.bf16.mxu0 0
        %1941 = vmatpush2.bf16.xpose.msra.mxu0 0
        %1942 = vmatprep.subr.bf16.mxu0 0
        %1943 = vmatpush2.bf16.xpose.msra.mxu0 0
        %1944 = vmatprep.mubr.bf16.mxu0 0
        %1945 = vmatmul.mubr.bf16.gmra.mxu0 %v1904
        %v1946 = vpop.f32.mrf.mxu0
        %v1947 = vadd.f32 0.0, %v1946
        %v1948 = vpop.f32.mrf.mxu0
        %v1949 = vpop.f32.mrf.mxu0
        %v1950 = vadd.f32 0.0, %v1949
        %v1951 = vpop.f32.mrf.mxu0
        %1952 = vdwg.mxu0
        %v1954 = vsel %vm1668, %v1847, 0
        %v1957 = vsel %vm1668, %v1295, 0
        %v1960 = vsel %vm1668, %v1296, 0
        %1962 = vmatprep.subr.bf16.mxu0 0
        %1963 = vmatpush1.bf16.xpose.msra.mxu0 0
        %1964 = vmatprep.subr.bf16.mxu0 0
        %1965 = vmatpush1.bf16.xpose.msra.mxu0 0
        %1966 = vmatprep.subr.bf16.mxu0 0
        %1967 = vmatpush1.bf16.xpose.msra.mxu0 0
        %1968 = vmatprep.subr.bf16.mxu0 0
        %1969 = vmatpush1.bf16.xpose.msra.mxu0 0
        %1970 = vmatprep.subr.bf16.mxu0 0
        %1971 = vmatpush1.bf16.xpose.msra.mxu0 0
        %1972 = vmatprep.subr.bf16.mxu0 0
        %1973 = vmatpush1.bf16.xpose.msra.mxu0 0
        %1974 = vmatprep.subr.bf16.mxu0 0
        %1975 = vmatpush1.bf16.xpose.msra.mxu0 %v1960
        %1976 = vmatprep.subr.bf16.mxu0 0
        %1977 = vmatpush1.bf16.xpose.msra.mxu0 %v1957
        %1978 = vmatprep.subr.bf16.mxu0 0
        %1979 = vmatpush2.bf16.xpose.msra.mxu0 0
        %1980 = vmatprep.subr.bf16.mxu0 0
        %1981 = vmatpush2.bf16.xpose.msra.mxu0 0
        %1982 = vmatprep.subr.bf16.mxu0 0
        %1983 = vmatpush2.bf16.xpose.msra.mxu0 0
        %1984 = vmatprep.subr.bf16.mxu0 0
        %1985 = vmatpush2.bf16.xpose.msra.mxu0 0
        %1986 = vmatprep.subr.bf16.mxu0 0
        %1987 = vmatpush2.bf16.xpose.msra.mxu0 0
        %1988 = vmatprep.subr.bf16.mxu0 0
        %1989 = vmatpush2.bf16.xpose.msra.mxu0 0
        %1990 = vmatprep.subr.bf16.mxu0 0
        %1991 = vmatpush2.bf16.xpose.msra.mxu0 0
        %1992 = vmatprep.subr.bf16.mxu0 0
        %1993 = vmatpush2.bf16.xpose.msra.mxu0 0
        %1994 = vmatprep.mubr.bf16.mxu0 0
        %1995 = vmatmul.mubr.bf16.gmra.mxu0 %v1954
        %v1996 = vpop.f32.mrf.mxu0
        %v1997 = vadd.f32 0.0, %v1996
        %v1998 = vpop.f32.mrf.mxu0
        %v1999 = vpop.f32.mrf.mxu0
        %v2000 = vadd.f32 0.0, %v1999
        %v2001 = vpop.f32.mrf.mxu0
        %2002 = vdwg.mxu0
        %v2004 = vsel %vm1668, %v1848, 0
        %v2007 = vsel %vm1668, %v1297, 0
        %v2010 = vsel %vm1668, %v1298, 0
        %2012 = vmatprep.subr.bf16.mxu0 0
        %2013 = vmatpush1.bf16.xpose.msra.mxu0 0
        %2014 = vmatprep.subr.bf16.mxu0 0
        %2015 = vmatpush1.bf16.xpose.msra.mxu0 0
        %2016 = vmatprep.subr.bf16.mxu0 0
        %2017 = vmatpush1.bf16.xpose.msra.mxu0 0
        %2018 = vmatprep.subr.bf16.mxu0 0
        %2019 = vmatpush1.bf16.xpose.msra.mxu0 0
        %2020 = vmatprep.subr.bf16.mxu0 0
        %2021 = vmatpush1.bf16.xpose.msra.mxu0 0
        %2022 = vmatprep.subr.bf16.mxu0 0
        %2023 = vmatpush1.bf16.xpose.msra.mxu0 0
        %2024 = vmatprep.subr.bf16.mxu0 0
        %2025 = vmatpush1.bf16.xpose.msra.mxu0 %v2010
        %2026 = vmatprep.subr.bf16.mxu0 0
        %2027 = vmatpush1.bf16.xpose.msra.mxu0 %v2007
        %2028 = vmatprep.subr.bf16.mxu0 0
        %2029 = vmatpush2.bf16.xpose.msra.mxu0 0
        %2030 = vmatprep.subr.bf16.mxu0 0
        %2031 = vmatpush2.bf16.xpose.msra.mxu0 0
        %2032 = vmatprep.subr.bf16.mxu0 0
        %2033 = vmatpush2.bf16.xpose.msra.mxu0 0
        %2034 = vmatprep.subr.bf16.mxu0 0
        %2035 = vmatpush2.bf16.xpose.msra.mxu0 0
        %2036 = vmatprep.subr.bf16.mxu0 0
        %2037 = vmatpush2.bf16.xpose.msra.mxu0 0
        %2038 = vmatprep.subr.bf16.mxu0 0
        %2039 = vmatpush2.bf16.xpose.msra.mxu0 0
        %2040 = vmatprep.subr.bf16.mxu0 0
        %2041 = vmatpush2.bf16.xpose.msra.mxu0 0
        %2042 = vmatprep.subr.bf16.mxu0 0
        %2043 = vmatpush2.bf16.xpose.msra.mxu0 0
        %2044 = vmatprep.mubr.bf16.mxu0 0
        %2045 = vmatmul.mubr.bf16.gmra.mxu0 %v2004
        %v2046 = vpop.f32.mrf.mxu0
        %v2047 = vadd.f32 0.0, %v2046
        %v2048 = vpop.f32.mrf.mxu0
        %v2049 = vpop.f32.mrf.mxu0
        %v2050 = vadd.f32 0.0, %v2049
        %v2051 = vpop.f32.mrf.mxu0
        %2052 = vdwg.mxu0
        %v2054 = vsel %vm1668, %v1849, 0
        %v2057 = vsel %vm1668, %v1307, 0
        %v2060 = vsel %vm1668, %v1308, 0
        %2062 = vmatprep.subr.bf16.mxu0 0
        %2063 = vmatpush1.bf16.xpose.msra.mxu0 0
        %2064 = vmatprep.subr.bf16.mxu0 0
        %2065 = vmatpush1.bf16.xpose.msra.mxu0 0
        %2066 = vmatprep.subr.bf16.mxu0 0
        %2067 = vmatpush1.bf16.xpose.msra.mxu0 0
        %2068 = vmatprep.subr.bf16.mxu0 0
        %2069 = vmatpush1.bf16.xpose.msra.mxu0 0
        %2070 = vmatprep.subr.bf16.mxu0 0
        %2071 = vmatpush1.bf16.xpose.msra.mxu0 0
        %2072 = vmatprep.subr.bf16.mxu0 0
        %2073 = vmatpush1.bf16.xpose.msra.mxu0 0
        %2074 = vmatprep.subr.bf16.mxu0 0
        %2075 = vmatpush1.bf16.xpose.msra.mxu0 %v2060
        %2076 = vmatprep.subr.bf16.mxu0 0
        %2077 = vmatpush1.bf16.xpose.msra.mxu0 %v2057
        %2078 = vmatprep.subr.bf16.mxu0 0
        %2079 = vmatpush2.bf16.xpose.msra.mxu0 0
        %2080 = vmatprep.subr.bf16.mxu0 0
        %2081 = vmatpush2.bf16.xpose.msra.mxu0 0
        %2082 = vmatprep.subr.bf16.mxu0 0
        %2083 = vmatpush2.bf16.xpose.msra.mxu0 0
        %2084 = vmatprep.subr.bf16.mxu0 0
        %2085 = vmatpush2.bf16.xpose.msra.mxu0 0
        %2086 = vmatprep.subr.bf16.mxu0 0
        %2087 = vmatpush2.bf16.xpose.msra.mxu0 0
        %2088 = vmatprep.subr.bf16.mxu0 0
        %2089 = vmatpush2.bf16.xpose.msra.mxu0 0
        %2090 = vmatprep.subr.bf16.mxu0 0
        %2091 = vmatpush2.bf16.xpose.msra.mxu0 0
        %2092 = vmatprep.subr.bf16.mxu0 0
        %2093 = vmatpush2.bf16.xpose.msra.mxu0 0
        %2094 = vmatprep.mubr.bf16.mxu0 0
        %2095 = vmatmul.mubr.bf16.gmra.mxu0 %v2054
        %v2096 = vpop.f32.mrf.mxu0
        %v2097 = vadd.f32 0.0, %v2096
        %v2098 = vpop.f32.mrf.mxu0
        %v2099 = vpop.f32.mrf.mxu0
        %v2100 = vadd.f32 0.0, %v2099
        %v2101 = vpop.f32.mrf.mxu0
        %2102 = vdwg.mxu0
        %v2104 = vsel %vm1668, %v1850, 0
        %v2107 = vsel %vm1668, %v1309, 0
        %v2110 = vsel %vm1668, %v1310, 0
        %2112 = vmatprep.subr.bf16.mxu0 0
        %2113 = vmatpush1.bf16.xpose.msra.mxu0 0
        %2114 = vmatprep.subr.bf16.mxu0 0
        %2115 = vmatpush1.bf16.xpose.msra.mxu0 0
        %2116 = vmatprep.subr.bf16.mxu0 0
        %2117 = vmatpush1.bf16.xpose.msra.mxu0 0
        %2118 = vmatprep.subr.bf16.mxu0 0
        %2119 = vmatpush1.bf16.xpose.msra.mxu0 0
        %2120 = vmatprep.subr.bf16.mxu0 0
        %2121 = vmatpush1.bf16.xpose.msra.mxu0 0
        %2122 = vmatprep.subr.bf16.mxu0 0
        %2123 = vmatpush1.bf16.xpose.msra.mxu0 0
        %2124 = vmatprep.subr.bf16.mxu0 0
        %2125 = vmatpush1.bf16.xpose.msra.mxu0 %v2110
        %2126 = vmatprep.subr.bf16.mxu0 0
        %2127 = vmatpush1.bf16.xpose.msra.mxu0 %v2107
        %2128 = vmatprep.subr.bf16.mxu0 0
        %2129 = vmatpush2.bf16.xpose.msra.mxu0 0
        %2130 = vmatprep.subr.bf16.mxu0 0
        %2131 = vmatpush2.bf16.xpose.msra.mxu0 0
        %2132 = vmatprep.subr.bf16.mxu0 0
        %2133 = vmatpush2.bf16.xpose.msra.mxu0 0
        %2134 = vmatprep.subr.bf16.mxu0 0
        %2135 = vmatpush2.bf16.xpose.msra.mxu0 0
        %2136 = vmatprep.subr.bf16.mxu0 0
        %2137 = vmatpush2.bf16.xpose.msra.mxu0 0
        %2138 = vmatprep.subr.bf16.mxu0 0
        %2139 = vmatpush2.bf16.xpose.msra.mxu0 0
        %2140 = vmatprep.subr.bf16.mxu0 0
        %2141 = vmatpush2.bf16.xpose.msra.mxu0 0
        %2142 = vmatprep.subr.bf16.mxu0 0
        %2143 = vmatpush2.bf16.xpose.msra.mxu0 0
        %2144 = vmatprep.mubr.bf16.mxu0 0
        %2145 = vmatmul.mubr.bf16.gmra.mxu0 %v2104
        %v2146 = vpop.f32.mrf.mxu0
        %v2147 = vadd.f32 0.0, %v2146
        %v2148 = vpop.f32.mrf.mxu0
        %v2149 = vpop.f32.mrf.mxu0
        %v2150 = vadd.f32 0.0, %v2149
        %v2151 = vpop.f32.mrf.mxu0
        %2152 = vdwg.mxu0
        %v2154 = vsel %vm1668, %v1851, 0
        %v2157 = vsel %vm1668, %v1311, 0
        %v2160 = vsel %vm1668, %v1312, 0
        %2162 = vmatprep.subr.bf16.mxu0 0
        %2163 = vmatpush1.bf16.xpose.msra.mxu0 0
        %2164 = vmatprep.subr.bf16.mxu0 0
        %2165 = vmatpush1.bf16.xpose.msra.mxu0 0
        %2166 = vmatprep.subr.bf16.mxu0 0
        %2167 = vmatpush1.bf16.xpose.msra.mxu0 0
        %2168 = vmatprep.subr.bf16.mxu0 0
        %2169 = vmatpush1.bf16.xpose.msra.mxu0 0
        %2170 = vmatprep.subr.bf16.mxu0 0
        %2171 = vmatpush1.bf16.xpose.msra.mxu0 0
        %2172 = vmatprep.subr.bf16.mxu0 0
        %2173 = vmatpush1.bf16.xpose.msra.mxu0 0
        %2174 = vmatprep.subr.bf16.mxu0 0
        %2175 = vmatpush1.bf16.xpose.msra.mxu0 %v2160
        %2176 = vmatprep.subr.bf16.mxu0 0
        %2177 = vmatpush1.bf16.xpose.msra.mxu0 %v2157
        %2178 = vmatprep.subr.bf16.mxu0 0
        %2179 = vmatpush2.bf16.xpose.msra.mxu0 0
        %2180 = vmatprep.subr.bf16.mxu0 0
        %2181 = vmatpush2.bf16.xpose.msra.mxu0 0
        %2182 = vmatprep.subr.bf16.mxu0 0
        %2183 = vmatpush2.bf16.xpose.msra.mxu0 0
        %2184 = vmatprep.subr.bf16.mxu0 0
        %2185 = vmatpush2.bf16.xpose.msra.mxu0 0
        %2186 = vmatprep.subr.bf16.mxu0 0
        %2187 = vmatpush2.bf16.xpose.msra.mxu0 0
        %2188 = vmatprep.subr.bf16.mxu0 0
        %2189 = vmatpush2.bf16.xpose.msra.mxu0 0
        %2190 = vmatprep.subr.bf16.mxu0 0
        %2191 = vmatpush2.bf16.xpose.msra.mxu0 0
        %2192 = vmatprep.subr.bf16.mxu0 0
        %2193 = vmatpush2.bf16.xpose.msra.mxu0 0
        %2194 = vmatprep.mubr.bf16.mxu0 0
        %2195 = vmatmul.mubr.bf16.gmra.mxu0 %v2154
        %v2196 = vpop.f32.mrf.mxu0
        %v2197 = vadd.f32 0.0, %v2196
        %v2198 = vpop.f32.mrf.mxu0
        %v2199 = vpop.f32.mrf.mxu0
        %v2200 = vadd.f32 0.0, %v2199
        %v2201 = vpop.f32.mrf.mxu0
        %2202 = vdwg.mxu0
        %v2204 = vsel %vm1668, %v1852, 0
        %v2207 = vsel %vm1668, %v1313, 0
        %v2210 = vsel %vm1668, %v1314, 0
        %2212 = vmatprep.subr.bf16.mxu0 0
        %2213 = vmatpush1.bf16.xpose.msra.mxu0 0
        %2214 = vmatprep.subr.bf16.mxu0 0
        %2215 = vmatpush1.bf16.xpose.msra.mxu0 0
        %2216 = vmatprep.subr.bf16.mxu0 0
        %2217 = vmatpush1.bf16.xpose.msra.mxu0 0
        %2218 = vmatprep.subr.bf16.mxu0 0
        %2219 = vmatpush1.bf16.xpose.msra.mxu0 0
        %2220 = vmatprep.subr.bf16.mxu0 0
        %2221 = vmatpush1.bf16.xpose.msra.mxu0 0
        %2222 = vmatprep.subr.bf16.mxu0 0
        %2223 = vmatpush1.bf16.xpose.msra.mxu0 0
        %2224 = vmatprep.subr.bf16.mxu0 0
        %2225 = vmatpush1.bf16.xpose.msra.mxu0 %v2210
        %2226 = vmatprep.subr.bf16.mxu0 0
        %2227 = vmatpush1.bf16.xpose.msra.mxu0 %v2207
        %2228 = vmatprep.subr.bf16.mxu0 0
        %2229 = vmatpush2.bf16.xpose.msra.mxu0 0
        %2230 = vmatprep.subr.bf16.mxu0 0
        %2231 = vmatpush2.bf16.xpose.msra.mxu0 0
        %2232 = vmatprep.subr.bf16.mxu0 0
        %2233 = vmatpush2.bf16.xpose.msra.mxu0 0
        %2234 = vmatprep.subr.bf16.mxu0 0
        %2235 = vmatpush2.bf16.xpose.msra.mxu0 0
        %2236 = vmatprep.subr.bf16.mxu0 0
        %2237 = vmatpush2.bf16.xpose.msra.mxu0 0
        %2238 = vmatprep.subr.bf16.mxu0 0
        %2239 = vmatpush2.bf16.xpose.msra.mxu0 0
        %2240 = vmatprep.subr.bf16.mxu0 0
        %2241 = vmatpush2.bf16.xpose.msra.mxu0 0
        %2242 = vmatprep.subr.bf16.mxu0 0
        %2243 = vmatpush2.bf16.xpose.msra.mxu0 0
        %2244 = vmatprep.mubr.bf16.mxu0 0
        %2245 = vmatmul.mubr.bf16.gmra.mxu0 %v2204
        %v2246 = vpop.f32.mrf.mxu0
        %v2247 = vadd.f32 0.0, %v2246
        %v2248 = vpop.f32.mrf.mxu0
        %v2249 = vpop.f32.mrf.mxu0
        %v2250 = vadd.f32 0.0, %v2249
        %v2251 = vpop.f32.mrf.mxu0
        %2252 = vdwg.mxu0
        %v2253 = vpack.c.bf16 %v1900, %v1897
        %v2254 = vpack.c.bf16 %v1950, %v1947
        %v2255 = vpack.c.bf16 %v2000, %v1997
        %v2256 = vpack.c.bf16 %v2050, %v2047
        %v2257 = vpack.c.bf16 %v2100, %v2097
        %v2258 = vpack.c.bf16 %v2150, %v2147
        %v2259 = vpack.c.bf16 %v2200, %v2197
        %v2260 = vpack.c.bf16 %v2250, %v2247
        %2261 = vxpose.xlu0.c.b16.start [1/8] %v2253, 128
        %2262 = vxpose.xlu0.c.b16.cont [2/8] 0, 128
        %2263 = vxpose.xlu0.c.b16.cont [3/8] 0, 128
        %2264 = vxpose.xlu0.c.b16.cont [4/8] 0, 128
        %2265 = vxpose.xlu0.c.b16.cont [5/8] 0, 128
        %2266 = vxpose.xlu0.c.b16.cont [6/8] 0, 128
        %2267 = vxpose.xlu0.c.b16.cont [7/8] 0, 128
        %2268 = vxpose.xlu0.c.b16.end [8/8] 0, 128
        %v2269 = vpop.trf.xlu0
        %v2270 = vpop.trf.xlu0
        %v2271 = vpop.trf.xlu0
        %v2272 = vpop.trf.xlu0
        %v2273 = vpop.trf.xlu0
        %v2274 = vpop.trf.xlu0
        %v2275 = vpop.trf.xlu0
        %v2276 = vpop.trf.xlu0
        %2277 = vxpose.xlu0.c.b16.start [1/8] %v2254, 128
        %2278 = vxpose.xlu0.c.b16.cont [2/8] 0, 128
        %2279 = vxpose.xlu0.c.b16.cont [3/8] 0, 128
        %2280 = vxpose.xlu0.c.b16.cont [4/8] 0, 128
        %2281 = vxpose.xlu0.c.b16.cont [5/8] 0, 128
        %2282 = vxpose.xlu0.c.b16.cont [6/8] 0, 128
        %2283 = vxpose.xlu0.c.b16.cont [7/8] 0, 128
        %2284 = vxpose.xlu0.c.b16.end [8/8] 0, 128
        %v2285 = vpop.trf.xlu0
        %v2286 = vpop.trf.xlu0
        %v2287 = vpop.trf.xlu0
        %v2288 = vpop.trf.xlu0
        %v2289 = vpop.trf.xlu0
        %v2290 = vpop.trf.xlu0
        %v2291 = vpop.trf.xlu0
        %v2292 = vpop.trf.xlu0
        %2293 = vxpose.xlu0.c.b16.start [1/8] %v2255, 128
        %2294 = vxpose.xlu0.c.b16.cont [2/8] 0, 128
        %2295 = vxpose.xlu0.c.b16.cont [3/8] 0, 128
        %2296 = vxpose.xlu0.c.b16.cont [4/8] 0, 128
        %2297 = vxpose.xlu0.c.b16.cont [5/8] 0, 128
        %2298 = vxpose.xlu0.c.b16.cont [6/8] 0, 128
        %2299 = vxpose.xlu0.c.b16.cont [7/8] 0, 128
        %2300 = vxpose.xlu0.c.b16.end [8/8] 0, 128
        %v2301 = vpop.trf.xlu0
        %v2302 = vpop.trf.xlu0
        %v2303 = vpop.trf.xlu0
        %v2304 = vpop.trf.xlu0
        %v2305 = vpop.trf.xlu0
        %v2306 = vpop.trf.xlu0
        %v2307 = vpop.trf.xlu0
        %v2308 = vpop.trf.xlu0
        %2309 = vxpose.xlu0.c.b16.start [1/8] %v2256, 128
        %2310 = vxpose.xlu0.c.b16.cont [2/8] 0, 128
        %2311 = vxpose.xlu0.c.b16.cont [3/8] 0, 128
        %2312 = vxpose.xlu0.c.b16.cont [4/8] 0, 128
        %2313 = vxpose.xlu0.c.b16.cont [5/8] 0, 128
        %2314 = vxpose.xlu0.c.b16.cont [6/8] 0, 128
        %2315 = vxpose.xlu0.c.b16.cont [7/8] 0, 128
        %2316 = vxpose.xlu0.c.b16.end [8/8] 0, 128
        %v2317 = vpop.trf.xlu0
        %v2318 = vpop.trf.xlu0
        %v2319 = vpop.trf.xlu0
        %v2320 = vpop.trf.xlu0
        %v2321 = vpop.trf.xlu0
        %v2322 = vpop.trf.xlu0
        %v2323 = vpop.trf.xlu0
        %v2324 = vpop.trf.xlu0
        %2325 = vxpose.xlu0.c.b16.start [1/8] %v2257, 128
        %2326 = vxpose.xlu0.c.b16.cont [2/8] 0, 128
        %2327 = vxpose.xlu0.c.b16.cont [3/8] 0, 128
        %2328 = vxpose.xlu0.c.b16.cont [4/8] 0, 128
        %2329 = vxpose.xlu0.c.b16.cont [5/8] 0, 128
        %2330 = vxpose.xlu0.c.b16.cont [6/8] 0, 128
        %2331 = vxpose.xlu0.c.b16.cont [7/8] 0, 128
        %2332 = vxpose.xlu0.c.b16.end [8/8] 0, 128
        %v2333 = vpop.trf.xlu0
        %v2334 = vpop.trf.xlu0
        %v2335 = vpop.trf.xlu0
        %v2336 = vpop.trf.xlu0
        %v2337 = vpop.trf.xlu0
        %v2338 = vpop.trf.xlu0
        %v2339 = vpop.trf.xlu0
        %v2340 = vpop.trf.xlu0
        %2341 = vxpose.xlu0.c.b16.start [1/8] %v2258, 128
        %2342 = vxpose.xlu0.c.b16.cont [2/8] 0, 128
        %2343 = vxpose.xlu0.c.b16.cont [3/8] 0, 128
        %2344 = vxpose.xlu0.c.b16.cont [4/8] 0, 128
        %2345 = vxpose.xlu0.c.b16.cont [5/8] 0, 128
        %2346 = vxpose.xlu0.c.b16.cont [6/8] 0, 128
        %2347 = vxpose.xlu0.c.b16.cont [7/8] 0, 128
        %2348 = vxpose.xlu0.c.b16.end [8/8] 0, 128
        %v2349 = vpop.trf.xlu0
        %v2350 = vpop.trf.xlu0
        %v2351 = vpop.trf.xlu0
        %v2352 = vpop.trf.xlu0
        %v2353 = vpop.trf.xlu0
        %v2354 = vpop.trf.xlu0
        %v2355 = vpop.trf.xlu0
        %v2356 = vpop.trf.xlu0
        %2357 = vxpose.xlu0.c.b16.start [1/8] %v2259, 128
        %2358 = vxpose.xlu0.c.b16.cont [2/8] 0, 128
        %2359 = vxpose.xlu0.c.b16.cont [3/8] 0, 128
        %2360 = vxpose.xlu0.c.b16.cont [4/8] 0, 128
        %2361 = vxpose.xlu0.c.b16.cont [5/8] 0, 128
        %2362 = vxpose.xlu0.c.b16.cont [6/8] 0, 128
        %2363 = vxpose.xlu0.c.b16.cont [7/8] 0, 128
        %2364 = vxpose.xlu0.c.b16.end [8/8] 0, 128
        %v2365 = vpop.trf.xlu0
        %v2366 = vpop.trf.xlu0
        %v2367 = vpop.trf.xlu0
        %v2368 = vpop.trf.xlu0
        %v2369 = vpop.trf.xlu0
        %v2370 = vpop.trf.xlu0
        %v2371 = vpop.trf.xlu0
        %v2372 = vpop.trf.xlu0
        %2373 = vxpose.xlu0.c.b16.start [1/8] %v2260, 128
        %2374 = vxpose.xlu0.c.b16.cont [2/8] 0, 128
        %2375 = vxpose.xlu0.c.b16.cont [3/8] 0, 128
        %2376 = vxpose.xlu0.c.b16.cont [4/8] 0, 128
        %2377 = vxpose.xlu0.c.b16.cont [5/8] 0, 128
        %2378 = vxpose.xlu0.c.b16.cont [6/8] 0, 128
        %2379 = vxpose.xlu0.c.b16.cont [7/8] 0, 128
        %2380 = vxpose.xlu0.c.b16.end [8/8] 0, 128
        %v2381 = vpop.trf.xlu0
        %v2382 = vpop.trf.xlu0
        %v2383 = vpop.trf.xlu0
        %v2384 = vpop.trf.xlu0
        %v2385 = vpop.trf.xlu0
        %v2386 = vpop.trf.xlu0
        %v2387 = vpop.trf.xlu0
        %v2388 = vpop.trf.xlu0
        %2389 = vxpose.xlu0.c.b16.start [1/8] %v2269, 128
        %2390 = vxpose.xlu0.c.b16.cont [2/8] %v2270, 128
        %2391 = vxpose.xlu0.c.b16.cont [3/8] %v2285, 128
        %2392 = vxpose.xlu0.c.b16.cont [4/8] %v2286, 128
        %2393 = vxpose.xlu0.c.b16.cont [5/8] %v2301, 128
        %2394 = vxpose.xlu0.c.b16.cont [6/8] %v2302, 128
        %2395 = vxpose.xlu0.c.b16.cont [7/8] %v2317, 128
        %2396 = vxpose.xlu0.c.b16.end [8/8] %v2318, 128
        %v2397 = vpop.trf.xlu0
        %v2398 = vpop.trf.xlu0
        %v2399 = vpop.trf.xlu0
        %v2400 = vpop.trf.xlu0
        %v2401 = vpop.trf.xlu0
        %v2402 = vpop.trf.xlu0
        %v2403 = vpop.trf.xlu0
        %v2404 = vpop.trf.xlu0
        %2405 = vxpose.xlu0.c.b16.start [1/8] %v2333, 128
        %2406 = vxpose.xlu0.c.b16.cont [2/8] %v2334, 128
        %2407 = vxpose.xlu0.c.b16.cont [3/8] %v2349, 128
        %2408 = vxpose.xlu0.c.b16.cont [4/8] %v2350, 128
        %2409 = vxpose.xlu0.c.b16.cont [5/8] %v2365, 128
        %2410 = vxpose.xlu0.c.b16.cont [6/8] %v2366, 128
        %2411 = vxpose.xlu0.c.b16.cont [7/8] %v2381, 128
        %2412 = vxpose.xlu0.c.b16.end [8/8] %v2382, 128
        %v2413 = vpop.trf.xlu0
        %v2414 = vpop.trf.xlu0
        %v2415 = vpop.trf.xlu0
        %v2416 = vpop.trf.xlu0
        %v2417 = vpop.trf.xlu0
        %v2418 = vpop.trf.xlu0
        %v2419 = vpop.trf.xlu0
        %v2420 = vpop.trf.xlu0
        %v2421 = vld [vmem:[#allocation13] sm:$0xf]
        %v2422 = vld [vmem:[#allocation13 + $0x4] sm:$0xf]
        %v2423 = vld [vmem:[#allocation13 + $0x8] sm:$0xf]
        %v2424 = vld [vmem:[#allocation13 + $0xc] sm:$0xf]
        %v2425 = vld [vmem:[#allocation13 + $0x10] sm:$0xf]
        %v2426 = vld [vmem:[#allocation13 + $0x14] sm:$0xf]
        %v2427 = vld [vmem:[#allocation13 + $0x18] sm:$0xf]
        %v2428 = vld [vmem:[#allocation13 + $0x1c] sm:$0xf]
        %v2429 = vld [vmem:[#allocation13 + $0x20] sm:$0xf]
        %v2430 = vld [vmem:[#allocation13 + $0x24] sm:$0xf]
        %v2431 = vld [vmem:[#allocation13 + $0x28] sm:$0xf]
        %v2432 = vld [vmem:[#allocation13 + $0x2c] sm:$0xf]
        %v2433 = vld [vmem:[#allocation13 + $0x30] sm:$0xf]
        %v2434 = vld [vmem:[#allocation13 + $0x34] sm:$0xf]
        %v2435 = vld [vmem:[#allocation13 + $0x38] sm:$0xf]
        %v2436 = vld [vmem:[#allocation13 + $0x3c] sm:$0xf]
        %v2437 = vld [vmem:[%s8] sm:$0x1]
        %v2439 = vlaneseq
        %v2440 = vshrl.u32 %v2439, 7
        %v2441 = vsub.s32 0, %v2440
        %v2442 = vrot.slane %v2437, %v2441
        %v2460 = vunpack.c.l.b16 %v2421
        %v2461 = vunpack.c.l.b16 %v2422
        %v2462 = vunpack.c.l.b16 %v2423
        %v2463 = vunpack.c.l.b16 %v2424
        %v2464 = vunpack.c.l.b16 %v2425
        %v2465 = vunpack.c.l.b16 %v2426
        %v2466 = vunpack.c.l.b16 %v2427
        %v2467 = vunpack.c.l.b16 %v2428
        %v2468 = vunpack.c.l.b16 %v2429
        %v2469 = vunpack.c.l.b16 %v2430
        %v2470 = vunpack.c.l.b16 %v2431
        %v2471 = vunpack.c.l.b16 %v2432
        %v2472 = vunpack.c.l.b16 %v2433
        %v2473 = vunpack.c.l.b16 %v2434
        %v2474 = vunpack.c.l.b16 %v2435
        %v2475 = vunpack.c.l.b16 %v2436
        %v2476 = vpack.c.b16 %v2461, %v2460
        %v2477 = vpack.c.b16 %v2463, %v2462
        %v2478 = vpack.c.b16 %v2465, %v2464
        %v2479 = vpack.c.b16 %v2467, %v2466
        %v2480 = vpack.c.b16 %v2469, %v2468
        %v2481 = vpack.c.b16 %v2471, %v2470
        %v2482 = vpack.c.b16 %v2473, %v2472
        %v2483 = vpack.c.b16 %v2475, %v2474
        %2492 = vmatprep.subr.bf16.mxu0 0
        %2493 = vmatpush1.bf16.msra.mxu0 %v2483
        %2494 = vmatprep.subr.bf16.mxu0 0
        %2495 = vmatpush1.bf16.msra.mxu0 %v2482
        %2496 = vmatprep.subr.bf16.mxu0 0
        %2497 = vmatpush1.bf16.msra.mxu0 %v2481
        %2498 = vmatprep.subr.bf16.mxu0 0
        %2499 = vmatpush1.bf16.msra.mxu0 %v2480
        %2500 = vmatprep.subr.bf16.mxu0 0
        %2501 = vmatpush1.bf16.msra.mxu0 %v2479
        %2502 = vmatprep.subr.bf16.mxu0 0
        %2503 = vmatpush1.bf16.msra.mxu0 %v2478
        %2504 = vmatprep.subr.bf16.mxu0 0
        %2505 = vmatpush1.bf16.msra.mxu0 %v2477
        %2506 = vmatprep.subr.bf16.mxu0 0
        %2507 = vmatpush1.bf16.msra.mxu0 %v2476
        %2508 = vmatprep.subr.bf16.mxu0 0
        %2509 = vmatpush2.bf16.msra.mxu0 0
        %2510 = vmatprep.subr.bf16.mxu0 0
        %2511 = vmatpush2.bf16.msra.mxu0 0
        %2512 = vmatprep.subr.bf16.mxu0 0
        %2513 = vmatpush2.bf16.msra.mxu0 0
        %2514 = vmatprep.subr.bf16.mxu0 0
        %2515 = vmatpush2.bf16.msra.mxu0 0
        %2516 = vmatprep.subr.bf16.mxu0 0
        %2517 = vmatpush2.bf16.msra.mxu0 0
        %2518 = vmatprep.subr.bf16.mxu0 0
        %2519 = vmatpush2.bf16.msra.mxu0 0
        %2520 = vmatprep.subr.bf16.mxu0 0
        %2521 = vmatpush2.bf16.msra.mxu0 0
        %2522 = vmatprep.subr.bf16.mxu0 0
        %2523 = vmatpush2.bf16.msra.mxu0 0
        %2524 = vmatprep.mubr.bf16.mxu0 0
        %2525 = vmatmul.mubr.bf16.gmra.mxu0 %v2397
        %v2526 = vpop.f32.mrf.mxu0
        %v2527 = vadd.f32 %v2442, %v2526
        %v2528 = vpop.f32.mrf.mxu0
        %v2529 = vpop.f32.mrf.mxu0
        %v2530 = vadd.f32 %v2442, %v2529
        %v2531 = vpop.f32.mrf.mxu0
        %2532 = vmatprep.mubr.bf16.mxu0 0
        %2533 = vmatmul.mubr.bf16.gmra.mxu0 %v2413
        %v2534 = vpop.f32.mrf.mxu0
        %v2535 = vadd.f32 %v2442, %v2534
        %v2536 = vpop.f32.mrf.mxu0
        %v2537 = vpop.f32.mrf.mxu0
        %v2538 = vadd.f32 %v2442, %v2537
        %v2539 = vpop.f32.mrf.mxu0
        %2540 = vdwg.mxu0
        %v2541 = vld [vmem:[%s9] sm:$0x1]
        %v2543 = vlaneseq
        %v2544 = vshrl.u32 %v2543, 7
        %v2545 = vsub.s32 0, %v2544
        %v2546 = vrot.slane %v2541, %v2545
        %v2548 = vmul.f32 %v2527, %v2546
        %v2549 = vmul.f32 %v2530, %v2546
        %v2550 = vmul.f32 %v2535, %v2546
        %v2551 = vmul.f32 %v2538, %v2546
        %v2552 = vadd.f32 %v733, %v2548
        %v2553 = vadd.f32 %v734, %v2549
        %v2554 = vadd.f32 %v735, %v2550
        %v2555 = vadd.f32 %v736, %v2551
        %v2556 = vld [vmem:[%s634] sm:$0x1]
        %v2557 = vld [vmem:[%s634 + $0x1] sm:$0x1]
        %v2560 = vlaneseq
        %v2561 = vshrl.u32 %v2560, 7
        %v2562 = vsub.s32 0, %v2561
        %v2563 = vrot.slane %v2556, %v2562
        %v2564 = vlaneseq
        %v2565 = vshrl.u32 %v2564, 7
        %v2566 = vsub.s32 0, %v2565
        %v2567 = vrot.slane %v2557, %v2566
        %v2570 = vmul.f32 %v2552, %v2563
        %v2571 = vmul.f32 %v2553, %v2563
        %v2572 = vmul.f32 %v2554, %v2567
        %v2573 = vmul.f32 %v2555, %v2567
        %v2574 = vld [vmem:[%s643] sm:$0x1]
        %v2575 = vld [vmem:[%s643 + $0x1] sm:$0x1]
        %v2578 = vlaneseq
        %v2579 = vshrl.u32 %v2578, 7
        %v2580 = vsub.s32 0, %v2579
        %v2581 = vrot.slane %v2574, %v2580
        %v2582 = vlaneseq
        %v2583 = vshrl.u32 %v2582, 7
        %v2584 = vsub.s32 0, %v2583
        %v2585 = vrot.slane %v2575, %v2584
        %v2588 = vadd.f32 %v2570, %v2581
        %v2589 = vadd.f32 %v2571, %v2581
        %v2590 = vadd.f32 %v2572, %v2585
        %v2591 = vadd.f32 %v2573, %v2585
        %v2592 = vld [vmem:[%s10] sm:$0x1]
        %v2593 = vld [vmem:[%s11] sm:$0x1]
        %2594 = vadd.xlane.f32.xlu0 %v2588
        %v2595 = vpop.xlane.xlu0 %2594
        %2596 = vadd.xlane.f32.xlu0 %v2589
        %v2597 = vpop.xlane.xlu0 %2596
        %2598 = vadd.xlane.f32.xlu0 %v2590
        %v2599 = vpop.xlane.xlu0 %2598
        %2600 = vadd.xlane.f32.xlu0 %v2591
        %v2601 = vpop.xlane.xlu0 %2600
        %v2602 = vmul.f32 %v2595, %v747
        %v2603 = vmul.f32 %v2597, %v747
        %v2604 = vmul.f32 %v2599, %v747
        %v2605 = vmul.f32 %v2601, %v747
        %v2606 = vsub.f32 %v2588, %v2602
        %v2607 = vsub.f32 %v2589, %v2603
        %v2608 = vsub.f32 %v2590, %v2604
        %v2609 = vsub.f32 %v2591, %v2605
        %v2610 = vmul.f32 %v2606, %v2606
        %v2611 = vmul.f32 %v2607, %v2607
        %v2612 = vmul.f32 %v2608, %v2608
        %v2613 = vmul.f32 %v2609, %v2609
        %2614 = vadd.xlane.f32.xlu0 %v2610
        %v2615 = vpop.xlane.xlu0 %2614
        %2616 = vadd.xlane.f32.xlu0 %v2611
        %v2617 = vpop.xlane.xlu0 %2616
        %2618 = vadd.xlane.f32.xlu0 %v2612
        %v2619 = vpop.xlane.xlu0 %2618
        %2620 = vadd.xlane.f32.xlu0 %v2613
        %v2621 = vpop.xlane.xlu0 %2620
        %v2622 = vmul.f32 %v2615, %v747
        %v2623 = vmul.f32 %v2617, %v747
        %v2624 = vmul.f32 %v2619, %v747
        %v2625 = vmul.f32 %v2621, %v747
        %v2626 = vadd.f32 %v2622, 1e-06
        %v2627 = vadd.f32 %v2623, 1e-06
        %v2628 = vadd.f32 %v2624, 1e-06
        %v2629 = vadd.f32 %v2625, 1e-06
        %v2630 = vrsqrt.pop %v2626
        %v2631 = vrsqrt.pop %v2627
        %v2632 = vrsqrt.pop %v2628
        %v2633 = vrsqrt.pop %v2629
        %v2634 = vmul.f32 %v2606, %v2630
        %v2635 = vmul.f32 %v2607, %v2631
        %v2636 = vmul.f32 %v2608, %v2632
        %v2637 = vmul.f32 %v2609, %v2633
        %v2639 = vlaneseq
        %v2640 = vshrl.u32 %v2639, 7
        %v2641 = vsub.s32 0, %v2640
        %v2642 = vrot.slane %v2592, %v2641
        %v2644 = vmul.f32 %v2634, %v2642
        %v2645 = vmul.f32 %v2635, %v2642
        %v2646 = vmul.f32 %v2636, %v2642
        %v2647 = vmul.f32 %v2637, %v2642
        %v2649 = vlaneseq
        %v2650 = vshrl.u32 %v2649, 7
        %v2651 = vsub.s32 0, %v2650
        %v2652 = vrot.slane %v2593, %v2651
        %v2654 = vadd.f32 %v2644, %v2652
        %v2655 = vadd.f32 %v2645, %v2652
        %v2656 = vadd.f32 %v2646, %v2652
        %v2657 = vadd.f32 %v2647, %v2652
        %v2658 = vpack.c.bf16 %v2655, %v2654
        %v2659 = vpack.c.bf16 %v2657, %v2656
        %v2660 = vld [vmem:[#allocation14] sm:$0xff]
        %v2661 = vld [vmem:[#allocation14 + $0x8] sm:$0xff]
        %v2662 = vld [vmem:[#allocation14 + $0x10] sm:$0xff]
        %v2663 = vld [vmem:[#allocation14 + $0x18] sm:$0xff]
        %v2664 = vld [vmem:[#allocation14 + $0x20] sm:$0xff]
        %v2665 = vld [vmem:[#allocation14 + $0x28] sm:$0xff]
        %v2666 = vld [vmem:[#allocation14 + $0x30] sm:$0xff]
        %v2667 = vld [vmem:[#allocation14 + $0x38] sm:$0xff]
        %v2668 = vld [vmem:[#allocation14 + $0x40] sm:$0xff]
        %v2669 = vld [vmem:[#allocation14 + $0x48] sm:$0xff]
        %v2670 = vld [vmem:[#allocation14 + $0x50] sm:$0xff]
        %v2671 = vld [vmem:[#allocation14 + $0x58] sm:$0xff]
        %v2672 = vld [vmem:[#allocation14 + $0x60] sm:$0xff]
        %v2673 = vld [vmem:[#allocation14 + $0x68] sm:$0xff]
        %v2674 = vld [vmem:[#allocation14 + $0x70] sm:$0xff]
        %v2675 = vld [vmem:[#allocation14 + $0x78] sm:$0xff]
        %v2676 = vld [vmem:[#allocation14 + $0x80] sm:$0xff]
        %v2677 = vld [vmem:[#allocation14 + $0x88] sm:$0xff]
        %v2678 = vld [vmem:[#allocation14 + $0x90] sm:$0xff]
        %v2679 = vld [vmem:[#allocation14 + $0x98] sm:$0xff]
        %v2680 = vld [vmem:[#allocation14 + $0xa0] sm:$0xff]
        %v2681 = vld [vmem:[#allocation14 + $0xa8] sm:$0xff]
        %v2682 = vld [vmem:[#allocation14 + $0xb0] sm:$0xff]
        %v2683 = vld [vmem:[#allocation14 + $0xb8] sm:$0xff]
        %v2684 = vld [vmem:[#allocation14 + $0xc0] sm:$0xff]
        %v2685 = vld [vmem:[#allocation14 + $0xc8] sm:$0xff]
        %v2686 = vld [vmem:[#allocation14 + $0xd0] sm:$0xff]
        %v2687 = vld [vmem:[#allocation14 + $0xd8] sm:$0xff]
        %v2688 = vld [vmem:[#allocation14 + $0xe0] sm:$0xff]
        %v2689 = vld [vmem:[#allocation14 + $0xe8] sm:$0xff]
        %v2690 = vld [vmem:[#allocation14 + $0xf0] sm:$0xff]
        %v2691 = vld [vmem:[#allocation14 + $0xf8] sm:$0xff]
        %v2692 = vld [vmem:[%s13] sm:$0xf]
        %v2694 = vlaneseq
        %v2695 = vshrl.u32 %v2694, 7
        %v2696 = vsub.s32 0, %v2695
        %v2697 = vrot.slane %v2692, %v2696
        %v2698 = vlaneseq
        %v2699 = vshrl.u32 %v2698, 7
        %v2700 = vsub.s32 1, %v2699
        %v2701 = vrot.slane %v2692, %v2700
        %v2702 = vlaneseq
        %v2703 = vshrl.u32 %v2702, 7
        %v2704 = vsub.s32 2, %v2703
        %v2705 = vrot.slane %v2692, %v2704
        %v2706 = vlaneseq
        %v2707 = vshrl.u32 %v2706, 7
        %v2708 = vsub.s32 3, %v2707
        %v2709 = vrot.slane %v2692, %v2708
        %v2746 = vunpack.c.l.b16 %v2660
        %v2747 = vunpack.c.h.b16 %v2660
        %v2748 = vunpack.c.l.b16 %v2661
        %v2749 = vunpack.c.h.b16 %v2661
        %v2750 = vunpack.c.l.b16 %v2662
        %v2751 = vunpack.c.h.b16 %v2662
        %v2752 = vunpack.c.l.b16 %v2663
        %v2753 = vunpack.c.h.b16 %v2663
        %v2754 = vunpack.c.l.b16 %v2664
        %v2755 = vunpack.c.h.b16 %v2664
        %v2756 = vunpack.c.l.b16 %v2665
        %v2757 = vunpack.c.h.b16 %v2665
        %v2758 = vunpack.c.l.b16 %v2666
        %v2759 = vunpack.c.h.b16 %v2666
        %v2760 = vunpack.c.l.b16 %v2667
        %v2761 = vunpack.c.h.b16 %v2667
        %v2762 = vunpack.c.l.b16 %v2668
        %v2763 = vunpack.c.h.b16 %v2668
        %v2764 = vunpack.c.l.b16 %v2669
        %v2765 = vunpack.c.h.b16 %v2669
        %v2766 = vunpack.c.l.b16 %v2670
        %v2767 = vunpack.c.h.b16 %v2670
        %v2768 = vunpack.c.l.b16 %v2671
        %v2769 = vunpack.c.h.b16 %v2671
        %v2770 = vunpack.c.l.b16 %v2672
        %v2771 = vunpack.c.h.b16 %v2672
        %v2772 = vunpack.c.l.b16 %v2673
        %v2773 = vunpack.c.h.b16 %v2673
        %v2774 = vunpack.c.l.b16 %v2674
        %v2775 = vunpack.c.h.b16 %v2674
        %v2776 = vunpack.c.l.b16 %v2675
        %v2777 = vunpack.c.h.b16 %v2675
        %v2778 = vunpack.c.l.b16 %v2676
        %v2779 = vunpack.c.h.b16 %v2676
        %v2780 = vunpack.c.l.b16 %v2677
        %v2781 = vunpack.c.h.b16 %v2677
        %v2782 = vunpack.c.l.b16 %v2678
        %v2783 = vunpack.c.h.b16 %v2678
        %v2784 = vunpack.c.l.b16 %v2679
        %v2785 = vunpack.c.h.b16 %v2679
        %v2786 = vunpack.c.l.b16 %v2680
        %v2787 = vunpack.c.h.b16 %v2680
        %v2788 = vunpack.c.l.b16 %v2681
        %v2789 = vunpack.c.h.b16 %v2681
        %v2790 = vunpack.c.l.b16 %v2682
        %v2791 = vunpack.c.h.b16 %v2682
        %v2792 = vunpack.c.l.b16 %v2683
        %v2793 = vunpack.c.h.b16 %v2683
        %v2794 = vunpack.c.l.b16 %v2684
        %v2795 = vunpack.c.h.b16 %v2684
        %v2796 = vunpack.c.l.b16 %v2685
        %v2797 = vunpack.c.h.b16 %v2685
        %v2798 = vunpack.c.l.b16 %v2686
        %v2799 = vunpack.c.h.b16 %v2686
        %v2800 = vunpack.c.l.b16 %v2687
        %v2801 = vunpack.c.h.b16 %v2687
        %v2802 = vunpack.c.l.b16 %v2688
        %v2803 = vunpack.c.h.b16 %v2688
        %v2804 = vunpack.c.l.b16 %v2689
        %v2805 = vunpack.c.h.b16 %v2689
        %v2806 = vunpack.c.l.b16 %v2690
        %v2807 = vunpack.c.h.b16 %v2690
        %v2808 = vunpack.c.l.b16 %v2691
        %v2809 = vunpack.c.h.b16 %v2691
        %v2810 = vpack.c.b16 %v2750, %v2746
        %v2811 = vpack.c.b16 %v2751, %v2747
        %v2812 = vpack.c.b16 %v2752, %v2748
        %v2813 = vpack.c.b16 %v2753, %v2749
        %v2814 = vpack.c.b16 %v2758, %v2754
        %v2815 = vpack.c.b16 %v2759, %v2755
        %v2816 = vpack.c.b16 %v2760, %v2756
        %v2817 = vpack.c.b16 %v2761, %v2757
        %v2818 = vpack.c.b16 %v2766, %v2762
        %v2819 = vpack.c.b16 %v2767, %v2763
        %v2820 = vpack.c.b16 %v2768, %v2764
        %v2821 = vpack.c.b16 %v2769, %v2765
        %v2822 = vpack.c.b16 %v2774, %v2770
        %v2823 = vpack.c.b16 %v2775, %v2771
        %v2824 = vpack.c.b16 %v2776, %v2772
        %v2825 = vpack.c.b16 %v2777, %v2773
        %v2826 = vpack.c.b16 %v2782, %v2778
        %v2827 = vpack.c.b16 %v2783, %v2779
        %v2828 = vpack.c.b16 %v2784, %v2780
        %v2829 = vpack.c.b16 %v2785, %v2781
        %v2830 = vpack.c.b16 %v2790, %v2786
        %v2831 = vpack.c.b16 %v2791, %v2787
        %v2832 = vpack.c.b16 %v2792, %v2788
        %v2833 = vpack.c.b16 %v2793, %v2789
        %v2834 = vpack.c.b16 %v2798, %v2794
        %v2835 = vpack.c.b16 %v2799, %v2795
        %v2836 = vpack.c.b16 %v2800, %v2796
        %v2837 = vpack.c.b16 %v2801, %v2797
        %v2838 = vpack.c.b16 %v2806, %v2802
        %v2839 = vpack.c.b16 %v2807, %v2803
        %v2840 = vpack.c.b16 %v2808, %v2804
        %v2841 = vpack.c.b16 %v2809, %v2805
        %2874 = vmatprep.subr.bf16.mxu0 %v2839
        %2875 = vmatpush1.bf16.msra.mxu0 %v2838
        %2876 = vmatprep.subr.bf16.mxu0 %v2835
        %2877 = vmatpush1.bf16.msra.mxu0 %v2834
        %2878 = vmatprep.subr.bf16.mxu0 %v2831
        %2879 = vmatpush1.bf16.msra.mxu0 %v2830
        %2880 = vmatprep.subr.bf16.mxu0 %v2827
        %2881 = vmatpush1.bf16.msra.mxu0 %v2826
        %2882 = vmatprep.subr.bf16.mxu0 %v2823
        %2883 = vmatpush1.bf16.msra.mxu0 %v2822
        %2884 = vmatprep.subr.bf16.mxu0 %v2819
        %2885 = vmatpush1.bf16.msra.mxu0 %v2818
        %2886 = vmatprep.subr.bf16.mxu0 %v2815
        %2887 = vmatpush1.bf16.msra.mxu0 %v2814
        %2888 = vmatprep.subr.bf16.mxu0 %v2811
        %2889 = vmatpush1.bf16.msra.mxu0 %v2810
        %2890 = vmatprep.subr.bf16.mxu0 0
        %2891 = vmatpush2.bf16.msra.mxu0 0
        %2892 = vmatprep.subr.bf16.mxu0 0
        %2893 = vmatpush2.bf16.msra.mxu0 0
        %2894 = vmatprep.subr.bf16.mxu0 0
        %2895 = vmatpush2.bf16.msra.mxu0 0
        %2896 = vmatprep.subr.bf16.mxu0 0
        %2897 = vmatpush2.bf16.msra.mxu0 0
        %2898 = vmatprep.subr.bf16.mxu0 0
        %2899 = vmatpush2.bf16.msra.mxu0 0
        %2900 = vmatprep.subr.bf16.mxu0 0
        %2901 = vmatpush2.bf16.msra.mxu0 0
        %2902 = vmatprep.subr.bf16.mxu0 0
        %2903 = vmatpush2.bf16.msra.mxu0 0
        %2904 = vmatprep.subr.bf16.mxu0 0
        %2905 = vmatpush2.bf16.msra.mxu0 0
        %2906 = vmatprep.mubr.bf16.mxu0 0
        %2907 = vmatmul.mubr.bf16.gmra.mxu0 %v2658
        %v2908 = vpop.f32.mrf.mxu0
        %v2909 = vadd.f32 %v2697, %v2908
        %v2910 = vpop.f32.mrf.mxu0
        %v2911 = vadd.f32 %v2701, %v2910
        %v2912 = vpop.f32.mrf.mxu0
        %v2913 = vadd.f32 %v2697, %v2912
        %v2914 = vpop.f32.mrf.mxu0
        %v2915 = vadd.f32 %v2701, %v2914
        %2916 = vmatprep.mubr.bf16.mxu0 0
        %2917 = vmatmul.mubr.bf16.gmra.mxu0 %v2659
        %v2918 = vpop.f32.mrf.mxu0
        %v2919 = vadd.f32 %v2697, %v2918
        %v2920 = vpop.f32.mrf.mxu0
        %v2921 = vadd.f32 %v2701, %v2920
        %v2922 = vpop.f32.mrf.mxu0
        %v2923 = vadd.f32 %v2697, %v2922
        %v2924 = vpop.f32.mrf.mxu0
        %v2925 = vadd.f32 %v2701, %v2924
        %2926 = vdwg.mxu0
        %2927 = vmatprep.subr.bf16.mxu0 %v2841
        %2928 = vmatpush1.bf16.msra.mxu0 %v2840
        %2929 = vmatprep.subr.bf16.mxu0 %v2837
        %2930 = vmatpush1.bf16.msra.mxu0 %v2836
        %2931 = vmatprep.subr.bf16.mxu0 %v2833
        %2932 = vmatpush1.bf16.msra.mxu0 %v2832
        %2933 = vmatprep.subr.bf16.mxu0 %v2829
        %2934 = vmatpush1.bf16.msra.mxu0 %v2828
        %2935 = vmatprep.subr.bf16.mxu0 %v2825
        %2936 = vmatpush1.bf16.msra.mxu0 %v2824
        %2937 = vmatprep.subr.bf16.mxu0 %v2821
        %2938 = vmatpush1.bf16.msra.mxu0 %v2820
        %2939 = vmatprep.subr.bf16.mxu0 %v2817
        %2940 = vmatpush1.bf16.msra.mxu0 %v2816
        %2941 = vmatprep.subr.bf16.mxu0 %v2813
        %2942 = vmatpush1.bf16.msra.mxu0 %v2812
        %2943 = vmatprep.subr.bf16.mxu0 0
        %2944 = vmatpush2.bf16.msra.mxu0 0
        %2945 = vmatprep.subr.bf16.mxu0 0
        %2946 = vmatpush2.bf16.msra.mxu0 0
        %2947 = vmatprep.subr.bf16.mxu0 0
        %2948 = vmatpush2.bf16.msra.mxu0 0
        %2949 = vmatprep.subr.bf16.mxu0 0
        %2950 = vmatpush2.bf16.msra.mxu0 0
        %2951 = vmatprep.subr.bf16.mxu0 0
        %2952 = vmatpush2.bf16.msra.mxu0 0
        %2953 = vmatprep.subr.bf16.mxu0 0
        %2954 = vmatpush2.bf16.msra.mxu0 0
        %2955 = vmatprep.subr.bf16.mxu0 0
        %2956 = vmatpush2.bf16.msra.mxu0 0
        %2957 = vmatprep.subr.bf16.mxu0 0
        %2958 = vmatpush2.bf16.msra.mxu0 0
        %2959 = vmatprep.mubr.bf16.mxu0 0
        %2960 = vmatmul.mubr.bf16.gmra.mxu0 %v2658
        %v2961 = vpop.f32.mrf.mxu0
        %v2962 = vadd.f32 %v2705, %v2961
        %v2963 = vpop.f32.mrf.mxu0
        %v2964 = vadd.f32 %v2709, %v2963
        %v2965 = vpop.f32.mrf.mxu0
        %v2966 = vadd.f32 %v2705, %v2965
        %v2967 = vpop.f32.mrf.mxu0
        %v2968 = vadd.f32 %v2709, %v2967
        %2969 = vmatprep.mubr.bf16.mxu0 0
        %2970 = vmatmul.mubr.bf16.gmra.mxu0 %v2659
        %v2971 = vpop.f32.mrf.mxu0
        %v2972 = vadd.f32 %v2705, %v2971
        %v2973 = vpop.f32.mrf.mxu0
        %v2974 = vadd.f32 %v2709, %v2973
        %v2975 = vpop.f32.mrf.mxu0
        %v2976 = vadd.f32 %v2705, %v2975
        %v2977 = vpop.f32.mrf.mxu0
        %v2978 = vadd.f32 %v2709, %v2977
        %2979 = vdwg.mxu0
        %v2980 = vmul.f32 %v2909, %v2909
        %v2981 = vmul.f32 %v2911, %v2911
        %v2982 = vmul.f32 %v2962, %v2962
        %v2983 = vmul.f32 %v2964, %v2964
        %v2984 = vmul.f32 %v2913, %v2913
        %v2985 = vmul.f32 %v2915, %v2915
        %v2986 = vmul.f32 %v2966, %v2966
        %v2987 = vmul.f32 %v2968, %v2968
        %v2988 = vmul.f32 %v2919, %v2919
        %v2989 = vmul.f32 %v2921, %v2921
        %v2990 = vmul.f32 %v2972, %v2972
        %v2991 = vmul.f32 %v2974, %v2974
        %v2992 = vmul.f32 %v2923, %v2923
        %v2993 = vmul.f32 %v2925, %v2925
        %v2994 = vmul.f32 %v2976, %v2976
        %v2995 = vmul.f32 %v2978, %v2978
        %v2996 = vmul.f32 %v2909, %v2980
        %v2997 = vmul.f32 %v2911, %v2981
        %v2998 = vmul.f32 %v2962, %v2982
        %v2999 = vmul.f32 %v2964, %v2983
        %v3000 = vmul.f32 %v2913, %v2984
        %v3001 = vmul.f32 %v2915, %v2985
        %v3002 = vmul.f32 %v2966, %v2986
        %v3003 = vmul.f32 %v2968, %v2987
        %v3004 = vmul.f32 %v2919, %v2988
        %v3005 = vmul.f32 %v2921, %v2989
        %v3006 = vmul.f32 %v2972, %v2990
        %v3007 = vmul.f32 %v2974, %v2991
        %v3008 = vmul.f32 %v2923, %v2992
        %v3009 = vmul.f32 %v2925, %v2993
        %v3010 = vmul.f32 %v2976, %v2994
        %v3011 = vmul.f32 %v2978, %v2995
        %v3012 = vmul.f32 %v2996, 0.044715
        %v3013 = vmul.f32 %v2997, 0.044715
        %v3014 = vmul.f32 %v2998, 0.044715
        %v3015 = vmul.f32 %v2999, 0.044715
        %v3016 = vmul.f32 %v3000, 0.044715
        %v3017 = vmul.f32 %v3001, 0.044715
        %v3018 = vmul.f32 %v3002, 0.044715
        %v3019 = vmul.f32 %v3003, 0.044715
        %v3020 = vmul.f32 %v3004, 0.044715
        %v3021 = vmul.f32 %v3005, 0.044715
        %v3022 = vmul.f32 %v3006, 0.044715
        %v3023 = vmul.f32 %v3007, 0.044715
        %v3024 = vmul.f32 %v3008, 0.044715
        %v3025 = vmul.f32 %v3009, 0.044715
        %v3026 = vmul.f32 %v3010, 0.044715
        %v3027 = vmul.f32 %v3011, 0.044715
        %v3028 = vadd.f32 %v2909, %v3012
        %v3029 = vadd.f32 %v2911, %v3013
        %v3030 = vadd.f32 %v2962, %v3014
        %v3031 = vadd.f32 %v2964, %v3015
        %v3032 = vadd.f32 %v2913, %v3016
        %v3033 = vadd.f32 %v2915, %v3017
        %v3034 = vadd.f32 %v2966, %v3018
        %v3035 = vadd.f32 %v2968, %v3019
        %v3036 = vadd.f32 %v2919, %v3020
        %v3037 = vadd.f32 %v2921, %v3021
        %v3038 = vadd.f32 %v2972, %v3022
        %v3039 = vadd.f32 %v2974, %v3023
        %v3040 = vadd.f32 %v2923, %v3024
        %v3041 = vadd.f32 %v2925, %v3025
        %v3042 = vadd.f32 %v2976, %v3026
        %v3043 = vadd.f32 %v2978, %v3027
        %v3044 = vmul.f32 %v3028, 0.7978846
        %v3045 = vmul.f32 %v3029, 0.7978846
        %v3046 = vmul.f32 %v3030, 0.7978846
        %v3047 = vmul.f32 %v3031, 0.7978846
        %v3048 = vmul.f32 %v3032, 0.7978846
        %v3049 = vmul.f32 %v3033, 0.7978846
        %v3050 = vmul.f32 %v3034, 0.7978846
        %v3051 = vmul.f32 %v3035, 0.7978846
        %v3052 = vmul.f32 %v3036, 0.7978846
        %v3053 = vmul.f32 %v3037, 0.7978846
        %v3054 = vmul.f32 %v3038, 0.7978846
        %v3055 = vmul.f32 %v3039, 0.7978846
        %v3056 = vmul.f32 %v3040, 0.7978846
        %v3057 = vmul.f32 %v3041, 0.7978846
        %v3058 = vmul.f32 %v3042, 0.7978846
        %v3059 = vmul.f32 %v3043, 0.7978846
        %v3060 = vtanh.pop %v3044
        %v3061 = vtanh.pop %v3045
        %v3062 = vtanh.pop %v3046
        %v3063 = vtanh.pop %v3047
        %v3064 = vtanh.pop %v3048
        %v3065 = vtanh.pop %v3049
        %v3066 = vtanh.pop %v3050
        %v3067 = vtanh.pop %v3051
        %v3068 = vtanh.pop %v3052
        %v3069 = vtanh.pop %v3053
        %v3070 = vtanh.pop %v3054
        %v3071 = vtanh.pop %v3055
        %v3072 = vtanh.pop %v3056
        %v3073 = vtanh.pop %v3057
        %v3074 = vtanh.pop %v3058
        %v3075 = vtanh.pop %v3059
        %v3076 = vadd.f32 %v3060, 1.0
        %v3077 = vadd.f32 %v3061, 1.0
        %v3078 = vadd.f32 %v3062, 1.0
        %v3079 = vadd.f32 %v3063, 1.0
        %v3080 = vadd.f32 %v3064, 1.0
        %v3081 = vadd.f32 %v3065, 1.0
        %v3082 = vadd.f32 %v3066, 1.0
        %v3083 = vadd.f32 %v3067, 1.0
        %v3084 = vadd.f32 %v3068, 1.0
        %v3085 = vadd.f32 %v3069, 1.0
        %v3086 = vadd.f32 %v3070, 1.0
        %v3087 = vadd.f32 %v3071, 1.0
        %v3088 = vadd.f32 %v3072, 1.0
        %v3089 = vadd.f32 %v3073, 1.0
        %v3090 = vadd.f32 %v3074, 1.0
        %v3091 = vadd.f32 %v3075, 1.0
        %v3092 = vmul.f32 %v3076, 0.5
        %v3093 = vmul.f32 %v3077, 0.5
        %v3094 = vmul.f32 %v3078, 0.5
        %v3095 = vmul.f32 %v3079, 0.5
        %v3096 = vmul.f32 %v3080, 0.5
        %v3097 = vmul.f32 %v3081, 0.5
        %v3098 = vmul.f32 %v3082, 0.5
        %v3099 = vmul.f32 %v3083, 0.5
        %v3100 = vmul.f32 %v3084, 0.5
        %v3101 = vmul.f32 %v3085, 0.5
        %v3102 = vmul.f32 %v3086, 0.5
        %v3103 = vmul.f32 %v3087, 0.5
        %v3104 = vmul.f32 %v3088, 0.5
        %v3105 = vmul.f32 %v3089, 0.5
        %v3106 = vmul.f32 %v3090, 0.5
        %v3107 = vmul.f32 %v3091, 0.5
        %v3108 = vmul.f32 %v2909, %v3092
        %v3109 = vmul.f32 %v2911, %v3093
        %v3110 = vmul.f32 %v2962, %v3094
        %v3111 = vmul.f32 %v2964, %v3095
        %v3112 = vmul.f32 %v2913, %v3096
        %v3113 = vmul.f32 %v2915, %v3097
        %v3114 = vmul.f32 %v2966, %v3098
        %v3115 = vmul.f32 %v2968, %v3099
        %v3116 = vmul.f32 %v2919, %v3100
        %v3117 = vmul.f32 %v2921, %v3101
        %v3118 = vmul.f32 %v2972, %v3102
        %v3119 = vmul.f32 %v2974, %v3103
        %v3120 = vmul.f32 %v2923, %v3104
        %v3121 = vmul.f32 %v2925, %v3105
        %v3122 = vmul.f32 %v2976, %v3106
        %v3123 = vmul.f32 %v2978, %v3107
        %v3124 = vpack.c.bf16 %v3112, %v3108
        %v3125 = vpack.c.bf16 %v3113, %v3109
        %v3126 = vpack.c.bf16 %v3114, %v3110
        %v3127 = vpack.c.bf16 %v3115, %v3111
        %v3128 = vpack.c.bf16 %v3120, %v3116
        %v3129 = vpack.c.bf16 %v3121, %v3117
        %v3130 = vpack.c.bf16 %v3122, %v3118
        %v3131 = vpack.c.bf16 %v3123, %v3119
        %v3132 = vld [vmem:[#allocation16] sm:$0xf]
        %v3133 = vld [vmem:[#allocation16 + $0x4] sm:$0xf]
        %v3134 = vld [vmem:[#allocation16 + $0x8] sm:$0xf]
        %v3135 = vld [vmem:[#allocation16 + $0xc] sm:$0xf]
        %v3136 = vld [vmem:[#allocation16 + $0x10] sm:$0xf]
        %v3137 = vld [vmem:[#allocation16 + $0x14] sm:$0xf]
        %v3138 = vld [vmem:[#allocation16 + $0x18] sm:$0xf]
        %v3139 = vld [vmem:[#allocation16 + $0x1c] sm:$0xf]
        %v3140 = vld [vmem:[#allocation16 + $0x20] sm:$0xf]
        %v3141 = vld [vmem:[#allocation16 + $0x24] sm:$0xf]
        %v3142 = vld [vmem:[#allocation16 + $0x28] sm:$0xf]
        %v3143 = vld [vmem:[#allocation16 + $0x2c] sm:$0xf]
        %v3144 = vld [vmem:[#allocation16 + $0x30] sm:$0xf]
        %v3145 = vld [vmem:[#allocation16 + $0x34] sm:$0xf]
        %v3146 = vld [vmem:[#allocation16 + $0x38] sm:$0xf]
        %v3147 = vld [vmem:[#allocation16 + $0x3c] sm:$0xf]
        %v3148 = vld [vmem:[#allocation16 + $0x40] sm:$0xf]
        %v3149 = vld [vmem:[#allocation16 + $0x44] sm:$0xf]
        %v3150 = vld [vmem:[#allocation16 + $0x48] sm:$0xf]
        %v3151 = vld [vmem:[#allocation16 + $0x4c] sm:$0xf]
        %v3152 = vld [vmem:[#allocation16 + $0x50] sm:$0xf]
        %v3153 = vld [vmem:[#allocation16 + $0x54] sm:$0xf]
        %v3154 = vld [vmem:[#allocation16 + $0x58] sm:$0xf]
        %v3155 = vld [vmem:[#allocation16 + $0x5c] sm:$0xf]
        %v3156 = vld [vmem:[#allocation16 + $0x60] sm:$0xf]
        %v3157 = vld [vmem:[#allocation16 + $0x64] sm:$0xf]
        %v3158 = vld [vmem:[#allocation16 + $0x68] sm:$0xf]
        %v3159 = vld [vmem:[#allocation16 + $0x6c] sm:$0xf]
        %v3160 = vld [vmem:[#allocation16 + $0x70] sm:$0xf]
        %v3161 = vld [vmem:[#allocation16 + $0x74] sm:$0xf]
        %v3162 = vld [vmem:[#allocation16 + $0x78] sm:$0xf]
        %v3163 = vld [vmem:[#allocation16 + $0x7c] sm:$0xf]
        %v3164 = vld [vmem:[#allocation16 + $0x80] sm:$0xf]
        %v3165 = vld [vmem:[#allocation16 + $0x84] sm:$0xf]
        %v3166 = vld [vmem:[#allocation16 + $0x88] sm:$0xf]
        %v3167 = vld [vmem:[#allocation16 + $0x8c] sm:$0xf]
        %v3168 = vld [vmem:[#allocation16 + $0x90] sm:$0xf]
        %v3169 = vld [vmem:[#allocation16 + $0x94] sm:$0xf]
        %v3170 = vld [vmem:[#allocation16 + $0x98] sm:$0xf]
        %v3171 = vld [vmem:[#allocation16 + $0x9c] sm:$0xf]
        %v3172 = vld [vmem:[#allocation16 + $0xa0] sm:$0xf]
        %v3173 = vld [vmem:[#allocation16 + $0xa4] sm:$0xf]
        %v3174 = vld [vmem:[#allocation16 + $0xa8] sm:$0xf]
        %v3175 = vld [vmem:[#allocation16 + $0xac] sm:$0xf]
        %v3176 = vld [vmem:[#allocation16 + $0xb0] sm:$0xf]
        %v3177 = vld [vmem:[#allocation16 + $0xb4] sm:$0xf]
        %v3178 = vld [vmem:[#allocation16 + $0xb8] sm:$0xf]
        %v3179 = vld [vmem:[#allocation16 + $0xbc] sm:$0xf]
        %v3180 = vld [vmem:[#allocation16 + $0xc0] sm:$0xf]
        %v3181 = vld [vmem:[#allocation16 + $0xc4] sm:$0xf]
        %v3182 = vld [vmem:[#allocation16 + $0xc8] sm:$0xf]
        %v3183 = vld [vmem:[#allocation16 + $0xcc] sm:$0xf]
        %v3184 = vld [vmem:[#allocation16 + $0xd0] sm:$0xf]
        %v3185 = vld [vmem:[#allocation16 + $0xd4] sm:$0xf]
        %v3186 = vld [vmem:[#allocation16 + $0xd8] sm:$0xf]
        %v3187 = vld [vmem:[#allocation16 + $0xdc] sm:$0xf]
        %v3188 = vld [vmem:[#allocation16 + $0xe0] sm:$0xf]
        %v3189 = vld [vmem:[#allocation16 + $0xe4] sm:$0xf]
        %v3190 = vld [vmem:[#allocation16 + $0xe8] sm:$0xf]
        %v3191 = vld [vmem:[#allocation16 + $0xec] sm:$0xf]
        %v3192 = vld [vmem:[#allocation16 + $0xf0] sm:$0xf]
        %v3193 = vld [vmem:[#allocation16 + $0xf4] sm:$0xf]
        %v3194 = vld [vmem:[#allocation16 + $0xf8] sm:$0xf]
        %v3195 = vld [vmem:[#allocation16 + $0xfc] sm:$0xf]
        %v3196 = vld [vmem:[%s15] sm:$0x1]
        %v3198 = vlaneseq
        %v3199 = vshrl.u32 %v3198, 7
        %v3200 = vsub.s32 0, %v3199
        %v3201 = vrot.slane %v3196, %v3200
        %v3267 = vunpack.c.l.b16 %v3132
        %v3268 = vunpack.c.l.b16 %v3133
        %v3269 = vunpack.c.l.b16 %v3134
        %v3270 = vunpack.c.l.b16 %v3135
        %v3271 = vunpack.c.l.b16 %v3136
        %v3272 = vunpack.c.l.b16 %v3137
        %v3273 = vunpack.c.l.b16 %v3138
        %v3274 = vunpack.c.l.b16 %v3139
        %v3275 = vunpack.c.l.b16 %v3140
        %v3276 = vunpack.c.l.b16 %v3141
        %v3277 = vunpack.c.l.b16 %v3142
        %v3278 = vunpack.c.l.b16 %v3143
        %v3279 = vunpack.c.l.b16 %v3144
        %v3280 = vunpack.c.l.b16 %v3145
        %v3281 = vunpack.c.l.b16 %v3146
        %v3282 = vunpack.c.l.b16 %v3147
        %v3283 = vunpack.c.l.b16 %v3148
        %v3284 = vunpack.c.l.b16 %v3149
        %v3285 = vunpack.c.l.b16 %v3150
        %v3286 = vunpack.c.l.b16 %v3151
        %v3287 = vunpack.c.l.b16 %v3152
        %v3288 = vunpack.c.l.b16 %v3153
        %v3289 = vunpack.c.l.b16 %v3154
        %v3290 = vunpack.c.l.b16 %v3155
        %v3291 = vunpack.c.l.b16 %v3156
        %v3292 = vunpack.c.l.b16 %v3157
        %v3293 = vunpack.c.l.b16 %v3158
        %v3294 = vunpack.c.l.b16 %v3159
        %v3295 = vunpack.c.l.b16 %v3160
        %v3296 = vunpack.c.l.b16 %v3161
        %v3297 = vunpack.c.l.b16 %v3162
        %v3298 = vunpack.c.l.b16 %v3163
        %v3299 = vunpack.c.l.b16 %v3164
        %v3300 = vunpack.c.l.b16 %v3165
        %v3301 = vunpack.c.l.b16 %v3166
        %v3302 = vunpack.c.l.b16 %v3167
        %v3303 = vunpack.c.l.b16 %v3168
        %v3304 = vunpack.c.l.b16 %v3169
        %v3305 = vunpack.c.l.b16 %v3170
        %v3306 = vunpack.c.l.b16 %v3171
        %v3307 = vunpack.c.l.b16 %v3172
        %v3308 = vunpack.c.l.b16 %v3173
        %v3309 = vunpack.c.l.b16 %v3174
        %v3310 = vunpack.c.l.b16 %v3175
        %v3311 = vunpack.c.l.b16 %v3176
        %v3312 = vunpack.c.l.b16 %v3177
        %v3313 = vunpack.c.l.b16 %v3178
        %v3314 = vunpack.c.l.b16 %v3179
        %v3315 = vunpack.c.l.b16 %v3180
        %v3316 = vunpack.c.l.b16 %v3181
        %v3317 = vunpack.c.l.b16 %v3182
        %v3318 = vunpack.c.l.b16 %v3183
        %v3319 = vunpack.c.l.b16 %v3184
        %v3320 = vunpack.c.l.b16 %v3185
        %v3321 = vunpack.c.l.b16 %v3186
        %v3322 = vunpack.c.l.b16 %v3187
        %v3323 = vunpack.c.l.b16 %v3188
        %v3324 = vunpack.c.l.b16 %v3189
        %v3325 = vunpack.c.l.b16 %v3190
        %v3326 = vunpack.c.l.b16 %v3191
        %v3327 = vunpack.c.l.b16 %v3192
        %v3328 = vunpack.c.l.b16 %v3193
        %v3329 = vunpack.c.l.b16 %v3194
        %v3330 = vunpack.c.l.b16 %v3195
        %v3331 = vpack.c.b16 %v3268, %v3267
        %v3332 = vpack.c.b16 %v3270, %v3269
        %v3333 = vpack.c.b16 %v3272, %v3271
        %v3334 = vpack.c.b16 %v3274, %v3273
        %v3335 = vpack.c.b16 %v3276, %v3275
        %v3336 = vpack.c.b16 %v3278, %v3277
        %v3337 = vpack.c.b16 %v3280, %v3279
        %v3338 = vpack.c.b16 %v3282, %v3281
        %v3339 = vpack.c.b16 %v3284, %v3283
        %v3340 = vpack.c.b16 %v3286, %v3285
        %v3341 = vpack.c.b16 %v3288, %v3287
        %v3342 = vpack.c.b16 %v3290, %v3289
        %v3343 = vpack.c.b16 %v3292, %v3291
        %v3344 = vpack.c.b16 %v3294, %v3293
        %v3345 = vpack.c.b16 %v3296, %v3295
        %v3346 = vpack.c.b16 %v3298, %v3297
        %v3347 = vpack.c.b16 %v3300, %v3299
        %v3348 = vpack.c.b16 %v3302, %v3301
        %v3349 = vpack.c.b16 %v3304, %v3303
        %v3350 = vpack.c.b16 %v3306, %v3305
        %v3351 = vpack.c.b16 %v3308, %v3307
        %v3352 = vpack.c.b16 %v3310, %v3309
        %v3353 = vpack.c.b16 %v3312, %v3311
        %v3354 = vpack.c.b16 %v3314, %v3313
        %v3355 = vpack.c.b16 %v3316, %v3315
        %v3356 = vpack.c.b16 %v3318, %v3317
        %v3357 = vpack.c.b16 %v3320, %v3319
        %v3358 = vpack.c.b16 %v3322, %v3321
        %v3359 = vpack.c.b16 %v3324, %v3323
        %v3360 = vpack.c.b16 %v3326, %v3325
        %v3361 = vpack.c.b16 %v3328, %v3327
        %v3362 = vpack.c.b16 %v3330, %v3329
        %3395 = vmatprep.subr.bf16.mxu0 0
        %3396 = vmatpush1.bf16.msra.mxu0 %v3338
        %3397 = vmatprep.subr.bf16.mxu0 0
        %3398 = vmatpush1.bf16.msra.mxu0 %v3337
        %3399 = vmatprep.subr.bf16.mxu0 0
        %3400 = vmatpush1.bf16.msra.mxu0 %v3336
        %3401 = vmatprep.subr.bf16.mxu0 0
        %3402 = vmatpush1.bf16.msra.mxu0 %v3335
        %3403 = vmatprep.subr.bf16.mxu0 0
        %3404 = vmatpush1.bf16.msra.mxu0 %v3334
        %3405 = vmatprep.subr.bf16.mxu0 0
        %3406 = vmatpush1.bf16.msra.mxu0 %v3333
        %3407 = vmatprep.subr.bf16.mxu0 0
        %3408 = vmatpush1.bf16.msra.mxu0 %v3332
        %3409 = vmatprep.subr.bf16.mxu0 0
        %3410 = vmatpush1.bf16.msra.mxu0 %v3331
        %3411 = vmatprep.subr.bf16.mxu0 0
        %3412 = vmatpush2.bf16.msra.mxu0 %v3346
        %3413 = vmatprep.subr.bf16.mxu0 0
        %3414 = vmatpush2.bf16.msra.mxu0 %v3345
        %3415 = vmatprep.subr.bf16.mxu0 0
        %3416 = vmatpush2.bf16.msra.mxu0 %v3344
        %3417 = vmatprep.subr.bf16.mxu0 0
        %3418 = vmatpush2.bf16.msra.mxu0 %v3343
        %3419 = vmatprep.subr.bf16.mxu0 0
        %3420 = vmatpush2.bf16.msra.mxu0 %v3342
        %3421 = vmatprep.subr.bf16.mxu0 0
        %3422 = vmatpush2.bf16.msra.mxu0 %v3341
        %3423 = vmatprep.subr.bf16.mxu0 0
        %3424 = vmatpush2.bf16.msra.mxu0 %v3340
        %3425 = vmatprep.subr.bf16.mxu0 0
        %3426 = vmatpush2.bf16.msra.mxu0 %v3339
        %3427 = vmatprep.mubr.bf16.mxu0 %v3125
        %3428 = vmatmul.mubr.bf16.gmra.mxu0 %v3124
        %v3429 = vpop.f32.mrf.mxu0
        %v3430 = vadd.f32 %v3201, %v3429
        %v3431 = vpop.f32.mrf.mxu0
        %v3432 = vpop.f32.mrf.mxu0
        %v3433 = vadd.f32 %v3201, %v3432
        %v3434 = vpop.f32.mrf.mxu0
        %3435 = vmatprep.mubr.bf16.mxu0 %v3129
        %3436 = vmatmul.mubr.bf16.gmra.mxu0 %v3128
        %v3437 = vpop.f32.mrf.mxu0
        %v3438 = vadd.f32 %v3201, %v3437
        %v3439 = vpop.f32.mrf.mxu0
        %v3440 = vpop.f32.mrf.mxu0
        %v3441 = vadd.f32 %v3201, %v3440
        %v3442 = vpop.f32.mrf.mxu0
        %3443 = vdwg.mxu0
        %3444 = vmatprep.subr.bf16.mxu0 0
        %3445 = vmatpush1.bf16.msra.mxu0 %v3354
        %3446 = vmatprep.subr.bf16.mxu0 0
        %3447 = vmatpush1.bf16.msra.mxu0 %v3353
        %3448 = vmatprep.subr.bf16.mxu0 0
        %3449 = vmatpush1.bf16.msra.mxu0 %v3352
        %3450 = vmatprep.subr.bf16.mxu0 0
        %3451 = vmatpush1.bf16.msra.mxu0 %v3351
        %3452 = vmatprep.subr.bf16.mxu0 0
        %3453 = vmatpush1.bf16.msra.mxu0 %v3350
        %3454 = vmatprep.subr.bf16.mxu0 0
        %3455 = vmatpush1.bf16.msra.mxu0 %v3349
        %3456 = vmatprep.subr.bf16.mxu0 0
        %3457 = vmatpush1.bf16.msra.mxu0 %v3348
        %3458 = vmatprep.subr.bf16.mxu0 0
        %3459 = vmatpush1.bf16.msra.mxu0 %v3347
        %3460 = vmatprep.subr.bf16.mxu0 0
        %3461 = vmatpush2.bf16.msra.mxu0 %v3362
        %3462 = vmatprep.subr.bf16.mxu0 0
        %3463 = vmatpush2.bf16.msra.mxu0 %v3361
        %3464 = vmatprep.subr.bf16.mxu0 0
        %3465 = vmatpush2.bf16.msra.mxu0 %v3360
        %3466 = vmatprep.subr.bf16.mxu0 0
        %3467 = vmatpush2.bf16.msra.mxu0 %v3359
        %3468 = vmatprep.subr.bf16.mxu0 0
        %3469 = vmatpush2.bf16.msra.mxu0 %v3358
        %3470 = vmatprep.subr.bf16.mxu0 0
        %3471 = vmatpush2.bf16.msra.mxu0 %v3357
        %3472 = vmatprep.subr.bf16.mxu0 0
        %3473 = vmatpush2.bf16.msra.mxu0 %v3356
        %3474 = vmatprep.subr.bf16.mxu0 0
        %3475 = vmatpush2.bf16.msra.mxu0 %v3355
        %3476 = vmatprep.mubr.bf16.mxu0 %v3127
        %3477 = vmatmul.mubr.bf16.gmra.mxu0 %v3126
        %v3478 = vpop.f32.mrf.mxu0
        %v3479 = vadd.f32 %v3430, %v3478
        %v3480 = vpop.f32.mrf.mxu0
        %v3481 = vpop.f32.mrf.mxu0
        %v3482 = vadd.f32 %v3433, %v3481
        %v3483 = vpop.f32.mrf.mxu0
        %3484 = vmatprep.mubr.bf16.mxu0 %v3131
        %3485 = vmatmul.mubr.bf16.gmra.mxu0 %v3130
        %v3486 = vpop.f32.mrf.mxu0
        %v3487 = vadd.f32 %v3438, %v3486
        %v3488 = vpop.f32.mrf.mxu0
        %v3489 = vpop.f32.mrf.mxu0
        %v3490 = vadd.f32 %v3441, %v3489
        %v3491 = vpop.f32.mrf.mxu0
        %3492 = vdwg.mxu0
        %v3493 = vld [vmem:[%s16] sm:$0x1]
        %v3495 = vlaneseq
        %v3496 = vshrl.u32 %v3495, 7
        %v3497 = vsub.s32 0, %v3496
        %v3498 = vrot.slane %v3493, %v3497
        %v3500 = vmul.f32 %v3479, %v3498
        %v3501 = vmul.f32 %v3482, %v3498
        %v3502 = vmul.f32 %v3487, %v3498
        %v3503 = vmul.f32 %v3490, %v3498
        %v3504 = vadd.f32 %v2588, %v3500
        %v3505 = vadd.f32 %v2589, %v3501
        %v3506 = vadd.f32 %v2590, %v3502
        %v3507 = vadd.f32 %v2591, %v3503
        %3508 = vst [vmem:[%s727] sm:$0xff] %v3504
        %3509 = vst [vmem:[%s727 + $0x8] sm:$0xff] %v3505
        %3510 = vst [vmem:[%s727 + $0x10] sm:$0xff] %v3506
        %3511 = vst [vmem:[%s727 + $0x18] sm:$0xff] %v3507
        %s3512 = sand.u32 %s420, 1
        %s3513 = scalar_lea.sflag [#allocation4], %s3512
        %s3514 = sand.u32 %s420, 1
        %s3515 = smul.addr %s3514, 32
        %s3516 = scalar_lea.vmem [#allocation17], %s3515
        // Predicated region
        $region125: #{tpu_custom_call.1} parent=87 // pred_check
          %p3517 = pneg %p430
        $region126: #{tpu_custom_call.1} parent=87 // pred_check_branch
          %3519 = sbr.rel (%p3517) target = $region128
        $region127: #{tpu_custom_call.1} parent=87 // pred_region
          %s3520 = smul.u32 2, %s40
          %s3522 = ssub.s32 512, 512
          %3523 = vsyncadd %s3513, %s3522
          %s3524 = smul.addr %s3520, 2
          %s3525 = smul.addr %s3524, 128
          %s3526 = scalar_lea.hbm %s17, %s3525
          %s3527 = sshll.u32 %s3516, 4
          %s3528 = int_to_ptr.vmem [resolvable:$true] %s3527
          %3533 = dma.vmem_to_hbm [thread:$0]  %s3528, 512, %s3526, %s3513, 128, 128, 8
        $region128: #{tpu_custom_call.1} parent=87 // pred_fallthru
          _
      $region88: #{tpu_custom_call.1} parent=5 // pred_fallthru
        _
      %p3534 = scmp.le.s32.totalorder 2, %s35
      // Predicated region
      $region129: #{tpu_custom_call.1} parent=5 // pred_check
        %p3535 = pneg %p3534
      $region130: #{tpu_custom_call.1} parent=5 // pred_check_branch
        %3537 = sbr.rel (%p3535) target = $region132
      $region131: #{tpu_custom_call.1} parent=5 // pred_region
        %s3538 = ssub.s32 %s35, 2
        // Predicated region
        $region133: #{tpu_custom_call.1} parent=131 // pred_check
          %p3539 = pneg %p436
        $region134: #{tpu_custom_call.1} parent=131 // pred_check_branch
          %3541 = sbr.rel (%p3539) target = $region136
        $region135: #{tpu_custom_call.1} parent=131 // pred_region
          %s3542 = sand.u32 %s421, 1
          %s3543 = scalar_lea.sflag [#allocation4], %s3542
          %s3544 = sand.u32 %s421, 1
          %s3545 = smul.addr %s3544, 32
          %s3546 = scalar_lea.vmem [#allocation17], %s3545
          %3547 = dma.done %s3543, 512
        $region136: #{tpu_custom_call.1} parent=131 // pred_fallthru
          _
      $region132: #{tpu_custom_call.1} parent=5 // pred_fallthru
        _
    $region6: #{tpu_custom_call.1} parent=1 // loop_footer
      %s39 = sadd.s32 1, %s35
    $region7: #{tpu_custom_call.1} parent=1 // loop_footer_branch
      %34 = sbr.rel target = $region3
    $region8: #{tpu_custom_call.1} parent=1 // loop_exit
      _
    %3548 = vsyncpa [#allocation3], 1
    %s3549 = scalar_lea.sflag [#allocation3], 1
    %3550 = vsyncpa %s3549, 1
    %3551 = vsyncpa [#allocation6], 1
    %s3552 = scalar_lea.sflag [#allocation6], 1
    %3553 = vsyncpa %s3552, 1
    %3554 = vsyncpa [#allocation9], 1
    %3555 = vsyncpa [#allocation12], 1
    %3556 = vsyncpa [#allocation15], 1
    %3557 = vsyncpa [#allocation4], 1
    %s3558 = scalar_lea.sflag [#allocation4], 1
    %3559 = vsyncpa %s3558, 1

</llo_original>
